<compile_context>
chip_gen: v5e
topology: v5e:2x2
jax: 0.10.0
libtpu: 0.0.40
codegen_flags: <defaults>
</compile_context>

<pallas_src>
import functools

import jax
import jax.numpy as jnp
from jax.experimental import pallas as pl
from jax.experimental.pallas import tpu as pltpu

EPS = 1e-5


# ----------------------------------------------------------------------------
# hardware queries (generation-aware sizing)
# ----------------------------------------------------------------------------
def _vmem_capacity_bytes():
    try:
        return int(pltpu.get_tpu_info().vmem_capacity_bytes)
    except Exception:
        return 64 * 1024 * 1024          # conservative fallback (v7x per-TensorCore)


def _is_v5e():
    try:
        kind = jax.devices()[0].device_kind.lower()
    except Exception:
        return False
    return ("v5e" in kind) or ("v5 lite" in kind) or ("v5lite" in kind)


def _block_spec(shape, index_map, buffer_count=None):
    """BlockSpec, optionally with N-deep pipelining (graceful fallback)."""
    if buffer_count is not None and buffer_count > 2 and hasattr(pl, "Buffered"):
        try:
            return pl.BlockSpec(shape, index_map,
                                pipeline_mode=pl.Buffered(buffer_count))
        except Exception:
            pass
    return pl.BlockSpec(shape, index_map)


# ----------------------------------------------------------------------------
# tiling helpers
# ----------------------------------------------------------------------------
def _pick_row_tile(H):
    """Largest row tile in {64,32,16,8} that divides H and gives >=2 tiles."""
    for t in (64, 32, 16, 8):
        if H % t == 0 and H // t >= 2:
            return t
    return H


def _conv_vmem_estimate(TR, W, Cin, Cout, isz_in, isz_cd, isz_out, n_buf):
    """Per-step VMEM: pipelined blocks (n_buf-deep) + live in-kernel temporaries."""
    blocks = (n_buf * TR * W * Cin * isz_in             # main input tile
              + 2 * 2 * W * Cin * isz_in                # two 1-row halos
              + 2 * 9 * Cin * Cout * isz_cd             # weights (resident)
              + 2 * (Cout + 2 * Cin + 4 * Cout) * 4     # bias / scale / shift / stats
              + n_buf * TR * W * Cout * isz_out)        # output tile
    temps = (TR * W * Cin * 4                           # f32 tile after input BN
             + (TR + 2) * (W + 2) * Cin * isz_cd        # padded value tile
             + 2 * TR * W * Cin * isz_cd                # a couple of live taps
             + 2 * TR * W * Cout * 4)                   # f32 accumulator chain
    return blocks + temps


def _pick_flat_tile(rows, lane_elems, itemsize, budget_bytes):
    """Byte-aware row tile for the flattened BN+ReLU pass (TB % 8 == 0 or TB == rows)."""
    for t in (1024, 512, 256, 128, 64, 32, 16, 8):
        if rows % t == 0 and 2 * 2 * t * lane_elems * itemsize <= budget_bytes:
            return t
    return rows


# ----------------------------------------------------------------------------
# Kernel 1: 3x3 "SAME" conv on a row tile
#   - optional fused BN+ReLU applied to the *input* read (previous layer's BN),
#   - in-kernel virtual zero padding from 1-row halo blocks (value concat, no
#     scratch round trip),
#   - split-K conv: 9 accumulated matmuls (K = Cin) with f32 accumulation,
#   - per-tile BatchNorm partial stats (sum, centered M2) per grid step.
# ----------------------------------------------------------------------------
def _make_conv_kernel(TR, W, apply_input_bn, compute_dtype):
    def kernel(xm_ref, xt_ref, xb_ref, w_ref, b_ref, sc_ref, sh_ref,
               o_ref, ts_ref, tm2_ref):
        r = pl.program_id(1)
        num_r = pl.num_programs(1)
        Cin = xm_ref.shape[3]
        Cout = o_ref.shape[3]

        x = xm_ref[0].astype(jnp.float32)        # (TR, W, Cin) main rows
        top = xt_ref[0, 0].astype(jnp.float32)   # (W, Cin) image row r*TR-1   (valid iff r > 0)
        bot = xb_ref[0, 0].astype(jnp.float32)   # (W, Cin) image row (r+1)*TR (valid iff r < num_r-1)

        if apply_input_bn:                       # fused BN+ReLU of the previous layer (VPU, f32)
            s = sc_ref[...]
            t = sh_ref[...]
            x = jnp.maximum(x * s + t, 0.0)
            top = jnp.maximum(top * s + t, 0.0)
            bot = jnp.maximum(bot * s + t, 0.0)

        # Virtual zero padding at the image top / bottom boundary.
        top = top * (r > 0).astype(jnp.float32)
        bot = bot * (r < num_r - 1).astype(jnp.float32)

        # Padded value tile in the MXU operand dtype (no VMEM scratch round trip).
        xc = x.astype(compute_dtype)
        xp = jnp.concatenate([top.astype(compute_dtype)[None], xc,
                              bot.astype(compute_dtype)[None]], axis=0)   # (TR+2, W, Cin)
        zc = jnp.zeros((TR + 2, 1, Cin), compute_dtype)
        xp = jnp.concatenate([zc, xp, zc], axis=1)                        # (TR+2, W+2, Cin)

        # Split-K conv: 9 accumulated matmuls, K = Cin, f32 accumulation.
        acc = jnp.zeros((TR * W, Cout), jnp.float32)
        for kh in range(3):
            for kw in range(3):
                tap = xp[kh:kh + TR, kw:kw + W, :].reshape(TR * W, Cin)
                acc = acc + jnp.dot(tap, w_ref[kh * 3 + kw],
                                    preferred_element_type=jnp.float32)
        acc = acc + b_ref[...]                                            # (TR*W, Cout)

        # TODO(synk): for 8 <= Cout < 128 a lane-dense (TR, W*Cout) output block (or a
        # pure-VPU tap-MAC path for tiny C) would avoid masked vst; kept the proven layout.
        o_ref[0] = acc.reshape(TR, W, Cout).astype(o_ref.dtype)

        # Per-tile BN partial stats (sum + centered second moment) -> combined in the
        # wrapper with Chan's formula.  No cross-step accumulation: all axes parallel.
        cnt = float(TR * W)
        tsum = jnp.sum(acc, axis=0)
        tmean = tsum * (1.0 / cnt)
        tm2 = jnp.sum((acc - tmean[None, :]) ** 2, axis=0)
        ts_ref[0, 0] = tsum[None, :]
        tm2_ref[0, 0] = tm2[None, :]

    return kernel


def conv3x3_bn_stats(x, w_hwio, b, in_scale=None, in_shift=None,
                     compute_dtype=jnp.bfloat16, out_dtype=jnp.float32,
                     row_tile=None):
    """3x3 SAME conv (optionally fused input BN+ReLU) + per-tile BN partial stats."""
    N, H, W, Cin = x.shape
    Cout = w_hwio.shape[-1]

    isz_in = jnp.dtype(x.dtype).itemsize
    isz_cd = jnp.dtype(compute_dtype).itemsize
    isz_out = jnp.dtype(out_dtype).itemsize

    cap = _vmem_capacity_bytes()
    n_buf = 3 if _is_v5e() else 2           # deeper pipeline on the lowest-BW part
    budget = int(0.5 * cap)

    # Generation-aware row tile: shrink while the per-step footprint overflows the budget.
    TR = row_tile or _pick_row_tile(H)
    while (TR >= 16 and TR % 16 == 0 and H % (TR // 2) == 0 and
           _conv_vmem_estimate(TR, W, Cin, Cout, isz_in, isz_cd, isz_out, n_buf)
           > budget):
        TR //= 2
    assert H % TR == 0, (H, TR)
    RT = H // TR
    if RT > 1:
        assert TR % 8 == 0, "row-tiled path requires H to be a multiple of 8"

    est = _conv_vmem_estimate(TR, W, Cin, Cout, isz_in, isz_cd, isz_out, n_buf)
    vmem_limit = int(min(max(2 * est, 16 * 1024 * 1024), int(0.6 * cap)))

    w9 = w_hwio.reshape(9, Cin, Cout).astype(compute_dtype)
    b2 = b.reshape(1, Cout).astype(jnp.float32)
    apply_bn = in_scale is not None
    sc = (in_scale if apply_bn else jnp.ones((Cin,), jnp.float32))
    sh = (in_shift if apply_bn else jnp.zeros((Cin,), jnp.float32))
    sc = sc.reshape(1, Cin).astype(jnp.float32)
    sh = sh.reshape(1, Cin).astype(jnp.float32)

    kernel = _make_conv_kernel(TR, W, apply_bn, compute_dtype)

    # 1-row halo blocks (clamped row indices; kernel masks the image boundary).
    top_idx = lambda n, r: (n, jnp.maximum(r * TR - 1, 0), 0, 0)
    bot_idx = lambda n, r: (n, jnp.minimum((r + 1) * TR, H - 1), 0, 0)

    y, tsum, tm2 = pl.pallas_call(
        kernel,
        out_shape=(
            jax.ShapeDtypeStruct((N, H, W, Cout), out_dtype),
            jax.ShapeDtypeStruct((N, RT, 1, Cout), jnp.float32),
            jax.ShapeDtypeStruct((N, RT, 1, Cout), jnp.float32),
        ),
        grid=(N, RT),
        in_specs=[
            _block_spec((1, TR, W, Cin), lambda n, r: (n, r, 0, 0), n_buf),  # main rows
            pl.BlockSpec((1, 1, W, Cin), top_idx),                           # 1-row top halo
            pl.BlockSpec((1, 1, W, Cin), bot_idx),                           # 1-row bottom halo
            pl.BlockSpec((9, Cin, Cout), lambda n, r: (0, 0, 0)),            # weights (resident)
            pl.BlockSpec((1, Cout), lambda n, r: (0, 0)),                    # bias
            pl.BlockSpec((1, Cin), lambda n, r: (0, 0)),                     # fused BN scale
            pl.BlockSpec((1, Cin), lambda n, r: (0, 0)),                     # fused BN shift
        ],
        out_specs=(
            _block_spec((1, TR, W, Cout), lambda n, r: (n, r, 0, 0), n_buf),
            pl.BlockSpec((1, 1, 1, Cout), lambda n, r: (n, r, 0, 0)),
            pl.BlockSpec((1, 1, 1, Cout), lambda n, r: (n, r, 0, 0)),
        ),
        compiler_params=pltpu.CompilerParams(
            dimension_semantics=("parallel", "parallel"),
            vmem_limit_bytes=vmem_limit),
    )(x, x, x, w9, b2, sc, sh)
    return y, tsum, tm2


# ----------------------------------------------------------------------------
# Kernel 2: lane-dense fused affine BN + ReLU on a flattened (N*H, W*C) view.
# (Only needed for the *last* layer; layer-1's BN+ReLU is fused into conv2.)
# ----------------------------------------------------------------------------
def _bn_relu_kernel(x_ref, sc_ref, sh_ref, o_ref):
    o_ref[...] = jnp.maximum(
        x_ref[...].astype(jnp.float32) * sc_ref[...] + sh_ref[...], 0.0)


def bn_relu_lane_dense(y_nhwc, scale, shift):
    N, H, W, C = y_nhwc.shape
    R, L = N * H, W * C
    x2 = y_nhwc.reshape(R, L)
    sc = jnp.tile(scale.astype(jnp.float32), W).reshape(1, L)
    sh = jnp.tile(shift.astype(jnp.float32), W).reshape(1, L)

    cap = _vmem_capacity_bytes()
    TB = _pick_flat_tile(R, L, 4, int(0.25 * cap))
    block_bytes = 2 * 2 * TB * L * 4
    vmem_limit = int(min(max(2 * block_bytes, 8 * 1024 * 1024), int(0.6 * cap)))

    out = pl.pallas_call(
        _bn_relu_kernel,
        out_shape=jax.ShapeDtypeStruct((R, L), jnp.float32),
        grid=(R // TB,),
        in_specs=[
            pl.BlockSpec((TB, L), lambda i: (i, 0)),
            pl.BlockSpec((1, L), lambda i: (0, 0)),
            pl.BlockSpec((1, L), lambda i: (0, 0)),
        ],
        out_specs=pl.BlockSpec((TB, L), lambda i: (i, 0)),
        compiler_params=pltpu.CompilerParams(
            dimension_semantics=("parallel",),
            vmem_limit_bytes=vmem_limit),
    )(x2, sc, sh)
    return out.reshape(N, H, W, C)


# ----------------------------------------------------------------------------
# BatchNorm stat combination (Chan's parallel formula) -> folded scale / shift.
# ----------------------------------------------------------------------------
def _bn_affine(tsum, tm2, count_per_tile, total_count, gamma, beta):
    C = tsum.shape[-1]
    s = tsum.reshape(-1, C)
    m2 = tm2.reshape(-1, C)
    mean = jnp.sum(s, axis=0) / total_count
    tmean = s / count_per_tile
    m2_tot = jnp.sum(m2, axis=0) + count_per_tile * jnp.sum((tmean - mean) ** 2, axis=0)
    var = m2_tot / total_count                      # biased variance (PyTorch BN fwd)
    scale = gamma * jax.lax.rsqrt(var + EPS)
    shift = beta - mean * scale
    return scale, shift


# ----------------------------------------------------------------------------
# Public forward: NCHW in / NCHW out (matches the PyTorch module).
# ----------------------------------------------------------------------------
def upsample_block(x_nchw, params, compute_dtype=jnp.bfloat16):
    N, _, H, W = x_nchw.shape
    x = jnp.transpose(x_nchw, (0, 2, 3, 1)).astype(jnp.float32)   # NCHW -> NHWC

    # conv1: raw conv output stored in the compute dtype (bf16 on the fast path,
    # halving the biggest intermediate HBM round trip) + per-tile BN partials.
    y1, s1, m21 = conv3x3_bn_stats(x, params["w1"], params["b1"],
                                   compute_dtype=compute_dtype,
                                   out_dtype=compute_dtype)
    scale1, shift1 = _bn_affine(s1, m21, (H // s1.shape[1]) * W, N * H * W,
                                params["g1"], params["be1"])

    # conv2 with BN1 + ReLU fused into its input read (no standalone BN pass).
    y2, s2, m22 = conv3x3_bn_stats(y1, params["w2"], params["b2"],
                                   in_scale=scale1, in_shift=shift1,
                                   compute_dtype=compute_dtype,
                                   out_dtype=jnp.float32)
    scale2, shift2 = _bn_affine(s2, m22, (H // s2.shape[1]) * W, N * H * W,
                                params["g2"], params["be2"])

    out = bn_relu_lane_dense(y2, scale2, shift2)
    # TODO(synk): the final NHWC->NCHW transpose could be folded into the BN2 kernel
    # (saves one HBM round trip) but needs an in-kernel 3-D transpose; kept in XLA.
    return jnp.transpose(out, (0, 3, 1, 2))                        # NHWC -> NCHW


# ----------------------------------------------------------------------------
# Pure-JAX reference (same NHWC math) for correctness checking.
# ----------------------------------------------------------------------------
def ref_upsample_block(x_nchw, params, compute_dtype=jnp.float32,
                       y1_storage_dtype=None):
    x = jnp.transpose(x_nchw, (0, 2, 3, 1)).astype(jnp.float32)

    def conv(x, w, b):
        y = jax.lax.conv_general_dilated(
            x.astype(compute_dtype), w.astype(compute_dtype),
            window_strides=(1, 1), padding="SAME",
            dimension_numbers=("NHWC", "HWIO", "NHWC"),
            preferred_element_type=jnp.float32)
        return y + b

    def bn_relu(x, g, be):
        mean = x.mean(axis=(0, 1, 2))
        var = x.var(axis=(0, 1, 2))
        return jax.nn.relu((x - mean) * jax.lax.rsqrt(var + EPS) * g + be)

    y = conv(x, params["w1"], params["b1"])
    if y1_storage_dtype is not None:              # mimic the kernel's y1 storage precision
        y = y.astype(y1_storage_dtype).astype(jnp.float32)
    y = bn_relu(y, params["g1"], params["be1"])
    y = bn_relu(conv(y, params["w2"], params["b2"]), params["g2"], params["be2"])
    return jnp.transpose(y, (0, 3, 1, 2))


if __name__ == "__main__":
    N, Cin, Cout, H, W = 2, 4, 8, 16, 16

    key = jax.random.PRNGKey(0)
    ks = jax.random.split(key, 9)
    params = {
        "w1": 0.1 * jax.random.normal(ks[0], (3, 3, Cin, Cout), jnp.float32),
        "b1": 0.1 * jax.random.normal(ks[1], (Cout,), jnp.float32),
        "g1": 1.0 + 0.1 * jax.random.normal(ks[2], (Cout,), jnp.float32),
        "be1": 0.1 * jax.random.normal(ks[3], (Cout,), jnp.float32),
        "w2": 0.1 * jax.random.normal(ks[4], (3, 3, Cout, Cout), jnp.float32),
        "b2": 0.1 * jax.random.normal(ks[5], (Cout,), jnp.float32),
        "g2": 1.0 + 0.1 * jax.random.normal(ks[6], (Cout,), jnp.float32),
        "be2": 0.1 * jax.random.normal(ks[7], (Cout,), jnp.float32),
    }
    x = jax.random.normal(ks[8], (N, Cin, H, W), jnp.float32)   # NCHW, like PyTorch

    # 1) strict check: f32 MXU operands / f32 intermediates vs. pure-f32 reference.
    fwd_f32 = jax.jit(functools.partial(upsample_block, compute_dtype=jnp.float32))
    out_f32 = jax.block_until_ready(fwd_f32(x, params))
    ref_f32 = jax.block_until_ready(ref_upsample_block(x, params, jnp.float32))
    assert out_f32.shape == (N, Cout, H, W), out_f32.shape
    err_f32 = float(jnp.max(jnp.abs(out_f32 - ref_f32)))
    assert err_f32 < 1e-4, err_f32

    # 2) default fast path: bf16 MXU operands + bf16 y1 storage, checked against a
    #    reference using the same matmul / intermediate-storage precision.
    fwd_bf16 = jax.jit(functools.partial(upsample_block, compute_dtype=jnp.bfloat16))
    out_bf16 = jax.block_until_ready(fwd_bf16(x, params))
    ref_bf16 = jax.block_until_ready(
        ref_upsample_block(x, params, jnp.bfloat16, y1_storage_dtype=jnp.bfloat16))
    err_bf16 = float(jnp.max(jnp.abs(out_bf16 - ref_bf16)))
    assert err_bf16 < 2e-2, err_bf16

    print("KERNEL_OK")
</pallas_src>

<mosaic_0001>
module attributes {stable_mosaic.version = 11 : i64} {
  func.func @kernel(%arg0: i32, %arg1: i32, %arg2: memref<1x8x16x4xf32, #tpu.memory_space<vmem>>, %arg3: memref<1x1x16x4xf32, #tpu.memory_space<vmem>>, %arg4: memref<1x1x16x4xf32, #tpu.memory_space<vmem>>, %arg5: memref<9x4x8xf32, #tpu.memory_space<vmem>>, %arg6: memref<1x8xf32, #tpu.memory_space<vmem>>, %arg7: memref<1x4xf32, #tpu.memory_space<vmem>>, %arg8: memref<1x4xf32, #tpu.memory_space<vmem>>, %arg9: memref<1x8x16x8xf32, #tpu.memory_space<vmem>>, %arg10: memref<1x1x1x8xf32, #tpu.memory_space<vmem>>, %arg11: memref<1x1x1x8xf32, #tpu.memory_space<vmem>>) attributes {dimension_semantics = [#tpu.dimension_semantics<parallel>, #tpu.dimension_semantics<parallel>], iteration_bounds = array<i64: 2, 2>, scalar_prefetch = 0 : i64, scratch_operands = 0 : i64, tpu.core_type = #tpu.core_type<tc>, window_params = [{transform_indices = @transform_0, window_bounds = array<i64: 1, 8, 16, 4>}, {transform_indices = @transform_1, window_bounds = array<i64: 1, 1, 16, 4>}, {transform_indices = @transform_2, window_bounds = array<i64: 1, 1, 16, 4>}, {pipeline_mode = #tpu.pipeline_mode<synchronous>, transform_indices = @transform_3, window_bounds = array<i64: 9, 4, 8>}, {pipeline_mode = #tpu.pipeline_mode<synchronous>, transform_indices = @transform_4, window_bounds = array<i64: 1, 8>}, {pipeline_mode = #tpu.pipeline_mode<synchronous>, transform_indices = @transform_5, window_bounds = array<i64: 1, 4>}, {pipeline_mode = #tpu.pipeline_mode<synchronous>, transform_indices = @transform_6, window_bounds = array<i64: 1, 4>}, {transform_indices = @transform_7, window_bounds = array<i64: 1, 8, 16, 8>}, {transform_indices = @transform_8, window_bounds = array<i64: 1, 1, 1, 8>}, {transform_indices = @transform_9, window_bounds = array<i64: 1, 1, 1, 8>}]} {
    %c0 = arith.constant 0 : index
    %c0_0 = arith.constant 0 : index
    %c0_1 = arith.constant 0 : index
    %c0_2 = arith.constant 0 : index
    %0 = vector.load %arg2[%c0, %c0_0, %c0_1, %c0_2] : memref<1x8x16x4xf32, #tpu.memory_space<vmem>>, vector<1x8x16x4xf32>
    %1 = vector.shape_cast %0 : vector<1x8x16x4xf32> to vector<8x16x4xf32>
    %c0_3 = arith.constant 0 : index
    %c0_4 = arith.constant 0 : index
    %c0_5 = arith.constant 0 : index
    %c0_6 = arith.constant 0 : index
    %2 = vector.load %arg3[%c0_3, %c0_4, %c0_5, %c0_6] : memref<1x1x16x4xf32, #tpu.memory_space<vmem>>, vector<1x1x16x4xf32>
    %3 = vector.shape_cast %2 : vector<1x1x16x4xf32> to vector<16x4xf32>
    %c0_7 = arith.constant 0 : index
    %c0_8 = arith.constant 0 : index
    %c0_9 = arith.constant 0 : index
    %c0_10 = arith.constant 0 : index
    %4 = vector.load %arg4[%c0_7, %c0_8, %c0_9, %c0_10] : memref<1x1x16x4xf32, #tpu.memory_space<vmem>>, vector<1x1x16x4xf32>
    %5 = vector.shape_cast %4 : vector<1x1x16x4xf32> to vector<16x4xf32>
    %c0_i32 = arith.constant 0 : i32
    %6 = arith.cmpi sgt, %arg1, %c0_i32 : i32
    %7 = arith.extui %6 : i1 to i32
    %8 = arith.sitofp %7 : i32 to f32
    %9 = vector.broadcast %8 : f32 to vector<16x4xf32>
    %10 = arith.mulf %3, %9 : vector<16x4xf32>
    %c1_i32 = arith.constant 1 : i32
    %11 = arith.cmpi slt, %arg1, %c1_i32 : i32
    %12 = arith.extui %11 : i1 to i32
    %13 = arith.sitofp %12 : i32 to f32
    %14 = vector.broadcast %13 : f32 to vector<16x4xf32>
    %15 = arith.mulf %5, %14 : vector<16x4xf32>
    %16 = vector.shape_cast %10 : vector<16x4xf32> to vector<1x16x4xf32>
    %17 = vector.shape_cast %15 : vector<16x4xf32> to vector<1x16x4xf32>
    %18 = tpu.concatenate %16, %1, %17 in 0 : vector<1x16x4xf32>, vector<8x16x4xf32>, vector<1x16x4xf32> -> vector<10x16x4xf32>
    %cst = arith.constant 0.000000e+00 : f32
    %19 = vector.broadcast %cst : f32 to vector<10x1x4xf32>
    %20 = tpu.concatenate %19, %18, %19 in 1 : vector<10x1x4xf32>, vector<10x16x4xf32>, vector<10x1x4xf32> -> vector<10x18x4xf32>
    %cst_11 = arith.constant 0.000000e+00 : f32
    %21 = vector.broadcast %cst_11 : f32 to vector<128x8xf32>
    %22 = vector.extract_strided_slice %20 {offsets = [0, 0, 0], sizes = [8, 16, 4], strides = [1, 1, 1]} : vector<10x18x4xf32> to vector<8x16x4xf32>
    %23 = vector.shape_cast %22 : vector<8x16x4xf32> to vector<128x4xf32>
    %c0_12 = arith.constant 0 : index
    %c0_13 = arith.constant 0 : index
    %c0_14 = arith.constant 0 : index
    %24 = vector.load %arg5[%c0_12, %c0_13, %c0_14] : memref<9x4x8xf32, #tpu.memory_space<vmem>>, vector<1x4x8xf32>
    %25 = vector.shape_cast %24 : vector<1x4x8xf32> to vector<4x8xf32>
    %cst_15 = arith.constant dense<0.000000e+00> : vector<128x8xf32>
    %26 = tpu.matmul %23, %25, %cst_15 {dimension_numbers = #tpu.dot_dimension_numbers<[1], [0], [0], [1], [0, 0, 1, 1], [], []>} : vector<128x4xf32>, vector<4x8xf32>, vector<128x8xf32> -> vector<128x8xf32>
    %27 = arith.addf %21, %26 : vector<128x8xf32>
    %28 = vector.extract_strided_slice %20 {offsets = [0, 1, 0], sizes = [8, 16, 4], strides = [1, 1, 1]} : vector<10x18x4xf32> to vector<8x16x4xf32>
    %29 = vector.shape_cast %28 : vector<8x16x4xf32> to vector<128x4xf32>
    %c1 = arith.constant 1 : index
    %c0_16 = arith.constant 0 : index
    %c0_17 = arith.constant 0 : index
    %30 = vector.load %arg5[%c1, %c0_16, %c0_17] : memref<9x4x8xf32, #tpu.memory_space<vmem>>, vector<1x4x8xf32>
    %31 = vector.shape_cast %30 : vector<1x4x8xf32> to vector<4x8xf32>
    %cst_18 = arith.constant dense<0.000000e+00> : vector<128x8xf32>
    %32 = tpu.matmul %29, %31, %cst_18 {dimension_numbers = #tpu.dot_dimension_numbers<[1], [0], [0], [1], [0, 0, 1, 1], [], []>} : vector<128x4xf32>, vector<4x8xf32>, vector<128x8xf32> -> vector<128x8xf32>
    %33 = arith.addf %27, %32 : vector<128x8xf32>
    %34 = vector.extract_strided_slice %20 {offsets = [0, 2, 0], sizes = [8, 16, 4], strides = [1, 1, 1]} : vector<10x18x4xf32> to vector<8x16x4xf32>
    %35 = vector.shape_cast %34 : vector<8x16x4xf32> to vector<128x4xf32>
    %c2 = arith.constant 2 : index
    %c0_19 = arith.constant 0 : index
    %c0_20 = arith.constant 0 : index
    %36 = vector.load %arg5[%c2, %c0_19, %c0_20] : memref<9x4x8xf32, #tpu.memory_space<vmem>>, vector<1x4x8xf32>
    %37 = vector.shape_cast %36 : vector<1x4x8xf32> to vector<4x8xf32>
    %cst_21 = arith.constant dense<0.000000e+00> : vector<128x8xf32>
    %38 = tpu.matmul %35, %37, %cst_21 {dimension_numbers = #tpu.dot_dimension_numbers<[1], [0], [0], [1], [0, 0, 1, 1], [], []>} : vector<128x4xf32>, vector<4x8xf32>, vector<128x8xf32> -> vector<128x8xf32>
    %39 = arith.addf %33, %38 : vector<128x8xf32>
    %40 = vector.extract_strided_slice %20 {offsets = [1, 0, 0], sizes = [8, 16, 4], strides = [1, 1, 1]} : vector<10x18x4xf32> to vector<8x16x4xf32>
    %41 = vector.shape_cast %40 : vector<8x16x4xf32> to vector<128x4xf32>
    %c3 = arith.constant 3 : index
    %c0_22 = arith.constant 0 : index
    %c0_23 = arith.constant 0 : index
    %42 = vector.load %arg5[%c3, %c0_22, %c0_23] : memref<9x4x8xf32, #tpu.memory_space<vmem>>, vector<1x4x8xf32>
    %43 = vector.shape_cast %42 : vector<1x4x8xf32> to vector<4x8xf32>
    %cst_24 = arith.constant dense<0.000000e+00> : vector<128x8xf32>
    %44 = tpu.matmul %41, %43, %cst_24 {dimension_numbers = #tpu.dot_dimension_numbers<[1], [0], [0], [1], [0, 0, 1, 1], [], []>} : vector<128x4xf32>, vector<4x8xf32>, vector<128x8xf32> -> vector<128x8xf32>
    %45 = arith.addf %39, %44 : vector<128x8xf32>
    %46 = vector.extract_strided_slice %20 {offsets = [1, 1, 0], sizes = [8, 16, 4], strides = [1, 1, 1]} : vector<10x18x4xf32> to vector<8x16x4xf32>
    %47 = vector.shape_cast %46 : vector<8x16x4xf32> to vector<128x4xf32>
    %c4 = arith.constant 4 : index
    %c0_25 = arith.constant 0 : index
    %c0_26 = arith.constant 0 : index
    %48 = vector.load %arg5[%c4, %c0_25, %c0_26] : memref<9x4x8xf32, #tpu.memory_space<vmem>>, vector<1x4x8xf32>
    %49 = vector.shape_cast %48 : vector<1x4x8xf32> to vector<4x8xf32>
    %cst_27 = arith.constant dense<0.000000e+00> : vector<128x8xf32>
    %50 = tpu.matmul %47, %49, %cst_27 {dimension_numbers = #tpu.dot_dimension_numbers<[1], [0], [0], [1], [0, 0, 1, 1], [], []>} : vector<128x4xf32>, vector<4x8xf32>, vector<128x8xf32> -> vector<128x8xf32>
    %51 = arith.addf %45, %50 : vector<128x8xf32>
    %52 = vector.extract_strided_slice %20 {offsets = [1, 2, 0], sizes = [8, 16, 4], strides = [1, 1, 1]} : vector<10x18x4xf32> to vector<8x16x4xf32>
    %53 = vector.shape_cast %52 : vector<8x16x4xf32> to vector<128x4xf32>
    %c5 = arith.constant 5 : index
    %c0_28 = arith.constant 0 : index
    %c0_29 = arith.constant 0 : index
    %54 = vector.load %arg5[%c5, %c0_28, %c0_29] : memref<9x4x8xf32, #tpu.memory_space<vmem>>, vector<1x4x8xf32>
    %55 = vector.shape_cast %54 : vector<1x4x8xf32> to vector<4x8xf32>
    %cst_30 = arith.constant dense<0.000000e+00> : vector<128x8xf32>
    %56 = tpu.matmul %53, %55, %cst_30 {dimension_numbers = #tpu.dot_dimension_numbers<[1], [0], [0], [1], [0, 0, 1, 1], [], []>} : vector<128x4xf32>, vector<4x8xf32>, vector<128x8xf32> -> vector<128x8xf32>
    %57 = arith.addf %51, %56 : vector<128x8xf32>
    %58 = vector.extract_strided_slice %20 {offsets = [2, 0, 0], sizes = [8, 16, 4], strides = [1, 1, 1]} : vector<10x18x4xf32> to vector<8x16x4xf32>
    %59 = vector.shape_cast %58 : vector<8x16x4xf32> to vector<128x4xf32>
    %c6 = arith.constant 6 : index
    %c0_31 = arith.constant 0 : index
    %c0_32 = arith.constant 0 : index
    %60 = vector.load %arg5[%c6, %c0_31, %c0_32] : memref<9x4x8xf32, #tpu.memory_space<vmem>>, vector<1x4x8xf32>
    %61 = vector.shape_cast %60 : vector<1x4x8xf32> to vector<4x8xf32>
    %cst_33 = arith.constant dense<0.000000e+00> : vector<128x8xf32>
    %62 = tpu.matmul %59, %61, %cst_33 {dimension_numbers = #tpu.dot_dimension_numbers<[1], [0], [0], [1], [0, 0, 1, 1], [], []>} : vector<128x4xf32>, vector<4x8xf32>, vector<128x8xf32> -> vector<128x8xf32>
    %63 = arith.addf %57, %62 : vector<128x8xf32>
    %64 = vector.extract_strided_slice %20 {offsets = [2, 1, 0], sizes = [8, 16, 4], strides = [1, 1, 1]} : vector<10x18x4xf32> to vector<8x16x4xf32>
    %65 = vector.shape_cast %64 : vector<8x16x4xf32> to vector<128x4xf32>
    %c7 = arith.constant 7 : index
    %c0_34 = arith.constant 0 : index
    %c0_35 = arith.constant 0 : index
    %66 = vector.load %arg5[%c7, %c0_34, %c0_35] : memref<9x4x8xf32, #tpu.memory_space<vmem>>, vector<1x4x8xf32>
    %67 = vector.shape_cast %66 : vector<1x4x8xf32> to vector<4x8xf32>
    %cst_36 = arith.constant dense<0.000000e+00> : vector<128x8xf32>
    %68 = tpu.matmul %65, %67, %cst_36 {dimension_numbers = #tpu.dot_dimension_numbers<[1], [0], [0], [1], [0, 0, 1, 1], [], []>} : vector<128x4xf32>, vector<4x8xf32>, vector<128x8xf32> -> vector<128x8xf32>
    %69 = arith.addf %63, %68 : vector<128x8xf32>
    %70 = vector.extract_strided_slice %20 {offsets = [2, 2, 0], sizes = [8, 16, 4], strides = [1, 1, 1]} : vector<10x18x4xf32> to vector<8x16x4xf32>
    %71 = vector.shape_cast %70 : vector<8x16x4xf32> to vector<128x4xf32>
    %c8 = arith.constant 8 : index
    %c0_37 = arith.constant 0 : index
    %c0_38 = arith.constant 0 : index
    %72 = vector.load %arg5[%c8, %c0_37, %c0_38] : memref<9x4x8xf32, #tpu.memory_space<vmem>>, vector<1x4x8xf32>
    %73 = vector.shape_cast %72 : vector<1x4x8xf32> to vector<4x8xf32>
    %cst_39 = arith.constant dense<0.000000e+00> : vector<128x8xf32>
    %74 = tpu.matmul %71, %73, %cst_39 {dimension_numbers = #tpu.dot_dimension_numbers<[1], [0], [0], [1], [0, 0, 1, 1], [], []>} : vector<128x4xf32>, vector<4x8xf32>, vector<128x8xf32> -> vector<128x8xf32>
    %75 = arith.addf %69, %74 : vector<128x8xf32>
    %c0_40 = arith.constant 0 : index
    %c0_41 = arith.constant 0 : index
    %76 = vector.load %arg6[%c0_40, %c0_41] : memref<1x8xf32, #tpu.memory_space<vmem>>, vector<1x8xf32>
    %77 = vector.broadcast %76 : vector<1x8xf32> to vector<128x8xf32>
    %78 = arith.addf %75, %77 : vector<128x8xf32>
    %79 = vector.shape_cast %78 : vector<128x8xf32> to vector<8x16x8xf32>
    %c0_42 = arith.constant 0 : index
    %c0_43 = arith.constant 0 : index
    %c0_44 = arith.constant 0 : index
    %c0_45 = arith.constant 0 : index
    %80 = vector.load %arg9[%c0_42, %c0_43, %c0_44, %c0_45] : memref<1x8x16x8xf32, #tpu.memory_space<vmem>>, vector<1x8x16x8xf32>
    %81 = vector.shape_cast %80 : vector<1x8x16x8xf32> to vector<8x16x8xf32>
    %82 = vector.shape_cast %79 : vector<8x16x8xf32> to vector<1x8x16x8xf32>
    tpu.vector_store %arg9[%c0_42, %c0_43, %c0_44, %c0_45], %82 {strides = array<i32>} : memref<1x8x16x8xf32, #tpu.memory_space<vmem>>, vector<1x8x16x8xf32>,
    %cst_46 = arith.constant dense<0.000000e+00> : vector<8xf32>
    %83 = vector.multi_reduction <add>, %78, %cst_46 [0] : vector<128x8xf32> to vector<8xf32>
    %cst_47 = arith.constant 7.812500e-03 : f32
    %84 = vector.broadcast %cst_47 : f32 to vector<8xf32>
    %85 = arith.mulf %83, %84 : vector<8xf32>
    %86 = vector.shape_cast %85 : vector<8xf32> to vector<1x8xf32>
    %87 = vector.broadcast %86 : vector<1x8xf32> to vector<128x8xf32>
    %88 = arith.subf %78, %87 : vector<128x8xf32>
    %89 = arith.mulf %88, %88 : vector<128x8xf32>
    %cst_48 = arith.constant dense<0.000000e+00> : vector<8xf32>
    %90 = vector.multi_reduction <add>, %89, %cst_48 [0] : vector<128x8xf32> to vector<8xf32>
    %91 = vector.shape_cast %83 : vector<8xf32> to vector<1x8xf32>
    %c0_49 = arith.constant 0 : index
    %c0_50 = arith.constant 0 : index
    %c0_51 = arith.constant 0 : index
    %c0_52 = arith.constant 0 : index
    %92 = vector.load %arg10[%c0_49, %c0_50, %c0_51, %c0_52] : memref<1x1x1x8xf32, #tpu.memory_space<vmem>>, vector<1x1x1x8xf32>
    %93 = vector.shape_cast %92 : vector<1x1x1x8xf32> to vector<1x8xf32>
    %94 = vector.shape_cast %91 : vector<1x8xf32> to vector<1x1x1x8xf32>
    tpu.vector_store %arg10[%c0_49, %c0_50, %c0_51, %c0_52], %94 {strides = array<i32>} : memref<1x1x1x8xf32, #tpu.memory_space<vmem>>, vector<1x1x1x8xf32>,
    %95 = vector.shape_cast %90 : vector<8xf32> to vector<1x8xf32>
    %c0_53 = arith.constant 0 : index
    %c0_54 = arith.constant 0 : index
    %c0_55 = arith.constant 0 : index
    %c0_56 = arith.constant 0 : index
    %96 = vector.load %arg11[%c0_53, %c0_54, %c0_55, %c0_56] : memref<1x1x1x8xf32, #tpu.memory_space<vmem>>, vector<1x1x1x8xf32>
    %97 = vector.shape_cast %96 : vector<1x1x1x8xf32> to vector<1x8xf32>
    %98 = vector.shape_cast %95 : vector<1x8xf32> to vector<1x1x1x8xf32>
    tpu.vector_store %arg11[%c0_53, %c0_54, %c0_55, %c0_56], %98 {strides = array<i32>} : memref<1x1x1x8xf32, #tpu.memory_space<vmem>>, vector<1x1x1x8xf32>,
    return
  }
  func.func @transform_0(%arg0: i32, %arg1: i32) -> (i32, i32, i32, i32) {
    %c0_i32 = arith.constant 0 : i32
    %c0_i32_0 = arith.constant 0 : i32
    %c0_i32_1 = arith.constant 0 : i32
    return %arg0, %arg1, %c0_i32, %c0_i32_0 : i32, i32, i32, i32
  }
  func.func @transform_1(%arg0: i32, %arg1: i32) -> (i32, i32, i32, i32) {
    %c8_i32 = arith.constant 8 : i32
    %0 = arith.muli %arg1, %c8_i32 : i32
    %c1_i32 = arith.constant 1 : i32
    %1 = arith.subi %0, %c1_i32 : i32
    %c0_i32 = arith.constant 0 : i32
    %2 = arith.maxsi %1, %c0_i32 : i32
    %c0_i32_0 = arith.constant 0 : i32
    %c0_i32_1 = arith.constant 0 : i32
    %c0_i32_2 = arith.constant 0 : i32
    return %arg0, %2, %c0_i32_0, %c0_i32_1 : i32, i32, i32, i32
  }
  func.func @transform_2(%arg0: i32, %arg1: i32) -> (i32, i32, i32, i32) {
    %c1_i32 = arith.constant 1 : i32
    %0 = arith.addi %arg1, %c1_i32 : i32
    %c8_i32 = arith.constant 8 : i32
    %1 = arith.muli %0, %c8_i32 : i32
    %c15_i32 = arith.constant 15 : i32
    %2 = arith.minsi %1, %c15_i32 : i32
    %c0_i32 = arith.constant 0 : i32
    %c0_i32_0 = arith.constant 0 : i32
    %c0_i32_1 = arith.constant 0 : i32
    return %arg0, %2, %c0_i32, %c0_i32_0 : i32, i32, i32, i32
  }
  func.func @transform_3(%arg0: i32, %arg1: i32) -> (i32, i32, i32) {
    %c0_i32 = arith.constant 0 : i32
    %c0_i32_0 = arith.constant 0 : i32
    %c0_i32_1 = arith.constant 0 : i32
    %c0_i32_2 = arith.constant 0 : i32
    return %c0_i32, %c0_i32_0, %c0_i32_1 : i32, i32, i32
  }
  func.func @transform_4(%arg0: i32, %arg1: i32) -> (i32, i32) {
    %c0_i32 = arith.constant 0 : i32
    %c0_i32_0 = arith.constant 0 : i32
    %c0_i32_1 = arith.constant 0 : i32
    return %c0_i32, %c0_i32_0 : i32, i32
  }
  func.func @transform_5(%arg0: i32, %arg1: i32) -> (i32, i32) {
    %c0_i32 = arith.constant 0 : i32
    %c0_i32_0 = arith.constant 0 : i32
    %c0_i32_1 = arith.constant 0 : i32
    return %c0_i32, %c0_i32_0 : i32, i32
  }
  func.func @transform_6(%arg0: i32, %arg1: i32) -> (i32, i32) {
    %c0_i32 = arith.constant 0 : i32
    %c0_i32_0 = arith.constant 0 : i32
    %c0_i32_1 = arith.constant 0 : i32
    return %c0_i32, %c0_i32_0 : i32, i32
  }
  func.func @transform_7(%arg0: i32, %arg1: i32) -> (i32, i32, i32, i32) {
    %c0_i32 = arith.constant 0 : i32
    %c0_i32_0 = arith.constant 0 : i32
    %c0_i32_1 = arith.constant 0 : i32
    return %arg0, %arg1, %c0_i32, %c0_i32_0 : i32, i32, i32, i32
  }
  func.func @transform_8(%arg0: i32, %arg1: i32) -> (i32, i32, i32, i32) {
    %c0_i32 = arith.constant 0 : i32
    %c0_i32_0 = arith.constant 0 : i32
    %c0_i32_1 = arith.constant 0 : i32
    return %arg0, %arg1, %c0_i32, %c0_i32_0 : i32, i32, i32, i32
  }
  func.func @transform_9(%arg0: i32, %arg1: i32) -> (i32, i32, i32, i32) {
    %c0_i32 = arith.constant 0 : i32
    %c0_i32_0 = arith.constant 0 : i32
    %c0_i32_1 = arith.constant 0 : i32
    return %arg0, %arg1, %c0_i32, %c0_i32_0 : i32, i32, i32, i32
  }
}

module attributes {stable_mosaic.version = 11 : i64} {
  func.func @kernel(%arg0: i32, %arg1: i32, %arg2: memref<1x8x16x8xf32, #tpu.memory_space<vmem>>, %arg3: memref<1x1x16x8xf32, #tpu.memory_space<vmem>>, %arg4: memref<1x1x16x8xf32, #tpu.memory_space<vmem>>, %arg5: memref<9x8x8xf32, #tpu.memory_space<vmem>>, %arg6: memref<1x8xf32, #tpu.memory_space<vmem>>, %arg7: memref<1x8xf32, #tpu.memory_space<vmem>>, %arg8: memref<1x8xf32, #tpu.memory_space<vmem>>, %arg9: memref<1x8x16x8xf32, #tpu.memory_space<vmem>>, %arg10: memref<1x1x1x8xf32, #tpu.memory_space<vmem>>, %arg11: memref<1x1x1x8xf32, #tpu.memory_space<vmem>>) attributes {dimension_semantics = [#tpu.dimension_semantics<parallel>, #tpu.dimension_semantics<parallel>], iteration_bounds = array<i64: 2, 2>, scalar_prefetch = 0 : i64, scratch_operands = 0 : i64, tpu.core_type = #tpu.core_type<tc>, window_params = [{transform_indices = @transform_0, window_bounds = array<i64: 1, 8, 16, 8>}, {transform_indices = @transform_1, window_bounds = array<i64: 1, 1, 16, 8>}, {transform_indices = @transform_2, window_bounds = array<i64: 1, 1, 16, 8>}, {pipeline_mode = #tpu.pipeline_mode<synchronous>, transform_indices = @transform_3, window_bounds = array<i64: 9, 8, 8>}, {pipeline_mode = #tpu.pipeline_mode<synchronous>, transform_indices = @transform_4, window_bounds = array<i64: 1, 8>}, {pipeline_mode = #tpu.pipeline_mode<synchronous>, transform_indices = @transform_5, window_bounds = array<i64: 1, 8>}, {pipeline_mode = #tpu.pipeline_mode<synchronous>, transform_indices = @transform_6, window_bounds = array<i64: 1, 8>}, {transform_indices = @transform_7, window_bounds = array<i64: 1, 8, 16, 8>}, {transform_indices = @transform_8, window_bounds = array<i64: 1, 1, 1, 8>}, {transform_indices = @transform_9, window_bounds = array<i64: 1, 1, 1, 8>}]} {
    %c0 = arith.constant 0 : index
    %c0_0 = arith.constant 0 : index
    %c0_1 = arith.constant 0 : index
    %c0_2 = arith.constant 0 : index
    %0 = vector.load %arg2[%c0, %c0_0, %c0_1, %c0_2] : memref<1x8x16x8xf32, #tpu.memory_space<vmem>>, vector<1x8x16x8xf32>
    %1 = vector.shape_cast %0 : vector<1x8x16x8xf32> to vector<8x16x8xf32>
    %c0_3 = arith.constant 0 : index
    %c0_4 = arith.constant 0 : index
    %c0_5 = arith.constant 0 : index
    %c0_6 = arith.constant 0 : index
    %2 = vector.load %arg3[%c0_3, %c0_4, %c0_5, %c0_6] : memref<1x1x16x8xf32, #tpu.memory_space<vmem>>, vector<1x1x16x8xf32>
    %3 = vector.shape_cast %2 : vector<1x1x16x8xf32> to vector<16x8xf32>
    %c0_7 = arith.constant 0 : index
    %c0_8 = arith.constant 0 : index
    %c0_9 = arith.constant 0 : index
    %c0_10 = arith.constant 0 : index
    %4 = vector.load %arg4[%c0_7, %c0_8, %c0_9, %c0_10] : memref<1x1x16x8xf32, #tpu.memory_space<vmem>>, vector<1x1x16x8xf32>
    %5 = vector.shape_cast %4 : vector<1x1x16x8xf32> to vector<16x8xf32>
    %c0_11 = arith.constant 0 : index
    %c0_12 = arith.constant 0 : index
    %6 = vector.load %arg7[%c0_11, %c0_12] : memref<1x8xf32, #tpu.memory_space<vmem>>, vector<1x8xf32>
    %c0_13 = arith.constant 0 : index
    %c0_14 = arith.constant 0 : index
    %7 = vector.load %arg8[%c0_13, %c0_14] : memref<1x8xf32, #tpu.memory_space<vmem>>, vector<1x8xf32>
    %8 = vector.shape_cast %6 : vector<1x8xf32> to vector<1x1x8xf32>
    %9 = vector.broadcast %8 : vector<1x1x8xf32> to vector<8x16x8xf32>
    %10 = arith.mulf %1, %9 : vector<8x16x8xf32>
    %11 = vector.shape_cast %7 : vector<1x8xf32> to vector<1x1x8xf32>
    %12 = vector.broadcast %11 : vector<1x1x8xf32> to vector<8x16x8xf32>
    %13 = arith.addf %10, %12 : vector<8x16x8xf32>
    %cst = arith.constant 0.000000e+00 : f32
    %14 = vector.broadcast %cst : f32 to vector<8x16x8xf32>
    %15 = arith.maximumf %13, %14 : vector<8x16x8xf32>
    %16 = vector.broadcast %6 : vector<1x8xf32> to vector<16x8xf32>
    %17 = arith.mulf %3, %16 : vector<16x8xf32>
    %18 = vector.broadcast %7 : vector<1x8xf32> to vector<16x8xf32>
    %19 = arith.addf %17, %18 : vector<16x8xf32>
    %cst_15 = arith.constant 0.000000e+00 : f32
    %20 = vector.broadcast %cst_15 : f32 to vector<16x8xf32>
    %21 = arith.maximumf %19, %20 : vector<16x8xf32>
    %22 = vector.broadcast %6 : vector<1x8xf32> to vector<16x8xf32>
    %23 = arith.mulf %5, %22 : vector<16x8xf32>
    %24 = vector.broadcast %7 : vector<1x8xf32> to vector<16x8xf32>
    %25 = arith.addf %23, %24 : vector<16x8xf32>
    %cst_16 = arith.constant 0.000000e+00 : f32
    %26 = vector.broadcast %cst_16 : f32 to vector<16x8xf32>
    %27 = arith.maximumf %25, %26 : vector<16x8xf32>
    %c0_i32 = arith.constant 0 : i32
    %28 = arith.cmpi sgt, %arg1, %c0_i32 : i32
    %29 = arith.extui %28 : i1 to i32
    %30 = arith.sitofp %29 : i32 to f32
    %31 = vector.broadcast %30 : f32 to vector<16x8xf32>
    %32 = arith.mulf %21, %31 : vector<16x8xf32>
    %c1_i32 = arith.constant 1 : i32
    %33 = arith.cmpi slt, %arg1, %c1_i32 : i32
    %34 = arith.extui %33 : i1 to i32
    %35 = arith.sitofp %34 : i32 to f32
    %36 = vector.broadcast %35 : f32 to vector<16x8xf32>
    %37 = arith.mulf %27, %36 : vector<16x8xf32>
    %38 = vector.shape_cast %32 : vector<16x8xf32> to vector<1x16x8xf32>
    %39 = vector.shape_cast %37 : vector<16x8xf32> to vector<1x16x8xf32>
    %40 = tpu.concatenate %38, %15, %39 in 0 : vector<1x16x8xf32>, vector<8x16x8xf32>, vector<1x16x8xf32> -> vector<10x16x8xf32>
    %cst_17 = arith.constant 0.000000e+00 : f32
    %41 = vector.broadcast %cst_17 : f32 to vector<10x1x8xf32>
    %42 = tpu.concatenate %41, %40, %41 in 1 : vector<10x1x8xf32>, vector<10x16x8xf32>, vector<10x1x8xf32> -> vector<10x18x8xf32>
    %cst_18 = arith.constant 0.000000e+00 : f32
    %43 = vector.broadcast %cst_18 : f32 to vector<128x8xf32>
    %44 = vector.extract_strided_slice %42 {offsets = [0, 0, 0], sizes = [8, 16, 8], strides = [1, 1, 1]} : vector<10x18x8xf32> to vector<8x16x8xf32>
    %45 = vector.shape_cast %44 : vector<8x16x8xf32> to vector<128x8xf32>
    %c0_19 = arith.constant 0 : index
    %c0_20 = arith.constant 0 : index
    %c0_21 = arith.constant 0 : index
    %46 = vector.load %arg5[%c0_19, %c0_20, %c0_21] : memref<9x8x8xf32, #tpu.memory_space<vmem>>, vector<1x8x8xf32>
    %47 = vector.shape_cast %46 : vector<1x8x8xf32> to vector<8x8xf32>
    %cst_22 = arith.constant dense<0.000000e+00> : vector<128x8xf32>
    %48 = tpu.matmul %45, %47, %cst_22 {dimension_numbers = #tpu.dot_dimension_numbers<[1], [0], [0], [1], [0, 0, 1, 1], [], []>} : vector<128x8xf32>, vector<8x8xf32>, vector<128x8xf32> -> vector<128x8xf32>
    %49 = arith.addf %43, %48 : vector<128x8xf32>
    %50 = vector.extract_strided_slice %42 {offsets = [0, 1, 0], sizes = [8, 16, 8], strides = [1, 1, 1]} : vector<10x18x8xf32> to vector<8x16x8xf32>
    %51 = vector.shape_cast %50 : vector<8x16x8xf32> to vector<128x8xf32>
    %c1 = arith.constant 1 : index
    %c0_23 = arith.constant 0 : index
    %c0_24 = arith.constant 0 : index
    %52 = vector.load %arg5[%c1, %c0_23, %c0_24] : memref<9x8x8xf32, #tpu.memory_space<vmem>>, vector<1x8x8xf32>
    %53 = vector.shape_cast %52 : vector<1x8x8xf32> to vector<8x8xf32>
    %cst_25 = arith.constant dense<0.000000e+00> : vector<128x8xf32>
    %54 = tpu.matmul %51, %53, %cst_25 {dimension_numbers = #tpu.dot_dimension_numbers<[1], [0], [0], [1], [0, 0, 1, 1], [], []>} : vector<128x8xf32>, vector<8x8xf32>, vector<128x8xf32> -> vector<128x8xf32>
    %55 = arith.addf %49, %54 : vector<128x8xf32>
    %56 = vector.extract_strided_slice %42 {offsets = [0, 2, 0], sizes = [8, 16, 8], strides = [1, 1, 1]} : vector<10x18x8xf32> to vector<8x16x8xf32>
    %57 = vector.shape_cast %56 : vector<8x16x8xf32> to vector<128x8xf32>
    %c2 = arith.constant 2 : index
    %c0_26 = arith.constant 0 : index
    %c0_27 = arith.constant 0 : index
    %58 = vector.load %arg5[%c2, %c0_26, %c0_27] : memref<9x8x8xf32, #tpu.memory_space<vmem>>, vector<1x8x8xf32>
    %59 = vector.shape_cast %58 : vector<1x8x8xf32> to vector<8x8xf32>
    %cst_28 = arith.constant dense<0.000000e+00> : vector<128x8xf32>
    %60 = tpu.matmul %57, %59, %cst_28 {dimension_numbers = #tpu.dot_dimension_numbers<[1], [0], [0], [1], [0, 0, 1, 1], [], []>} : vector<128x8xf32>, vector<8x8xf32>, vector<128x8xf32> -> vector<128x8xf32>
    %61 = arith.addf %55, %60 : vector<128x8xf32>
    %62 = vector.extract_strided_slice %42 {offsets = [1, 0, 0], sizes = [8, 16, 8], strides = [1, 1, 1]} : vector<10x18x8xf32> to vector<8x16x8xf32>
    %63 = vector.shape_cast %62 : vector<8x16x8xf32> to vector<128x8xf32>
    %c3 = arith.constant 3 : index
    %c0_29 = arith.constant 0 : index
    %c0_30 = arith.constant 0 : index
    %64 = vector.load %arg5[%c3, %c0_29, %c0_30] : memref<9x8x8xf32, #tpu.memory_space<vmem>>, vector<1x8x8xf32>
    %65 = vector.shape_cast %64 : vector<1x8x8xf32> to vector<8x8xf32>
    %cst_31 = arith.constant dense<0.000000e+00> : vector<128x8xf32>
    %66 = tpu.matmul %63, %65, %cst_31 {dimension_numbers = #tpu.dot_dimension_numbers<[1], [0], [0], [1], [0, 0, 1, 1], [], []>} : vector<128x8xf32>, vector<8x8xf32>, vector<128x8xf32> -> vector<128x8xf32>
    %67 = arith.addf %61, %66 : vector<128x8xf32>
    %68 = vector.extract_strided_slice %42 {offsets = [1, 1, 0], sizes = [8, 16, 8], strides = [1, 1, 1]} : vector<10x18x8xf32> to vector<8x16x8xf32>
    %69 = vector.shape_cast %68 : vector<8x16x8xf32> to vector<128x8xf32>
    %c4 = arith.constant 4 : index
    %c0_32 = arith.constant 0 : index
    %c0_33 = arith.constant 0 : index
    %70 = vector.load %arg5[%c4, %c0_32, %c0_33] : memref<9x8x8xf32, #tpu.memory_space<vmem>>, vector<1x8x8xf32>
    %71 = vector.shape_cast %70 : vector<1x8x8xf32> to vector<8x8xf32>
    %cst_34 = arith.constant dense<0.000000e+00> : vector<128x8xf32>
    %72 = tpu.matmul %69, %71, %cst_34 {dimension_numbers = #tpu.dot_dimension_numbers<[1], [0], [0], [1], [0, 0, 1, 1], [], []>} : vector<128x8xf32>, vector<8x8xf32>, vector<128x8xf32> -> vector<128x8xf32>
    %73 = arith.addf %67, %72 : vector<128x8xf32>
    %74 = vector.extract_strided_slice %42 {offsets = [1, 2, 0], sizes = [8, 16, 8], strides = [1, 1, 1]} : vector<10x18x8xf32> to vector<8x16x8xf32>
    %75 = vector.shape_cast %74 : vector<8x16x8xf32> to vector<128x8xf32>
    %c5 = arith.constant 5 : index
    %c0_35 = arith.constant 0 : index
    %c0_36 = arith.constant 0 : index
    %76 = vector.load %arg5[%c5, %c0_35, %c0_36] : memref<9x8x8xf32, #tpu.memory_space<vmem>>, vector<1x8x8xf32>
    %77 = vector.shape_cast %76 : vector<1x8x8xf32> to vector<8x8xf32>
    %cst_37 = arith.constant dense<0.000000e+00> : vector<128x8xf32>
    %78 = tpu.matmul %75, %77, %cst_37 {dimension_numbers = #tpu.dot_dimension_numbers<[1], [0], [0], [1], [0, 0, 1, 1], [], []>} : vector<128x8xf32>, vector<8x8xf32>, vector<128x8xf32> -> vector<128x8xf32>
    %79 = arith.addf %73, %78 : vector<128x8xf32>
    %80 = vector.extract_strided_slice %42 {offsets = [2, 0, 0], sizes = [8, 16, 8], strides = [1, 1, 1]} : vector<10x18x8xf32> to vector<8x16x8xf32>
    %81 = vector.shape_cast %80 : vector<8x16x8xf32> to vector<128x8xf32>
    %c6 = arith.constant 6 : index
    %c0_38 = arith.constant 0 : index
    %c0_39 = arith.constant 0 : index
    %82 = vector.load %arg5[%c6, %c0_38, %c0_39] : memref<9x8x8xf32, #tpu.memory_space<vmem>>, vector<1x8x8xf32>
    %83 = vector.shape_cast %82 : vector<1x8x8xf32> to vector<8x8xf32>
    %cst_40 = arith.constant dense<0.000000e+00> : vector<128x8xf32>
    %84 = tpu.matmul %81, %83, %cst_40 {dimension_numbers = #tpu.dot_dimension_numbers<[1], [0], [0], [1], [0, 0, 1, 1], [], []>} : vector<128x8xf32>, vector<8x8xf32>, vector<128x8xf32> -> vector<128x8xf32>
    %85 = arith.addf %79, %84 : vector<128x8xf32>
    %86 = vector.extract_strided_slice %42 {offsets = [2, 1, 0], sizes = [8, 16, 8], strides = [1, 1, 1]} : vector<10x18x8xf32> to vector<8x16x8xf32>
    %87 = vector.shape_cast %86 : vector<8x16x8xf32> to vector<128x8xf32>
    %c7 = arith.constant 7 : index
    %c0_41 = arith.constant 0 : index
    %c0_42 = arith.constant 0 : index
    %88 = vector.load %arg5[%c7, %c0_41, %c0_42] : memref<9x8x8xf32, #tpu.memory_space<vmem>>, vector<1x8x8xf32>
    %89 = vector.shape_cast %88 : vector<1x8x8xf32> to vector<8x8xf32>
    %cst_43 = arith.constant dense<0.000000e+00> : vector<128x8xf32>
    %90 = tpu.matmul %87, %89, %cst_43 {dimension_numbers = #tpu.dot_dimension_numbers<[1], [0], [0], [1], [0, 0, 1, 1], [], []>} : vector<128x8xf32>, vector<8x8xf32>, vector<128x8xf32> -> vector<128x8xf32>
    %91 = arith.addf %85, %90 : vector<128x8xf32>
    %92 = vector.extract_strided_slice %42 {offsets = [2, 2, 0], sizes = [8, 16, 8], strides = [1, 1, 1]} : vector<10x18x8xf32> to vector<8x16x8xf32>
    %93 = vector.shape_cast %92 : vector<8x16x8xf32> to vector<128x8xf32>
    %c8 = arith.constant 8 : index
    %c0_44 = arith.constant 0 : index
    %c0_45 = arith.constant 0 : index
    %94 = vector.load %arg5[%c8, %c0_44, %c0_45] : memref<9x8x8xf32, #tpu.memory_space<vmem>>, vector<1x8x8xf32>
    %95 = vector.shape_cast %94 : vector<1x8x8xf32> to vector<8x8xf32>
    %cst_46 = arith.constant dense<0.000000e+00> : vector<128x8xf32>
    %96 = tpu.matmul %93, %95, %cst_46 {dimension_numbers = #tpu.dot_dimension_numbers<[1], [0], [0], [1], [0, 0, 1, 1], [], []>} : vector<128x8xf32>, vector<8x8xf32>, vector<128x8xf32> -> vector<128x8xf32>
    %97 = arith.addf %91, %96 : vector<128x8xf32>
    %c0_47 = arith.constant 0 : index
    %c0_48 = arith.constant 0 : index
    %98 = vector.load %arg6[%c0_47, %c0_48] : memref<1x8xf32, #tpu.memory_space<vmem>>, vector<1x8xf32>
    %99 = vector.broadcast %98 : vector<1x8xf32> to vector<128x8xf32>
    %100 = arith.addf %97, %99 : vector<128x8xf32>
    %101 = vector.shape_cast %100 : vector<128x8xf32> to vector<8x16x8xf32>
    %c0_49 = arith.constant 0 : index
    %c0_50 = arith.constant 0 : index
    %c0_51 = arith.constant 0 : index
    %c0_52 = arith.constant 0 : index
    %102 = vector.load %arg9[%c0_49, %c0_50, %c0_51, %c0_52] : memref<1x8x16x8xf32, #tpu.memory_space<vmem>>, vector<1x8x16x8xf32>
    %103 = vector.shape_cast %102 : vector<1x8x16x8xf32> to vector<8x16x8xf32>
    %104 = vector.shape_cast %101 : vector<8x16x8xf32> to vector<1x8x16x8xf32>
    tpu.vector_store %arg9[%c0_49, %c0_50, %c0_51, %c0_52], %104 {strides = array<i32>} : memref<1x8x16x8xf32, #tpu.memory_space<vmem>>, vector<1x8x16x8xf32>,
    %cst_53 = arith.constant dense<0.000000e+00> : vector<8xf32>
    %105 = vector.multi_reduction <add>, %100, %cst_53 [0] : vector<128x8xf32> to vector<8xf32>
    %cst_54 = arith.constant 7.812500e-03 : f32
    %106 = vector.broadcast %cst_54 : f32 to vector<8xf32>
    %107 = arith.mulf %105, %106 : vector<8xf32>
    %108 = vector.shape_cast %107 : vector<8xf32> to vector<1x8xf32>
    %109 = vector.broadcast %108 : vector<1x8xf32> to vector<128x8xf32>
    %110 = arith.subf %100, %109 : vector<128x8xf32>
    %111 = arith.mulf %110, %110 : vector<128x8xf32>
    %cst_55 = arith.constant dense<0.000000e+00> : vector<8xf32>
    %112 = vector.multi_reduction <add>, %111, %cst_55 [0] : vector<128x8xf32> to vector<8xf32>
    %113 = vector.shape_cast %105 : vector<8xf32> to vector<1x8xf32>
    %c0_56 = arith.constant 0 : index
    %c0_57 = arith.constant 0 : index
    %c0_58 = arith.constant 0 : index
    %c0_59 = arith.constant 0 : index
    %114 = vector.load %arg10[%c0_56, %c0_57, %c0_58, %c0_59] : memref<1x1x1x8xf32, #tpu.memory_space<vmem>>, vector<1x1x1x8xf32>
    %115 = vector.shape_cast %114 : vector<1x1x1x8xf32> to vector<1x8xf32>
    %116 = vector.shape_cast %113 : vector<1x8xf32> to vector<1x1x1x8xf32>
    tpu.vector_store %arg10[%c0_56, %c0_57, %c0_58, %c0_59], %116 {strides = array<i32>} : memref<1x1x1x8xf32, #tpu.memory_space<vmem>>, vector<1x1x1x8xf32>,
    %117 = vector.shape_cast %112 : vector<8xf32> to vector<1x8xf32>
    %c0_60 = arith.constant 0 : index
    %c0_61 = arith.constant 0 : index
    %c0_62 = arith.constant 0 : index
    %c0_63 = arith.constant 0 : index
    %118 = vector.load %arg11[%c0_60, %c0_61, %c0_62, %c0_63] : memref<1x1x1x8xf32, #tpu.memory_space<vmem>>, vector<1x1x1x8xf32>
    %119 = vector.shape_cast %118 : vector<1x1x1x8xf32> to vector<1x8xf32>
    %120 = vector.shape_cast %117 : vector<1x8xf32> to vector<1x1x1x8xf32>
    tpu.vector_store %arg11[%c0_60, %c0_61, %c0_62, %c0_63], %120 {strides = array<i32>} : memref<1x1x1x8xf32, #tpu.memory_space<vmem>>, vector<1x1x1x8xf32>,
    return
  }
  func.func @transform_0(%arg0: i32, %arg1: i32) -> (i32, i32, i32, i32) {
    %c0_i32 = arith.constant 0 : i32
    %c0_i32_0 = arith.constant 0 : i32
    %c0_i32_1 = arith.constant 0 : i32
    return %arg0, %arg1, %c0_i32, %c0_i32_0 : i32, i32, i32, i32
  }
  func.func @transform_1(%arg0: i32, %arg1: i32) -> (i32, i32, i32, i32) {
    %c8_i32 = arith.constant 8 : i32
    %0 = arith.muli %arg1, %c8_i32 : i32
    %c1_i32 = arith.constant 1 : i32
    %1 = arith.subi %0, %c1_i32 : i32
    %c0_i32 = arith.constant 0 : i32
    %2 = arith.maxsi %1, %c0_i32 : i32
    %c0_i32_0 = arith.constant 0 : i32
    %c0_i32_1 = arith.constant 0 : i32
    %c0_i32_2 = arith.constant 0 : i32
    return %arg0, %2, %c0_i32_0, %c0_i32_1 : i32, i32, i32, i32
  }
  func.func @transform_2(%arg0: i32, %arg1: i32) -> (i32, i32, i32, i32) {
    %c1_i32 = arith.constant 1 : i32
    %0 = arith.addi %arg1, %c1_i32 : i32
    %c8_i32 = arith.constant 8 : i32
    %1 = arith.muli %0, %c8_i32 : i32
    %c15_i32 = arith.constant 15 : i32
    %2 = arith.minsi %1, %c15_i32 : i32
    %c0_i32 = arith.constant 0 : i32
    %c0_i32_0 = arith.constant 0 : i32
    %c0_i32_1 = arith.constant 0 : i32
    return %arg0, %2, %c0_i32, %c0_i32_0 : i32, i32, i32, i32
  }
  func.func @transform_3(%arg0: i32, %arg1: i32) -> (i32, i32, i32) {
    %c0_i32 = arith.constant 0 : i32
    %c0_i32_0 = arith.constant 0 : i32
    %c0_i32_1 = arith.constant 0 : i32
    %c0_i32_2 = arith.constant 0 : i32
    return %c0_i32, %c0_i32_0, %c0_i32_1 : i32, i32, i32
  }
  func.func @transform_4(%arg0: i32, %arg1: i32) -> (i32, i32) {
    %c0_i32 = arith.constant 0 : i32
    %c0_i32_0 = arith.constant 0 : i32
    %c0_i32_1 = arith.constant 0 : i32
    return %c0_i32, %c0_i32_0 : i32, i32
  }
  func.func @transform_5(%arg0: i32, %arg1: i32) -> (i32, i32) {
    %c0_i32 = arith.constant 0 : i32
    %c0_i32_0 = arith.constant 0 : i32
    %c0_i32_1 = arith.constant 0 : i32
    return %c0_i32, %c0_i32_0 : i32, i32
  }
  func.func @transform_6(%arg0: i32, %arg1: i32) -> (i32, i32) {
    %c0_i32 = arith.constant 0 : i32
    %c0_i32_0 = arith.constant 0 : i32
    %c0_i32_1 = arith.constant 0 : i32
    return %c0_i32, %c0_i32_0 : i32, i32
  }
  func.func @transform_7(%arg0: i32, %arg1: i32) -> (i32, i32, i32, i32) {
    %c0_i32 = arith.constant 0 : i32
    %c0_i32_0 = arith.constant 0 : i32
    %c0_i32_1 = arith.constant 0 : i32
    return %arg0, %arg1, %c0_i32, %c0_i32_0 : i32, i32, i32, i32
  }
  func.func @transform_8(%arg0: i32, %arg1: i32) -> (i32, i32, i32, i32) {
    %c0_i32 = arith.constant 0 : i32
    %c0_i32_0 = arith.constant 0 : i32
    %c0_i32_1 = arith.constant 0 : i32
    return %arg0, %arg1, %c0_i32, %c0_i32_0 : i32, i32, i32, i32
  }
  func.func @transform_9(%arg0: i32, %arg1: i32) -> (i32, i32, i32, i32) {
    %c0_i32 = arith.constant 0 : i32
    %c0_i32_0 = arith.constant 0 : i32
    %c0_i32_1 = arith.constant 0 : i32
    return %arg0, %arg1, %c0_i32, %c0_i32_0 : i32, i32, i32, i32
  }
}

module attributes {stable_mosaic.version = 11 : i64} {
  func.func @_bn_relu_kernel(%arg0: i32, %arg1: memref<32x128xf32, #tpu.memory_space<vmem>>, %arg2: memref<1x128xf32, #tpu.memory_space<vmem>>, %arg3: memref<1x128xf32, #tpu.memory_space<vmem>>, %arg4: memref<32x128xf32, #tpu.memory_space<vmem>>) attributes {dimension_semantics = [#tpu.dimension_semantics<parallel>], iteration_bounds = array<i64: 1>, scalar_prefetch = 0 : i64, scratch_operands = 0 : i64, tpu.core_type = #tpu.core_type<tc>, window_params = [{transform_indices = @transform_0, window_bounds = array<i64: 32, 128>}, {pipeline_mode = #tpu.pipeline_mode<synchronous>, transform_indices = @transform_1, window_bounds = array<i64: 1, 128>}, {pipeline_mode = #tpu.pipeline_mode<synchronous>, transform_indices = @transform_2, window_bounds = array<i64: 1, 128>}, {transform_indices = @transform_3, window_bounds = array<i64: 32, 128>}]} {
    %c0 = arith.constant 0 : index
    %c0_0 = arith.constant 0 : index
    %0 = vector.load %arg1[%c0, %c0_0] : memref<32x128xf32, #tpu.memory_space<vmem>>, vector<32x128xf32>
    %c0_1 = arith.constant 0 : index
    %c0_2 = arith.constant 0 : index
    %1 = vector.load %arg2[%c0_1, %c0_2] : memref<1x128xf32, #tpu.memory_space<vmem>>, vector<1x128xf32>
    %2 = vector.broadcast %1 : vector<1x128xf32> to vector<32x128xf32>
    %3 = arith.mulf %0, %2 : vector<32x128xf32>
    %c0_3 = arith.constant 0 : index
    %c0_4 = arith.constant 0 : index
    %4 = vector.load %arg3[%c0_3, %c0_4] : memref<1x128xf32, #tpu.memory_space<vmem>>, vector<1x128xf32>
    %5 = vector.broadcast %4 : vector<1x128xf32> to vector<32x128xf32>
    %6 = arith.addf %3, %5 : vector<32x128xf32>
    %cst = arith.constant 0.000000e+00 : f32
    %7 = vector.broadcast %cst : f32 to vector<32x128xf32>
    %8 = arith.maximumf %6, %7 : vector<32x128xf32>
    %c0_5 = arith.constant 0 : index
    %c0_6 = arith.constant 0 : index
    %9 = vector.load %arg4[%c0_5, %c0_6] : memref<32x128xf32, #tpu.memory_space<vmem>>, vector<32x128xf32>
    tpu.vector_store %arg4[%c0_5, %c0_6], %8 {strides = array<i32>} : memref<32x128xf32, #tpu.memory_space<vmem>>, vector<32x128xf32>,
    return
  }
  func.func @transform_0(%arg0: i32) -> (i32, i32) {
    %c0_i32 = arith.constant 0 : i32
    %c0_i32_0 = arith.constant 0 : i32
    return %arg0, %c0_i32 : i32, i32
  }
  func.func @transform_1(%arg0: i32) -> (i32, i32) {
    %c0_i32 = arith.constant 0 : i32
    %c0_i32_0 = arith.constant 0 : i32
    %c0_i32_1 = arith.constant 0 : i32
    return %c0_i32, %c0_i32_0 : i32, i32
  }
  func.func @transform_2(%arg0: i32) -> (i32, i32) {
    %c0_i32 = arith.constant 0 : i32
    %c0_i32_0 = arith.constant 0 : i32
    %c0_i32_1 = arith.constant 0 : i32
    return %c0_i32, %c0_i32_0 : i32, i32
  }
  func.func @transform_3(%arg0: i32) -> (i32, i32) {
    %c0_i32 = arith.constant 0 : i32
    %c0_i32_0 = arith.constant 0 : i32
    return %arg0, %c0_i32 : i32, i32
  }
}

</mosaic_0001>

<llo_original>
// kernel: tile.18
$region0: #{tile.18}
  #allocation0 [shape = 's32[1]{0}', space=sflag, size = 0x4, scoped, tag = 'scoped memory for tile.18']
  %s0 = inlined_call_operand.vmem [shape: f32[8], index: 0, kind: input, shape index: {}]
  %s1 = inlined_call_operand.vmem [shape: f32[16,8], index: 1, kind: output, shape index: {}]
  // Predicated region
  $region2: #{tile.18} parent=0 // pred_check
    _
  $region3: #{tile.18} parent=0 // pred_check_branch
    %3 = sbr.rel (0) target = $region5
  $region4: #{tile.18} parent=0 // pred_region
    _
  $region5: #{tile.18} parent=0 // pred_fallthru
    _
  %v4 = vld [vmem:[%s0] ss:$0 sm:$0xff]
  %5 = vst [vmem:[%s1] sm:$0xff] %v4
  %s6 = scalar_lea.vmem %s1, 8
  %7 = vst [vmem:[%s6] sm:$0xff] %v4

// kernel: tile.19
$region0: #{tile.19}
  %s0 = inlined_call_operand.vmem [shape: f32[16,8], index: 0, kind: input, shape index: {}]
  %s1 = inlined_call_operand.vmem [shape: f32[1,128], index: 1, kind: output, shape index: {}]
  $region1: #{tile.19} parent=0
    #allocation0 [shape = 'u8[4096]{0}', space=vmem, size = 0x1000, scoped, tag = 'scoped mem for output reshape']
    %v2 = vld [vmem:[%s0] sm:$0x1]
    %vm3 = vcmask 64512
    %4 = vst.msk [vmem:[#allocation0] sm:$0x1] %vm3, %v2
    %s5 = scalar_lea.vmem %s0, 15
    %v6 = vld [vmem:[%s5] sm:$0x1]
    %7 = vrot.lane.b32.xlu0 %v6, 120
    %v8 = vpop.permute.xlu0 %7
    %vm9 = vcmask 1048512
    %10 = vst.msk [vmem:[#allocation0] sm:$0x1] %vm9, %v8
    %s11 = scalar_lea.vmem %s0, 14
    %v12 = vld [vmem:[%s11] sm:$0x1]
    %13 = vrot.lane.b32.xlu0 %v12, 112
    %v14 = vpop.permute.xlu0 %13
    %vm15 = vcmask 982912
    %16 = vst.msk [vmem:[#allocation0] sm:$0x1] %vm15, %v14
    %s17 = scalar_lea.vmem %s0, 13
    %v18 = vld [vmem:[%s17] sm:$0x1]
    %19 = vrot.lane.b32.xlu0 %v18, 104
    %v20 = vpop.permute.xlu0 %19
    %vm21 = vcmask 917312
    %22 = vst.msk [vmem:[#allocation0] sm:$0x1] %vm21, %v20
    %s23 = scalar_lea.vmem %s0, 12
    %v24 = vld [vmem:[%s23] sm:$0x1]
    %25 = vrot.lane.b32.xlu0 %v24, 96
    %v26 = vpop.permute.xlu0 %25
    %vm27 = vcmask 851712
    %28 = vst.msk [vmem:[#allocation0] sm:$0x1] %vm27, %v26
    %s29 = scalar_lea.vmem %s0, 11
    %v30 = vld [vmem:[%s29] sm:$0x1]
    %31 = vrot.lane.b32.xlu0 %v30, 88
    %v32 = vpop.permute.xlu0 %31
    %vm33 = vcmask 786112
    %34 = vst.msk [vmem:[#allocation0] sm:$0x1] %vm33, %v32
    %s35 = scalar_lea.vmem %s0, 10
    %v36 = vld [vmem:[%s35] sm:$0x1]
    %37 = vrot.lane.b32.xlu0 %v36, 80
    %v38 = vpop.permute.xlu0 %37
    %vm39 = vcmask 720512
    %40 = vst.msk [vmem:[#allocation0] sm:$0x1] %vm39, %v38
    %s41 = scalar_lea.vmem %s0, 9
    %v42 = vld [vmem:[%s41] sm:$0x1]
    %43 = vrot.lane.b32.xlu0 %v42, 72
    %v44 = vpop.permute.xlu0 %43
    %vm45 = vcmask 654912
    %46 = vst.msk [vmem:[#allocation0] sm:$0x1] %vm45, %v44
    %s47 = scalar_lea.vmem %s0, 8
    %v48 = vld [vmem:[%s47] sm:$0x1]
    %49 = vrot.lane.b32.xlu0 %v48, 64
    %v50 = vpop.permute.xlu0 %49
    %vm51 = vcmask 589312
    %52 = vst.msk [vmem:[#allocation0] sm:$0x1] %vm51, %v50
    %s53 = scalar_lea.vmem %s0, 7
    %v54 = vld [vmem:[%s53] sm:$0x1]
    %55 = vrot.lane.b32.xlu0 %v54, 56
    %v56 = vpop.permute.xlu0 %55
    %vm57 = vcmask 523712
    %58 = vst.msk [vmem:[#allocation0] sm:$0x1] %vm57, %v56
    %s59 = scalar_lea.vmem %s0, 6
    %v60 = vld [vmem:[%s59] sm:$0x1]
    %61 = vrot.lane.b32.xlu0 %v60, 48
    %v62 = vpop.permute.xlu0 %61
    %vm63 = vcmask 458112
    %64 = vst.msk [vmem:[#allocation0] sm:$0x1] %vm63, %v62
    %s65 = scalar_lea.vmem %s0, 5
    %v66 = vld [vmem:[%s65] sm:$0x1]
    %67 = vrot.lane.b32.xlu0 %v66, 40
    %v68 = vpop.permute.xlu0 %67
    %vm69 = vcmask 392512
    %70 = vst.msk [vmem:[#allocation0] sm:$0x1] %vm69, %v68
    %s71 = scalar_lea.vmem %s0, 4
    %v72 = vld [vmem:[%s71] sm:$0x1]
    %73 = vrot.lane.b32.xlu0 %v72, 32
    %v74 = vpop.permute.xlu0 %73
    %vm75 = vcmask 326912
    %76 = vst.msk [vmem:[#allocation0] sm:$0x1] %vm75, %v74
    %s77 = scalar_lea.vmem %s0, 3
    %v78 = vld [vmem:[%s77] sm:$0x1]
    %79 = vrot.lane.b32.xlu0 %v78, 24
    %v80 = vpop.permute.xlu0 %79
    %vm81 = vcmask 261312
    %82 = vst.msk [vmem:[#allocation0] sm:$0x1] %vm81, %v80
    %s83 = scalar_lea.vmem %s0, 2
    %v84 = vld [vmem:[%s83] sm:$0x1]
    %85 = vrot.lane.b32.xlu0 %v84, 16
    %v86 = vpop.permute.xlu0 %85
    %vm87 = vcmask 195712
    %88 = vst.msk [vmem:[#allocation0] sm:$0x1] %vm87, %v86
    %s89 = scalar_lea.vmem %s0, 1
    %v90 = vld [vmem:[%s89] sm:$0x1]
    %91 = vrot.lane.b32.xlu0 %v90, 8
    %v92 = vpop.permute.xlu0 %91
    %vm93 = vcmask 130112
    %94 = vst.msk [vmem:[#allocation0] sm:$0x1] %vm93, %v92
    %s96 = ssub.s32 2, 1
    %v97 = vld [vmem:[#allocation0] sm:%s96]
    %s99 = ssub.s32 2, 1
    %100 = vst [vmem:[%s1] sm:%s99] %v97

// kernel: upsample_block.5
$region0: #{upsample_block.5}
  #allocation0 [shape = 'u32[]', space=smem, size = 0x4, offset = 0x4, fixed_abs, tag = 'smem constant byte address 0x4 - core index']
  #allocation1 [shape = 'u32[72,128]{1,0:T(1,128)}', space=vmem, size = 0x9000, scoped, tag = 'internal scratch']
  %s0 = inlined_call_operand.vmem [shape: f32[32,128], index: 0, kind: input, shape index: {}]
  %s1 = inlined_call_operand.vmem [shape: f32[1,128], index: 1, kind: input, shape index: {}]
  %s2 = inlined_call_operand.vmem [shape: f32[1,128], index: 2, kind: input, shape index: {}]
  %s3 = inlined_call_operand.vmem [shape: f32[32,128], index: 3, kind: output, shape index: {}]
  %s4 = sld [smem:[#allocation0]]
  $region22: #{upsample_block.5} parent=0
    _
  %s6 = ssub.s32 1, %s4
  %s7 = scalar_select 0, %s6, %s4
  // Predicated region
  $region2: #{upsample_block.5} parent=0 // pred_check
    _
  $region3: #{upsample_block.5} parent=0 // pred_check_branch
    %9 = sbr.rel (0) target = $region5
  $region4: #{upsample_block.5} parent=0 // pred_region
    _
  $region5: #{upsample_block.5} parent=0 // pred_fallthru
    _
  // Predicated region
  $region6: #{upsample_block.5} parent=0 // pred_check
    _
  $region7: #{upsample_block.5} parent=0 // pred_check_branch
    %11 = sbr.rel (0) target = $region9
  $region8: #{upsample_block.5} parent=0 // pred_region
    _
  $region9: #{upsample_block.5} parent=0 // pred_fallthru
    _
  // Predicated region
  $region10: #{upsample_block.5} parent=0 // pred_check
    _
  $region11: #{upsample_block.5} parent=0 // pred_check_branch
    %13 = sbr.rel (0) target = $region13
  $region12: #{upsample_block.5} parent=0 // pred_region
    _
  $region13: #{upsample_block.5} parent=0 // pred_fallthru
    _
  %v14 = vld [vmem:[%s0] sm:$0xff]
  %v15 = vld [vmem:[%s0 + $0x8] sm:$0xff]
  %v16 = vld [vmem:[%s0 + $0x10] sm:$0xff]
  %v17 = vld [vmem:[%s0 + $0x18] sm:$0xff]
  %v18 = vld [vmem:[%s1] sm:$0x1]
  %v20 = vperm.slane %v18, 0
  %v22 = vmul.f32 %v14, %v20
  %v23 = vmul.f32 %v15, %v20
  %v24 = vmul.f32 %v16, %v20
  %v25 = vmul.f32 %v17, %v20
  %v26 = vld [vmem:[%s2] sm:$0x1]
  %v28 = vperm.slane %v26, 0
  %v30 = vadd.f32 %v22, %v28
  %v31 = vadd.f32 %v23, %v28
  %v32 = vadd.f32 %v24, %v28
  %v33 = vadd.f32 %v25, %v28
  %v34 = vmax.f32 %v30, 0.0
  %v35 = vmax.f32 %v31, 0.0
  %v36 = vmax.f32 %v32, 0.0
  %v37 = vmax.f32 %v33, 0.0
  %38 = vst [vmem:[%s3] sm:$0xff] %v34
  %39 = vst [vmem:[%s3 + $0x8] sm:$0xff] %v35
  %40 = vst [vmem:[%s3 + $0x10] sm:$0xff] %v36
  %41 = vst [vmem:[%s3 + $0x18] sm:$0xff] %v37
  // Predicated region
  $region14: #{upsample_block.5} parent=0 // pred_check
    _
  $region15: #{upsample_block.5} parent=0 // pred_check_branch
    %43 = sbr.rel (0) target = $region17
  $region16: #{upsample_block.5} parent=0 // pred_region
    _
  $region17: #{upsample_block.5} parent=0 // pred_fallthru
    _
  // Predicated region
  $region18: #{upsample_block.5} parent=0 // pred_check
    _
  $region19: #{upsample_block.5} parent=0 // pred_check_branch
    %45 = sbr.rel (0) target = $region21
  $region20: #{upsample_block.5} parent=0 // pred_region
    _
  $region21: #{upsample_block.5} parent=0 // pred_fallthru
    _

// kernel: upsample_block.4
$region0: #{upsample_block.4}
  #allocation0 [shape = 'u32[]', space=smem, size = 0x4, offset = 0x4, fixed_abs, tag = 'smem constant byte address 0x4 - core index']
  #allocation1 [shape = 'u32[72,128]{1,0:T(1,128)}', space=vmem, size = 0x9000, scoped, tag = 'internal scratch']
  %s0 = inlined_call_operand.vmem [shape: f32[2,16,16,8], index: 0, kind: input, shape index: {}, may-alias: {0,1,2}]
  %s1 = inlined_call_operand.vmem [shape: f32[2,16,16,8], index: 1, kind: input, shape index: {}, may-alias: {0,1,2}]
  %s2 = inlined_call_operand.vmem [shape: f32[2,16,16,8], index: 2, kind: input, shape index: {}, may-alias: {0,1,2}]
  %s3 = inlined_call_operand.vmem [shape: f32[9,8,8], index: 3, kind: input, shape index: {}]
  %s4 = inlined_call_operand.vmem [shape: f32[1,8], index: 4, kind: input, shape index: {}]
  %s5 = inlined_call_operand.vmem [shape: f32[1,8], index: 5, kind: input, shape index: {}]
  %s6 = inlined_call_operand.vmem [shape: f32[1,8], index: 6, kind: input, shape index: {}]
  %s7 = inlined_call_operand.vmem [shape: f32[2,16,16,8], index: 7, kind: output, shape index: {0}]
  %s8 = inlined_call_operand.vmem [shape: f32[2,2,1,8], index: 8, kind: output, shape index: {1}]
  %s9 = inlined_call_operand.vmem [shape: f32[2,2,1,8], index: 9, kind: output, shape index: {2}]
  %10 = xla_tuple %s7, %s8, %s9
  %s11 = sld [smem:[#allocation0]]
  $region77: #{upsample_block.4} parent=0
    _
  %s13 = ssub.s32 1, %s11
  %s14 = scalar_select 0, %s13, %s11
  loop: start=0, step=1, limit=6
  $region2: #{upsample_block.4} parent=0 // loop_pre_header
    _
  $region3: #{upsample_block.4} parent=0 // loop_header
    %s16 = sphi 0, %s20
    %p17 = scmp.ge.s32.totalorder %s16, 6
    %s23 = sphi 0, %s35
    %s24 = sphi 0, %s31
    %s25 = sphi 0, %s23
    %s26 = sphi 0, %s24
    %s27 = sphi 0, %s25
    %s28 = sphi 0, %s26
    %s40 = sphi 0, %s42
    %s43 = sphi 0, %s40
    %s44 = sphi 0, %s43
    %s60 = sphi 0, %s44
    %s76 = sphi 0, %s78
    %s79 = sphi 0, %s76
    %s80 = sphi 0, %s79
    %s96 = sphi 0, %s80
    %s112 = sphi 0, %s114
    %s115 = sphi 0, %s112
    %s116 = sphi 0, %s115
    %s132 = sphi 0, %s116
    %s136 = sphi 0, %s136
    %s138 = sphi 0, %s136
    %s139 = sphi 0, %s138
    %s153 = sphi 0, %s139
    %s157 = sphi 0, %s157
    %s159 = sphi 0, %s157
    %s160 = sphi 0, %s159
    %s174 = sphi 0, %s160
    %s178 = sphi 0, %s178
    %s180 = sphi 0, %s178
    %s181 = sphi 0, %s180
    %s195 = sphi 0, %s181
    %s199 = sphi 0, %s199
    %s201 = sphi 0, %s199
    %s202 = sphi 0, %s201
    %s216 = sphi 0, %s202
    %s224 = sphi 0, %s226
    %s227 = sphi 0, %s224
    %s228 = sphi 0, %s227
    %s244 = sphi 0, %s228
    %s252 = sphi 0, %s254
    %s255 = sphi 0, %s252
    %s256 = sphi 0, %s255
    %s272 = sphi 0, %s256
    %s280 = sphi 0, %s282
    %s283 = sphi 0, %s280
    %s284 = sphi 0, %s283
    %s300 = sphi 0, %s284
  $region4: #{upsample_block.4} parent=0 // loop_header_branch
    %19 = sbr.rel (%p17) target = $region8
  $region5: #{upsample_block.4} parent=0 // loop_body
    %s21 = ssub.s32 %s16, 1
    %s22 = ssub.s32 %s16, 2
    %s29 = sadd.s32 1, %s24
    %p30 = scmp.ge.s32.totalorder %s29, 2
    %s31 = scalar_select %p30, 0, %s29
    %s32 = sadd.s32 1, %s23
    %s33 = scalar_select %p30, %s32, %s23
    %p34 = scmp.ge.s32.totalorder %s33, 2
    %s35 = scalar_select %p34, 0, %s33
    %s36 = ssub.s32 %s23, %s35
    %s37 = ssub.s32 %s24, %s31
    %s38 = sor.u32 %s36, %s37
    %p39 = scmp.eq.s32.totalorder %s38, 0
    %s41 = sadd.s32 %s40, 1
    %s42 = scalar_select %p39, %s40, %s41
    %p45 = pneg %p39
    %p46 = scmp.eq.s32.totalorder %s16, 3
    %p47 = por %p45, %p46
    %p48 = scmp.ne.s32.totalorder %s40, %s43
    %p49 = scmp.eq.s32.totalorder %s16, 0
    %p50 = por %p48, %p49
    %p51 = scmp.ne.s32.totalorder %s40, %s43
    %p52 = scmp.eq.s32.totalorder %s21, 3
    %p53 = por %p51, %p52
    %p54 = scmp.ne.s32.totalorder %s43, %s44
    %p55 = scmp.eq.s32.totalorder %s21, 0
    %p56 = por %p54, %p55
    %p57 = scmp.ne.s32.totalorder %s43, %s44
    %p58 = scmp.eq.s32.totalorder %s22, 3
    %p59 = por %p57, %p58
    %p61 = scmp.ne.s32.totalorder %s44, %s60
    %p62 = scmp.eq.s32.totalorder %s22, 0
    %p63 = por %p61, %p62
    %s64 = smul.u32 %s24, 8
    %s65 = ssub.s32 %s64, 1
    %p66 = scmp.gt.s32.totalorder %s65, 0
    %s67 = scalar_select %p66, %s65, 0
    %s68 = smul.u32 %s31, 8
    %s69 = ssub.s32 %s68, 1
    %p70 = scmp.gt.s32.totalorder %s69, 0
    %s71 = scalar_select %p70, %s69, 0
    %s72 = ssub.s32 %s23, %s35
    %s73 = ssub.s32 %s67, %s71
    %s74 = sor.u32 %s72, %s73
    %p75 = scmp.eq.s32.totalorder %s74, 0
    %s77 = sadd.s32 %s76, 1
    %s78 = scalar_select %p75, %s76, %s77
    %p81 = pneg %p75
    %p82 = scmp.eq.s32.totalorder %s16, 3
    %p83 = por %p81, %p82
    %p84 = scmp.ne.s32.totalorder %s76, %s79
    %p85 = scmp.eq.s32.totalorder %s16, 0
    %p86 = por %p84, %p85
    %p87 = scmp.ne.s32.totalorder %s76, %s79
    %p88 = scmp.eq.s32.totalorder %s21, 3
    %p89 = por %p87, %p88
    %p90 = scmp.ne.s32.totalorder %s79, %s80
    %p91 = scmp.eq.s32.totalorder %s21, 0
    %p92 = por %p90, %p91
    %p93 = scmp.ne.s32.totalorder %s79, %s80
    %p94 = scmp.eq.s32.totalorder %s22, 3
    %p95 = por %p93, %p94
    %p97 = scmp.ne.s32.totalorder %s80, %s96
    %p98 = scmp.eq.s32.totalorder %s22, 0
    %p99 = por %p97, %p98
    %s100 = sadd.s32 %s24, 1
    %s101 = smul.u32 %s100, 8
    %p102 = scmp.lt.s32.totalorder %s101, 15
    %s103 = scalar_select %p102, %s101, 15
    %s104 = sadd.s32 %s31, 1
    %s105 = smul.u32 %s104, 8
    %p106 = scmp.lt.s32.totalorder %s105, 15
    %s107 = scalar_select %p106, %s105, 15
    %s108 = ssub.s32 %s23, %s35
    %s109 = ssub.s32 %s103, %s107
    %s110 = sor.u32 %s108, %s109
    %p111 = scmp.eq.s32.totalorder %s110, 0
    %s113 = sadd.s32 %s112, 1
    %s114 = scalar_select %p111, %s112, %s113
    %p117 = pneg %p111
    %p118 = scmp.eq.s32.totalorder %s16, 3
    %p119 = por %p117, %p118
    %p120 = scmp.ne.s32.totalorder %s112, %s115
    %p121 = scmp.eq.s32.totalorder %s16, 0
    %p122 = por %p120, %p121
    %p123 = scmp.ne.s32.totalorder %s112, %s115
    %p124 = scmp.eq.s32.totalorder %s21, 3
    %p125 = por %p123, %p124
    %p126 = scmp.ne.s32.totalorder %s115, %s116
    %p127 = scmp.eq.s32.totalorder %s21, 0
    %p128 = por %p126, %p127
    %p129 = scmp.ne.s32.totalorder %s115, %s116
    %p130 = scmp.eq.s32.totalorder %s22, 3
    %p131 = por %p129, %p130
    %p133 = scmp.ne.s32.totalorder %s116, %s132
    %p134 = scmp.eq.s32.totalorder %s22, 0
    %p135 = por %p133, %p134
    %s137 = sadd.s32 %s136, 1
    %p140 = scmp.eq.s32.totalorder %s16, 3
    %p141 = scmp.ne.s32.totalorder %s136, %s138
    %p142 = scmp.eq.s32.totalorder %s16, 0
    %p143 = por %p141, %p142
    %p144 = scmp.ne.s32.totalorder %s136, %s138
    %p145 = scmp.eq.s32.totalorder %s21, 3
    %p146 = por %p144, %p145
    %p147 = scmp.ne.s32.totalorder %s138, %s139
    %p148 = scmp.eq.s32.totalorder %s21, 0
    %p149 = por %p147, %p148
    %p150 = scmp.ne.s32.totalorder %s138, %s139
    %p151 = scmp.eq.s32.totalorder %s22, 3
    %p152 = por %p150, %p151
    %p154 = scmp.ne.s32.totalorder %s139, %s153
    %p155 = scmp.eq.s32.totalorder %s22, 0
    %p156 = por %p154, %p155
    %s158 = sadd.s32 %s157, 1
    %p161 = scmp.eq.s32.totalorder %s16, 3
    %p162 = scmp.ne.s32.totalorder %s157, %s159
    %p163 = scmp.eq.s32.totalorder %s16, 0
    %p164 = por %p162, %p163
    %p165 = scmp.ne.s32.totalorder %s157, %s159
    %p166 = scmp.eq.s32.totalorder %s21, 3
    %p167 = por %p165, %p166
    %p168 = scmp.ne.s32.totalorder %s159, %s160
    %p169 = scmp.eq.s32.totalorder %s21, 0
    %p170 = por %p168, %p169
    %p171 = scmp.ne.s32.totalorder %s159, %s160
    %p172 = scmp.eq.s32.totalorder %s22, 3
    %p173 = por %p171, %p172
    %p175 = scmp.ne.s32.totalorder %s160, %s174
    %p176 = scmp.eq.s32.totalorder %s22, 0
    %p177 = por %p175, %p176
    %s179 = sadd.s32 %s178, 1
    %p182 = scmp.eq.s32.totalorder %s16, 3
    %p183 = scmp.ne.s32.totalorder %s178, %s180
    %p184 = scmp.eq.s32.totalorder %s16, 0
    %p185 = por %p183, %p184
    %p186 = scmp.ne.s32.totalorder %s178, %s180
    %p187 = scmp.eq.s32.totalorder %s21, 3
    %p188 = por %p186, %p187
    %p189 = scmp.ne.s32.totalorder %s180, %s181
    %p190 = scmp.eq.s32.totalorder %s21, 0
    %p191 = por %p189, %p190
    %p192 = scmp.ne.s32.totalorder %s180, %s181
    %p193 = scmp.eq.s32.totalorder %s22, 3
    %p194 = por %p192, %p193
    %p196 = scmp.ne.s32.totalorder %s181, %s195
    %p197 = scmp.eq.s32.totalorder %s22, 0
    %p198 = por %p196, %p197
    %s200 = sadd.s32 %s199, 1
    %p203 = scmp.eq.s32.totalorder %s16, 3
    %p204 = scmp.ne.s32.totalorder %s199, %s201
    %p205 = scmp.eq.s32.totalorder %s16, 0
    %p206 = por %p204, %p205
    %p207 = scmp.ne.s32.totalorder %s199, %s201
    %p208 = scmp.eq.s32.totalorder %s21, 3
    %p209 = por %p207, %p208
    %p210 = scmp.ne.s32.totalorder %s201, %s202
    %p211 = scmp.eq.s32.totalorder %s21, 0
    %p212 = por %p210, %p211
    %p213 = scmp.ne.s32.totalorder %s201, %s202
    %p214 = scmp.eq.s32.totalorder %s22, 3
    %p215 = por %p213, %p214
    %p217 = scmp.ne.s32.totalorder %s202, %s216
    %p218 = scmp.eq.s32.totalorder %s22, 0
    %p219 = por %p217, %p218
    %s220 = ssub.s32 %s23, %s35
    %s221 = ssub.s32 %s24, %s31
    %s222 = sor.u32 %s220, %s221
    %p223 = scmp.eq.s32.totalorder %s222, 0
    %s225 = sadd.s32 %s224, 1
    %s226 = scalar_select %p223, %s224, %s225
    %p229 = pneg %p223
    %p230 = scmp.eq.s32.totalorder %s16, 3
    %p231 = por %p229, %p230
    %p232 = scmp.ne.s32.totalorder %s224, %s227
    %p233 = scmp.eq.s32.totalorder %s16, 0
    %p234 = por %p232, %p233
    %p235 = scmp.ne.s32.totalorder %s224, %s227
    %p236 = scmp.eq.s32.totalorder %s21, 3
    %p237 = por %p235, %p236
    %p238 = scmp.ne.s32.totalorder %s227, %s228
    %p239 = scmp.eq.s32.totalorder %s21, 0
    %p240 = por %p238, %p239
    %p241 = scmp.ne.s32.totalorder %s227, %s228
    %p242 = scmp.eq.s32.totalorder %s22, 3
    %p243 = por %p241, %p242
    %p245 = scmp.ne.s32.totalorder %s228, %s244
    %p246 = scmp.eq.s32.totalorder %s22, 0
    %p247 = por %p245, %p246
    %s248 = ssub.s32 %s23, %s35
    %s249 = ssub.s32 %s24, %s31
    %s250 = sor.u32 %s248, %s249
    %p251 = scmp.eq.s32.totalorder %s250, 0
    %s253 = sadd.s32 %s252, 1
    %s254 = scalar_select %p251, %s252, %s253
    %p257 = pneg %p251
    %p258 = scmp.eq.s32.totalorder %s16, 3
    %p259 = por %p257, %p258
    %p260 = scmp.ne.s32.totalorder %s252, %s255
    %p261 = scmp.eq.s32.totalorder %s16, 0
    %p262 = por %p260, %p261
    %p263 = scmp.ne.s32.totalorder %s252, %s255
    %p264 = scmp.eq.s32.totalorder %s21, 3
    %p265 = por %p263, %p264
    %p266 = scmp.ne.s32.totalorder %s255, %s256
    %p267 = scmp.eq.s32.totalorder %s21, 0
    %p268 = por %p266, %p267
    %p269 = scmp.ne.s32.totalorder %s255, %s256
    %p270 = scmp.eq.s32.totalorder %s22, 3
    %p271 = por %p269, %p270
    %p273 = scmp.ne.s32.totalorder %s256, %s272
    %p274 = scmp.eq.s32.totalorder %s22, 0
    %p275 = por %p273, %p274
    %s276 = ssub.s32 %s23, %s35
    %s277 = ssub.s32 %s24, %s31
    %s278 = sor.u32 %s276, %s277
    %p279 = scmp.eq.s32.totalorder %s278, 0
    %s281 = sadd.s32 %s280, 1
    %s282 = scalar_select %p279, %s280, %s281
    %p285 = pneg %p279
    %p286 = scmp.eq.s32.totalorder %s16, 3
    %p287 = por %p285, %p286
    %p288 = scmp.ne.s32.totalorder %s280, %s283
    %p289 = scmp.eq.s32.totalorder %s16, 0
    %p290 = por %p288, %p289
    %p291 = scmp.ne.s32.totalorder %s280, %s283
    %p292 = scmp.eq.s32.totalorder %s21, 3
    %p293 = por %p291, %p292
    %p294 = scmp.ne.s32.totalorder %s283, %s284
    %p295 = scmp.eq.s32.totalorder %s21, 0
    %p296 = por %p294, %p295
    %p297 = scmp.ne.s32.totalorder %s283, %s284
    %p298 = scmp.eq.s32.totalorder %s22, 3
    %p299 = por %p297, %p298
    %p301 = scmp.ne.s32.totalorder %s284, %s300
    %p302 = scmp.eq.s32.totalorder %s22, 0
    %p303 = por %p301, %p302
    %p304 = scmp.le.s32.totalorder 1, %s16
    %p305 = scmp.lt.s32.totalorder %s16, 5
    %p306 = pnand %p304, %p305
    %p307 = pneg %p306
    // Predicated region
    $region9: #{upsample_block.4} parent=5 // pred_check
      _
    $region10: #{upsample_block.4} parent=5 // pred_check_branch
      %309 = sbr.rel (%p306) target = $region12
    $region11: #{upsample_block.4} parent=5 // pred_region
      %s310 = ssub.s32 %s16, 1
      // Predicated region
      $region13: #{upsample_block.4} parent=11 // pred_check
        %p311 = pneg %p149
      $region14: #{upsample_block.4} parent=11 // pred_check_branch
        %313 = sbr.rel (%p311) target = $region16
      $region15: #{upsample_block.4} parent=11 // pred_region
        _
      $region16: #{upsample_block.4} parent=11 // pred_fallthru
        _
      // Predicated region
      $region17: #{upsample_block.4} parent=11 // pred_check
        %p314 = pneg %p170
      $region18: #{upsample_block.4} parent=11 // pred_check_branch
        %316 = sbr.rel (%p314) target = $region20
      $region19: #{upsample_block.4} parent=11 // pred_region
        _
      $region20: #{upsample_block.4} parent=11 // pred_fallthru
        _
      // Predicated region
      $region21: #{upsample_block.4} parent=11 // pred_check
        %p317 = pneg %p191
      $region22: #{upsample_block.4} parent=11 // pred_check_branch
        %319 = sbr.rel (%p317) target = $region24
      $region23: #{upsample_block.4} parent=11 // pred_region
        _
      $region24: #{upsample_block.4} parent=11 // pred_fallthru
        _
      // Predicated region
      $region25: #{upsample_block.4} parent=11 // pred_check
        %p320 = pneg %p212
      $region26: #{upsample_block.4} parent=11 // pred_check_branch
        %322 = sbr.rel (%p320) target = $region28
      $region27: #{upsample_block.4} parent=11 // pred_region
        _
      $region28: #{upsample_block.4} parent=11 // pred_fallthru
        _
    $region12: #{upsample_block.4} parent=5 // pred_fallthru
      _
    %p323 = scmp.lt.s32.totalorder %s16, 4
    // Predicated region
    $region29: #{upsample_block.4} parent=5 // pred_check
      %p324 = pneg %p323
    $region30: #{upsample_block.4} parent=5 // pred_check_branch
      %326 = sbr.rel (%p324) target = $region32
    $region31: #{upsample_block.4} parent=5 // pred_region
      // Predicated region
      $region33: #{upsample_block.4} parent=31 // pred_check
        %p327 = pneg %p50
      $region34: #{upsample_block.4} parent=31 // pred_check_branch
        %329 = sbr.rel (%p327) target = $region36
      $region35: #{upsample_block.4} parent=31 // pred_region
        %s330 = smul.u32 8, %s24
        %p331 = scmp.lt.s32.totalorder %s23, 1
        %s332 = scalar_select %p331, %s23, 1
        %p333 = scmp.lt.s32.totalorder %s330, 15
        %s334 = scalar_select %p333, %s330, 15
        %s335 = smul.addr %s334, 2
        %s336 = smul.addr %s332, 32
        %s337 = sadd.s32 %s335, %s336
        %s338 = smul.addr %s337, 8
        %s339 = scalar_lea.vmem %s0, %s338
        %s340 = smul.u32 8, %s24
      $region36: #{upsample_block.4} parent=31 // pred_fallthru
        _
      // Predicated region
      $region37: #{upsample_block.4} parent=31 // pred_check
        %p341 = pneg %p86
      $region38: #{upsample_block.4} parent=31 // pred_check_branch
        %343 = sbr.rel (%p341) target = $region40
      $region39: #{upsample_block.4} parent=31 // pred_region
        %s344 = smul.u32 %s24, 8
        %s345 = ssub.s32 %s344, 1
        %p346 = scmp.gt.s32.totalorder %s345, 0
        %s347 = scalar_select %p346, %s345, 0
        %p348 = scmp.lt.s32.totalorder %s23, 1
        %s349 = scalar_select %p348, %s23, 1
        %p350 = scmp.lt.s32.totalorder %s347, 15
        %s351 = scalar_select %p350, %s347, 15
        %s352 = smul.addr %s351, 2
        %s353 = smul.addr %s349, 32
        %s354 = sadd.s32 %s352, %s353
        %s355 = smul.addr %s354, 8
        %s356 = scalar_lea.vmem %s1, %s355
        %s357 = smul.u32 %s24, 8
        %s358 = ssub.s32 %s357, 1
        %p359 = scmp.gt.s32.totalorder %s358, 0
        %s360 = scalar_select %p359, %s358, 0
      $region40: #{upsample_block.4} parent=31 // pred_fallthru
        _
      // Predicated region
      $region41: #{upsample_block.4} parent=31 // pred_check
        %p361 = pneg %p122
      $region42: #{upsample_block.4} parent=31 // pred_check_branch
        %363 = sbr.rel (%p361) target = $region44
      $region43: #{upsample_block.4} parent=31 // pred_region
        %s364 = sadd.s32 %s24, 1
        %s365 = smul.u32 %s364, 8
        %p366 = scmp.lt.s32.totalorder %s365, 15
        %s367 = scalar_select %p366, %s365, 15
        %p368 = scmp.lt.s32.totalorder %s23, 1
        %s369 = scalar_select %p368, %s23, 1
        %p370 = scmp.lt.s32.totalorder %s367, 15
        %s371 = scalar_select %p370, %s367, 15
        %s372 = smul.addr %s371, 2
        %s373 = smul.addr %s369, 32
        %s374 = sadd.s32 %s372, %s373
        %s375 = smul.addr %s374, 8
        %s376 = scalar_lea.vmem %s2, %s375
        %s377 = sadd.s32 %s24, 1
        %s378 = smul.u32 %s377, 8
        %p379 = scmp.lt.s32.totalorder %s378, 15
        %s380 = scalar_select %p379, %s378, 15
      $region44: #{upsample_block.4} parent=31 // pred_fallthru
        _
    $region32: #{upsample_block.4} parent=5 // pred_fallthru
      _
    %p381 = scmp.le.s32.totalorder 1, %s16
    %p382 = scmp.lt.s32.totalorder %s16, 5
    %p383 = pnand %p381, %p382
    %p384 = pneg %p383
    // Predicated region
    $region45: #{upsample_block.4} parent=5 // pred_check
      _
    $region46: #{upsample_block.4} parent=5 // pred_check_branch
      %386 = sbr.rel (%p383) target = $region48
    $region47: #{upsample_block.4} parent=5 // pred_region
      %s387 = ssub.s32 %s16, 1
      %s388 = smul.u32 8, %s26
      %p389 = scmp.lt.s32.totalorder %s25, 1
      %s390 = scalar_select %p389, %s25, 1
      %p391 = scmp.lt.s32.totalorder %s388, 15
      %s392 = scalar_select %p391, %s388, 15
      %s393 = smul.addr %s392, 2
      %s394 = smul.addr %s390, 32
      %s395 = sadd.s32 %s393, %s394
      %s396 = smul.addr %s395, 8
      %s397 = scalar_lea.vmem %s0, %s396
      %p398 = pneg %p56
      %p399 = pneg %p53
      %s400 = smul.u32 %s26, 8
      %s401 = ssub.s32 %s400, 1
      %p402 = scmp.gt.s32.totalorder %s401, 0
      %s403 = scalar_select %p402, %s401, 0
      %p404 = scmp.lt.s32.totalorder %s25, 1
      %s405 = scalar_select %p404, %s25, 1
      %p406 = scmp.lt.s32.totalorder %s403, 15
      %s407 = scalar_select %p406, %s403, 15
      %s408 = smul.addr %s407, 2
      %s409 = smul.addr %s405, 32
      %s410 = sadd.s32 %s408, %s409
      %s411 = smul.addr %s410, 8
      %s412 = scalar_lea.vmem %s1, %s411
      %p413 = pneg %p92
      %p414 = pneg %p89
      %s415 = sadd.s32 %s26, 1
      %s416 = smul.u32 %s415, 8
      %p417 = scmp.lt.s32.totalorder %s416, 15
      %s418 = scalar_select %p417, %s416, 15
      %p419 = scmp.lt.s32.totalorder %s25, 1
      %s420 = scalar_select %p419, %s25, 1
      %p421 = scmp.lt.s32.totalorder %s418, 15
      %s422 = scalar_select %p421, %s418, 15
      %s423 = smul.addr %s422, 2
      %s424 = smul.addr %s420, 32
      %s425 = sadd.s32 %s423, %s424
      %s426 = smul.addr %s425, 8
      %s427 = scalar_lea.vmem %s2, %s426
      %p428 = pneg %p128
      %p429 = pneg %p125
      %p430 = pneg %p149
      %p431 = pneg %p146
      %p432 = pneg %p170
      %p433 = pneg %p167
      %p434 = pneg %p191
      %p435 = pneg %p188
      %p436 = pneg %p212
      %p437 = pneg %p209
      %p438 = pneg %p240
      %p439 = pneg %p237
      %s440 = smul.u32 8, %s26
      %p441 = scmp.lt.s32.totalorder %s25, 1
      %s442 = scalar_select %p441, %s25, 1
      %p443 = scmp.lt.s32.totalorder %s440, 15
      %s444 = scalar_select %p443, %s440, 15
      %s445 = smul.addr %s444, 2
      %s446 = smul.addr %s442, 32
      %s447 = sadd.s32 %s445, %s446
      %s448 = smul.addr %s447, 8
      %s449 = scalar_lea.vmem %s7, %s448
      %p450 = pneg %p268
      %p451 = pneg %p265
      %p452 = scmp.lt.s32.totalorder %s25, 1
      %s453 = scalar_select %p452, %s25, 1
      %p454 = scmp.lt.s32.totalorder %s26, 1
      %s455 = scalar_select %p454, %s26, 1
      %s456 = smul.addr %s453, 2
      %s457 = sadd.s32 %s455, %s456
      %s458 = scalar_lea.vmem %s8, %s457
      %p459 = pneg %p296
      %p460 = pneg %p293
      %p461 = scmp.lt.s32.totalorder %s25, 1
      %s462 = scalar_select %p461, %s25, 1
      %p463 = scmp.lt.s32.totalorder %s26, 1
      %s464 = scalar_select %p463, %s26, 1
      %s465 = smul.addr %s462, 2
      %s466 = sadd.s32 %s464, %s465
      %s467 = scalar_lea.vmem %s9, %s466
      %s468 = smul.u32 8, %s26
      %p469 = scmp.lt.s32.totalorder %s25, 1
      %s470 = scalar_select %p469, %s25, 1
      %p471 = scmp.lt.s32.totalorder %s468, 15
      %s472 = scalar_select %p471, %s468, 15
      %s473 = smul.addr %s472, 2
      %s474 = smul.addr %s470, 32
      %s475 = sadd.s32 %s473, %s474
      %s476 = smul.addr %s475, 8
      %s477 = scalar_lea.vmem %s0, %s476
      %s478 = smul.u32 8, %s26
      %s479 = smul.u32 %s26, 8
      %s480 = ssub.s32 %s479, 1
      %p481 = scmp.gt.s32.totalorder %s480, 0
      %s482 = scalar_select %p481, %s480, 0
      %p483 = scmp.lt.s32.totalorder %s25, 1
      %s484 = scalar_select %p483, %s25, 1
      %p485 = scmp.lt.s32.totalorder %s482, 15
      %s486 = scalar_select %p485, %s482, 15
      %s487 = smul.addr %s486, 2
      %s488 = smul.addr %s484, 32
      %s489 = sadd.s32 %s487, %s488
      %s490 = smul.addr %s489, 8
      %s491 = scalar_lea.vmem %s1, %s490
      %s492 = smul.u32 %s26, 8
      %s493 = ssub.s32 %s492, 1
      %p494 = scmp.gt.s32.totalorder %s493, 0
      %s495 = scalar_select %p494, %s493, 0
      %s496 = sadd.s32 %s26, 1
      %s497 = smul.u32 %s496, 8
      %p498 = scmp.lt.s32.totalorder %s497, 15
      %s499 = scalar_select %p498, %s497, 15
      %p500 = scmp.lt.s32.totalorder %s25, 1
      %s501 = scalar_select %p500, %s25, 1
      %p502 = scmp.lt.s32.totalorder %s499, 15
      %s503 = scalar_select %p502, %s499, 15
      %s504 = smul.addr %s503, 2
      %s505 = smul.addr %s501, 32
      %s506 = sadd.s32 %s504, %s505
      %s507 = smul.addr %s506, 8
      %s508 = scalar_lea.vmem %s2, %s507
      %s509 = sadd.s32 %s26, 1
      %s510 = smul.u32 %s509, 8
      %p511 = scmp.lt.s32.totalorder %s510, 15
      %s512 = scalar_select %p511, %s510, 15
      %s513 = smul.u32 8, %s26
      %p514 = scmp.lt.s32.totalorder %s25, 1
      %s515 = scalar_select %p514, %s25, 1
      %p516 = scmp.lt.s32.totalorder %s513, 15
      %s517 = scalar_select %p516, %s513, 15
      %s518 = smul.addr %s517, 2
      %s519 = smul.addr %s515, 32
      %s520 = sadd.s32 %s518, %s519
      %s521 = smul.addr %s520, 8
      %s522 = scalar_lea.vmem %s7, %s521
      %s523 = smul.u32 8, %s26
      %p524 = scmp.lt.s32.totalorder %s25, 1
      %s525 = scalar_select %p524, %s25, 1
      %p526 = scmp.lt.s32.totalorder %s26, 1
      %s527 = scalar_select %p526, %s26, 1
      %s528 = smul.addr %s525, 2
      %s529 = sadd.s32 %s527, %s528
      %s530 = scalar_lea.vmem %s8, %s529
      %p531 = scmp.lt.s32.totalorder %s25, 1
      %s532 = scalar_select %p531, %s25, 1
      %p533 = scmp.lt.s32.totalorder %s26, 1
      %s534 = scalar_select %p533, %s26, 1
      %s535 = smul.addr %s532, 2
      %s536 = sadd.s32 %s534, %s535
      %s537 = scalar_lea.vmem %s9, %s536
      %v538 = vld [vmem:[%s477] sm:$0xff]
      %v539 = vld [vmem:[%s477 + $0x8] sm:$0xff]
      %v540 = vld [vmem:[%s477 + $0x10] sm:$0xff]
      %v541 = vld [vmem:[%s477 + $0x18] sm:$0xff]
      %v542 = vld [vmem:[%s477 + $0x20] sm:$0xff]
      %v543 = vld [vmem:[%s477 + $0x28] sm:$0xff]
      %v544 = vld [vmem:[%s477 + $0x30] sm:$0xff]
      %v545 = vld [vmem:[%s477 + $0x38] sm:$0xff]
      %v546 = vld [vmem:[%s477 + $0x40] sm:$0xff]
      %v547 = vld [vmem:[%s477 + $0x48] sm:$0xff]
      %v548 = vld [vmem:[%s477 + $0x50] sm:$0xff]
      %v549 = vld [vmem:[%s477 + $0x58] sm:$0xff]
      %v550 = vld [vmem:[%s477 + $0x60] sm:$0xff]
      %v551 = vld [vmem:[%s477 + $0x68] sm:$0xff]
      %v552 = vld [vmem:[%s477 + $0x70] sm:$0xff]
      %v553 = vld [vmem:[%s477 + $0x78] sm:$0xff]
      %v554 = vld [vmem:[%s491] sm:$0xff]
      %v555 = vld [vmem:[%s491 + $0x8] sm:$0xff]
      %v556 = vld [vmem:[%s508] sm:$0xff]
      %v557 = vld [vmem:[%s508 + $0x8] sm:$0xff]
      %v558 = vld [vmem:[%s5] sm:$0x1]
      %v559 = vld [vmem:[%s6] sm:$0x1]
      %v561 = vperm.slane %v558, 0
      %v563 = vmul.f32 %v538, %v561
      %v564 = vmul.f32 %v539, %v561
      %v565 = vmul.f32 %v540, %v561
      %v566 = vmul.f32 %v541, %v561
      %v567 = vmul.f32 %v542, %v561
      %v568 = vmul.f32 %v543, %v561
      %v569 = vmul.f32 %v544, %v561
      %v570 = vmul.f32 %v545, %v561
      %v571 = vmul.f32 %v546, %v561
      %v572 = vmul.f32 %v547, %v561
      %v573 = vmul.f32 %v548, %v561
      %v574 = vmul.f32 %v549, %v561
      %v575 = vmul.f32 %v550, %v561
      %v576 = vmul.f32 %v551, %v561
      %v577 = vmul.f32 %v552, %v561
      %v578 = vmul.f32 %v553, %v561
      %v580 = vperm.slane %v559, 0
      %v582 = vadd.f32 %v563, %v580
      %v583 = vadd.f32 %v564, %v580
      %v584 = vadd.f32 %v565, %v580
      %v585 = vadd.f32 %v566, %v580
      %v586 = vadd.f32 %v567, %v580
      %v587 = vadd.f32 %v568, %v580
      %v588 = vadd.f32 %v569, %v580
      %v589 = vadd.f32 %v570, %v580
      %v590 = vadd.f32 %v571, %v580
      %v591 = vadd.f32 %v572, %v580
      %v592 = vadd.f32 %v573, %v580
      %v593 = vadd.f32 %v574, %v580
      %v594 = vadd.f32 %v575, %v580
      %v595 = vadd.f32 %v576, %v580
      %v596 = vadd.f32 %v577, %v580
      %v597 = vadd.f32 %v578, %v580
      %v598 = vmax.f32 %v582, 0.0
      %v599 = vmax.f32 %v583, 0.0
      %v600 = vmax.f32 %v584, 0.0
      %v601 = vmax.f32 %v585, 0.0
      %v602 = vmax.f32 %v586, 0.0
      %v603 = vmax.f32 %v587, 0.0
      %v604 = vmax.f32 %v588, 0.0
      %v605 = vmax.f32 %v589, 0.0
      %v606 = vmax.f32 %v590, 0.0
      %v607 = vmax.f32 %v591, 0.0
      %v608 = vmax.f32 %v592, 0.0
      %v609 = vmax.f32 %v593, 0.0
      %v610 = vmax.f32 %v594, 0.0
      %v611 = vmax.f32 %v595, 0.0
      %v612 = vmax.f32 %v596, 0.0
      %v613 = vmax.f32 %v597, 0.0
      %v614 = vmul.f32 %v554, %v561
      %v615 = vmul.f32 %v555, %v561
      %v616 = vadd.f32 %v614, %v580
      %v617 = vadd.f32 %v615, %v580
      %v618 = vmax.f32 %v616, 0.0
      %v619 = vmax.f32 %v617, 0.0
      %v620 = vmul.f32 %v556, %v561
      %v621 = vmul.f32 %v557, %v561
      %v622 = vadd.f32 %v620, %v580
      %v623 = vadd.f32 %v621, %v580
      %v624 = vmax.f32 %v622, 0.0
      %v625 = vmax.f32 %v623, 0.0
      %p626 = scmp.gt.s32.totalorder %s26, 0
      %s627 = scalar_select %p626, 1, 0
      %s628 = scvt.s32.f32 %s627
      %v629 = vstv %s628
      %v630 = vmul.f32 %v618, %v629
      %v631 = vmul.f32 %v619, %v629
      %p632 = scmp.lt.s32.totalorder %s26, 1
      %s633 = scalar_select %p632, 1, 0
      %s634 = scvt.s32.f32 %s633
      %v635 = vstv %s634
      %v636 = vmul.f32 %v624, %v635
      %v637 = vmul.f32 %v625, %v635
      %vm658 = vcmask 1040384
      %v659 = vrot.slane %v630, 7
      %v660 = vrot.slane %v631, 7
      %v661 = vsel %vm658, %v659, %v660
      %v662 = vrot.slane %v598, 7
      %v663 = vrot.slane %v599, 7
      %v664 = vsel %vm658, %v662, %v663
      %v665 = vrot.slane %v600, 7
      %v666 = vrot.slane %v601, 7
      %v667 = vsel %vm658, %v665, %v666
      %v668 = vrot.slane %v602, 7
      %v669 = vrot.slane %v603, 7
      %v670 = vsel %vm658, %v668, %v669
      %v671 = vrot.slane %v604, 7
      %v672 = vrot.slane %v605, 7
      %v673 = vsel %vm658, %v671, %v672
      %v674 = vrot.slane %v606, 7
      %v675 = vrot.slane %v607, 7
      %v676 = vsel %vm658, %v674, %v675
      %v677 = vrot.slane %v608, 7
      %v678 = vrot.slane %v609, 7
      %v679 = vsel %vm658, %v677, %v678
      %v680 = vrot.slane %v610, 7
      %v681 = vrot.slane %v611, 7
      %v682 = vsel %vm658, %v680, %v681
      %v683 = vrot.slane %v612, 7
      %v684 = vrot.slane %v613, 7
      %v685 = vsel %vm658, %v683, %v684
      %v686 = vrot.slane %v636, 7
      %v687 = vrot.slane %v637, 7
      %v688 = vsel %vm658, %v686, %v687
      %v709 = vsel %vm658, 0.0, %v659
      %v710 = vsel %vm658, 0.0, %v662
      %v711 = vsel %vm658, 0.0, %v665
      %v712 = vsel %vm658, 0.0, %v668
      %v713 = vsel %vm658, 0.0, %v671
      %v714 = vsel %vm658, 0.0, %v674
      %v715 = vsel %vm658, 0.0, %v677
      %v716 = vsel %vm658, 0.0, %v680
      %v717 = vsel %vm658, 0.0, %v683
      %v718 = vsel %vm658, 0.0, %v686
      %v719 = vsel %vm658, %v660, 0.0
      %v720 = vsel %vm658, %v663, 0.0
      %v721 = vsel %vm658, %v666, 0.0
      %v722 = vsel %vm658, %v669, 0.0
      %v723 = vsel %vm658, %v672, 0.0
      %v724 = vsel %vm658, %v675, 0.0
      %v725 = vsel %vm658, %v678, 0.0
      %v726 = vsel %vm658, %v681, 0.0
      %v727 = vsel %vm658, %v684, 0.0
      %v728 = vsel %vm658, %v687, 0.0
      %v729 = vld [vmem:[%s3] sm:$0xff]
      %vm746 = vcmask 1046528
      %v747 = vrot.slane %v709, 1
      %v748 = vrot.slane %v661, 1
      %v749 = vsel %vm746, %v747, %v748
      %v750 = vrot.slane %v719, 1
      %v751 = vsel %vm746, %v748, %v750
      %v752 = vrot.slane %v710, 1
      %v753 = vrot.slane %v664, 1
      %v754 = vsel %vm746, %v752, %v753
      %v755 = vrot.slane %v720, 1
      %v756 = vsel %vm746, %v753, %v755
      %v757 = vrot.slane %v711, 1
      %v758 = vrot.slane %v667, 1
      %v759 = vsel %vm746, %v757, %v758
      %v760 = vrot.slane %v721, 1
      %v761 = vsel %vm746, %v758, %v760
      %v762 = vrot.slane %v712, 1
      %v763 = vrot.slane %v670, 1
      %v764 = vsel %vm746, %v762, %v763
      %v765 = vrot.slane %v722, 1
      %v766 = vsel %vm746, %v763, %v765
      %v767 = vrot.slane %v713, 1
      %v768 = vrot.slane %v673, 1
      %v769 = vsel %vm746, %v767, %v768
      %v770 = vrot.slane %v723, 1
      %v771 = vsel %vm746, %v768, %v770
      %v772 = vrot.slane %v714, 1
      %v773 = vrot.slane %v676, 1
      %v774 = vsel %vm746, %v772, %v773
      %v775 = vrot.slane %v724, 1
      %v776 = vsel %vm746, %v773, %v775
      %v777 = vrot.slane %v715, 1
      %v778 = vrot.slane %v679, 1
      %v779 = vsel %vm746, %v777, %v778
      %v780 = vrot.slane %v725, 1
      %v781 = vsel %vm746, %v778, %v780
      %v782 = vrot.slane %v716, 1
      %v783 = vrot.slane %v682, 1
      %v784 = vsel %vm746, %v782, %v783
      %v785 = vrot.slane %v726, 1
      %v786 = vsel %vm746, %v783, %v785
      %s787 = scalar_lea.vmem %s3, 8
      %v788 = vld [vmem:[%s787] sm:$0xff]
      %vm789 = vcmask 64512
      %v790 = vsel %vm789, %v749, 0
      %v792 = vsel %vm789, %v751, 0
      %v794 = vsel %vm789, %v754, 0
      %v796 = vsel %vm789, %v756, 0
      %v798 = vsel %vm789, %v759, 0
      %v800 = vsel %vm789, %v761, 0
      %v802 = vsel %vm789, %v764, 0
      %v804 = vsel %vm789, %v766, 0
      %v806 = vsel %vm789, %v769, 0
      %v808 = vsel %vm789, %v771, 0
      %v810 = vsel %vm789, %v774, 0
      %v812 = vsel %vm789, %v776, 0
      %v814 = vsel %vm789, %v779, 0
      %v816 = vsel %vm789, %v781, 0
      %v818 = vsel %vm789, %v784, 0
      %v820 = vsel %vm789, %v786, 0
      %822 = vmatpush.msra.mxu0 0.0
      %823 = vmatpush.msra.mxu0 0.0
      %824 = vmatpush.msra.mxu0 0.0
      %825 = vmatpush.msra.mxu0 0.0
      %826 = vmatpush.msra.mxu0 0.0
      %827 = vmatpush.msra.mxu0 0.0
      %828 = vmatpush.msra.mxu0 0.0
      %829 = vmatpush.msra.mxu0 0.0
      %830 = vmatpush.msra.mxu0 0.0
      %831 = vmatpush.msra.mxu0 0.0
      %832 = vmatpush.msra.mxu0 0.0
      %833 = vmatpush.msra.mxu0 0.0
      %834 = vmatpush.msra.mxu0 0.0
      %835 = vmatpush.msra.mxu0 0.0
      %836 = vmatpush.msra.mxu0 0.0
      %837 = vmatpush.msra.mxu0 %v788
      %838 = vmatmul.f32.gmra.mxu0 %v790
      %v839 = vpop.f32.mrf.mxu0
      %v840 = vadd.f32 0.0, %v839
      %841 = vmatmul.f32.gmra.mxu0 %v792
      %v842 = vpop.f32.mrf.mxu0
      %v843 = vadd.f32 0.0, %v842
      %844 = vmatmul.f32.gmra.mxu0 %v794
      %v845 = vpop.f32.mrf.mxu0
      %v846 = vadd.f32 0.0, %v845
      %847 = vmatmul.f32.gmra.mxu0 %v796
      %v848 = vpop.f32.mrf.mxu0
      %v849 = vadd.f32 0.0, %v848
      %850 = vmatmul.f32.gmra.mxu0 %v798
      %v851 = vpop.f32.mrf.mxu0
      %v852 = vadd.f32 0.0, %v851
      %853 = vmatmul.f32.gmra.mxu0 %v800
      %v854 = vpop.f32.mrf.mxu0
      %v855 = vadd.f32 0.0, %v854
      %856 = vmatmul.f32.gmra.mxu0 %v802
      %v857 = vpop.f32.mrf.mxu0
      %v858 = vadd.f32 0.0, %v857
      %859 = vmatmul.f32.gmra.mxu0 %v804
      %v860 = vpop.f32.mrf.mxu0
      %v861 = vadd.f32 0.0, %v860
      %862 = vmatmul.f32.gmra.mxu0 %v806
      %v863 = vpop.f32.mrf.mxu0
      %v864 = vadd.f32 0.0, %v863
      %865 = vmatmul.f32.gmra.mxu0 %v808
      %v866 = vpop.f32.mrf.mxu0
      %v867 = vadd.f32 0.0, %v866
      %868 = vmatmul.f32.gmra.mxu0 %v810
      %v869 = vpop.f32.mrf.mxu0
      %v870 = vadd.f32 0.0, %v869
      %871 = vmatmul.f32.gmra.mxu0 %v812
      %v872 = vpop.f32.mrf.mxu0
      %v873 = vadd.f32 0.0, %v872
      %874 = vmatmul.f32.gmra.mxu0 %v814
      %v875 = vpop.f32.mrf.mxu0
      %v876 = vadd.f32 0.0, %v875
      %877 = vmatmul.f32.gmra.mxu0 %v816
      %v878 = vpop.f32.mrf.mxu0
      %v879 = vadd.f32 0.0, %v878
      %880 = vmatmul.f32.gmra.mxu0 %v818
      %v881 = vpop.f32.mrf.mxu0
      %v882 = vadd.f32 0.0, %v881
      %883 = vmatmul.f32.gmra.mxu0 %v820
      %v884 = vpop.f32.mrf.mxu0
      %v885 = vadd.f32 0.0, %v884
      %886 = vdwg.mxu0
      %v887 = vsel %vm789, %v709, 0
      %v889 = vsel %vm789, %v661, 0
      %v891 = vsel %vm789, %v710, 0
      %v893 = vsel %vm789, %v664, 0
      %v895 = vsel %vm789, %v711, 0
      %v897 = vsel %vm789, %v667, 0
      %v899 = vsel %vm789, %v712, 0
      %v901 = vsel %vm789, %v670, 0
      %v903 = vsel %vm789, %v713, 0
      %v905 = vsel %vm789, %v673, 0
      %v907 = vsel %vm789, %v714, 0
      %v909 = vsel %vm789, %v676, 0
      %v911 = vsel %vm789, %v715, 0
      %v913 = vsel %vm789, %v679, 0
      %v915 = vsel %vm789, %v716, 0
      %v917 = vsel %vm789, %v682, 0
      %919 = vmatpush.msra.mxu0 0.0
      %920 = vmatpush.msra.mxu0 0.0
      %921 = vmatpush.msra.mxu0 0.0
      %922 = vmatpush.msra.mxu0 0.0
      %923 = vmatpush.msra.mxu0 0.0
      %924 = vmatpush.msra.mxu0 0.0
      %925 = vmatpush.msra.mxu0 0.0
      %926 = vmatpush.msra.mxu0 0.0
      %927 = vmatpush.msra.mxu0 0.0
      %928 = vmatpush.msra.mxu0 0.0
      %929 = vmatpush.msra.mxu0 0.0
      %930 = vmatpush.msra.mxu0 0.0
      %931 = vmatpush.msra.mxu0 0.0
      %932 = vmatpush.msra.mxu0 0.0
      %933 = vmatpush.msra.mxu0 0.0
      %934 = vmatpush.msra.mxu0 %v729
      %935 = vmatmul.f32.gmra.mxu0 %v887
      %v936 = vpop.f32.mrf.mxu0
      %v937 = vadd.f32 %v840, %v936
      %938 = vmatmul.f32.gmra.mxu0 %v889
      %v939 = vpop.f32.mrf.mxu0
      %v940 = vadd.f32 %v843, %v939
      %941 = vmatmul.f32.gmra.mxu0 %v891
      %v942 = vpop.f32.mrf.mxu0
      %v943 = vadd.f32 %v846, %v942
      %944 = vmatmul.f32.gmra.mxu0 %v893
      %v945 = vpop.f32.mrf.mxu0
      %v946 = vadd.f32 %v849, %v945
      %947 = vmatmul.f32.gmra.mxu0 %v895
      %v948 = vpop.f32.mrf.mxu0
      %v949 = vadd.f32 %v852, %v948
      %950 = vmatmul.f32.gmra.mxu0 %v897
      %v951 = vpop.f32.mrf.mxu0
      %v952 = vadd.f32 %v855, %v951
      %953 = vmatmul.f32.gmra.mxu0 %v899
      %v954 = vpop.f32.mrf.mxu0
      %v955 = vadd.f32 %v858, %v954
      %956 = vmatmul.f32.gmra.mxu0 %v901
      %v957 = vpop.f32.mrf.mxu0
      %v958 = vadd.f32 %v861, %v957
      %959 = vmatmul.f32.gmra.mxu0 %v903
      %v960 = vpop.f32.mrf.mxu0
      %v961 = vadd.f32 %v864, %v960
      %962 = vmatmul.f32.gmra.mxu0 %v905
      %v963 = vpop.f32.mrf.mxu0
      %v964 = vadd.f32 %v867, %v963
      %965 = vmatmul.f32.gmra.mxu0 %v907
      %v966 = vpop.f32.mrf.mxu0
      %v967 = vadd.f32 %v870, %v966
      %968 = vmatmul.f32.gmra.mxu0 %v909
      %v969 = vpop.f32.mrf.mxu0
      %v970 = vadd.f32 %v873, %v969
      %971 = vmatmul.f32.gmra.mxu0 %v911
      %v972 = vpop.f32.mrf.mxu0
      %v973 = vadd.f32 %v876, %v972
      %974 = vmatmul.f32.gmra.mxu0 %v913
      %v975 = vpop.f32.mrf.mxu0
      %v976 = vadd.f32 %v879, %v975
      %977 = vmatmul.f32.gmra.mxu0 %v915
      %v978 = vpop.f32.mrf.mxu0
      %v979 = vadd.f32 %v882, %v978
      %980 = vmatmul.f32.gmra.mxu0 %v917
      %v981 = vpop.f32.mrf.mxu0
      %v982 = vadd.f32 %v885, %v981
      %983 = vdwg.mxu0
      %vm984 = vcmask 1045504
      %v985 = vrot.slane %v709, 2
      %v986 = vrot.slane %v661, 2
      %v987 = vsel %vm984, %v985, %v986
      %v988 = vrot.slane %v719, 2
      %v989 = vsel %vm984, %v986, %v988
      %v990 = vrot.slane %v710, 2
      %v991 = vrot.slane %v664, 2
      %v992 = vsel %vm984, %v990, %v991
      %v993 = vrot.slane %v720, 2
      %v994 = vsel %vm984, %v991, %v993
      %v995 = vrot.slane %v711, 2
      %v996 = vrot.slane %v667, 2
      %v997 = vsel %vm984, %v995, %v996
      %v998 = vrot.slane %v721, 2
      %v999 = vsel %vm984, %v996, %v998
      %v1000 = vrot.slane %v712, 2
      %v1001 = vrot.slane %v670, 2
      %v1002 = vsel %vm984, %v1000, %v1001
      %v1003 = vrot.slane %v722, 2
      %v1004 = vsel %vm984, %v1001, %v1003
      %v1005 = vrot.slane %v713, 2
      %v1006 = vrot.slane %v673, 2
      %v1007 = vsel %vm984, %v1005, %v1006
      %v1008 = vrot.slane %v723, 2
      %v1009 = vsel %vm984, %v1006, %v1008
      %v1010 = vrot.slane %v714, 2
      %v1011 = vrot.slane %v676, 2
      %v1012 = vsel %vm984, %v1010, %v1011
      %v1013 = vrot.slane %v724, 2
      %v1014 = vsel %vm984, %v1011, %v1013
      %v1015 = vrot.slane %v715, 2
      %v1016 = vrot.slane %v679, 2
      %v1017 = vsel %vm984, %v1015, %v1016
      %v1018 = vrot.slane %v725, 2
      %v1019 = vsel %vm984, %v1016, %v1018
      %v1020 = vrot.slane %v716, 2
      %v1021 = vrot.slane %v682, 2
      %v1022 = vsel %vm984, %v1020, %v1021
      %v1023 = vrot.slane %v726, 2
      %v1024 = vsel %vm984, %v1021, %v1023
      %s1025 = scalar_lea.vmem %s3, 16
      %v1026 = vld [vmem:[%s1025] sm:$0xff]
      %v1027 = vsel %vm789, %v987, 0
      %v1029 = vsel %vm789, %v989, 0
      %v1031 = vsel %vm789, %v992, 0
      %v1033 = vsel %vm789, %v994, 0
      %v1035 = vsel %vm789, %v997, 0
      %v1037 = vsel %vm789, %v999, 0
      %v1039 = vsel %vm789, %v1002, 0
      %v1041 = vsel %vm789, %v1004, 0
      %v1043 = vsel %vm789, %v1007, 0
      %v1045 = vsel %vm789, %v1009, 0
      %v1047 = vsel %vm789, %v1012, 0
      %v1049 = vsel %vm789, %v1014, 0
      %v1051 = vsel %vm789, %v1017, 0
      %v1053 = vsel %vm789, %v1019, 0
      %v1055 = vsel %vm789, %v1022, 0
      %v1057 = vsel %vm789, %v1024, 0
      %1059 = vmatpush.msra.mxu0 0.0
      %1060 = vmatpush.msra.mxu0 0.0
      %1061 = vmatpush.msra.mxu0 0.0
      %1062 = vmatpush.msra.mxu0 0.0
      %1063 = vmatpush.msra.mxu0 0.0
      %1064 = vmatpush.msra.mxu0 0.0
      %1065 = vmatpush.msra.mxu0 0.0
      %1066 = vmatpush.msra.mxu0 0.0
      %1067 = vmatpush.msra.mxu0 0.0
      %1068 = vmatpush.msra.mxu0 0.0
      %1069 = vmatpush.msra.mxu0 0.0
      %1070 = vmatpush.msra.mxu0 0.0
      %1071 = vmatpush.msra.mxu0 0.0
      %1072 = vmatpush.msra.mxu0 0.0
      %1073 = vmatpush.msra.mxu0 0.0
      %1074 = vmatpush.msra.mxu0 %v1026
      %1075 = vmatmul.f32.gmra.mxu0 %v1027
      %v1076 = vpop.f32.mrf.mxu0
      %v1077 = vadd.f32 0.0, %v1076
      %1078 = vmatmul.f32.gmra.mxu0 %v1029
      %v1079 = vpop.f32.mrf.mxu0
      %v1080 = vadd.f32 0.0, %v1079
      %1081 = vmatmul.f32.gmra.mxu0 %v1031
      %v1082 = vpop.f32.mrf.mxu0
      %v1083 = vadd.f32 0.0, %v1082
      %1084 = vmatmul.f32.gmra.mxu0 %v1033
      %v1085 = vpop.f32.mrf.mxu0
      %v1086 = vadd.f32 0.0, %v1085
      %1087 = vmatmul.f32.gmra.mxu0 %v1035
      %v1088 = vpop.f32.mrf.mxu0
      %v1089 = vadd.f32 0.0, %v1088
      %1090 = vmatmul.f32.gmra.mxu0 %v1037
      %v1091 = vpop.f32.mrf.mxu0
      %v1092 = vadd.f32 0.0, %v1091
      %1093 = vmatmul.f32.gmra.mxu0 %v1039
      %v1094 = vpop.f32.mrf.mxu0
      %v1095 = vadd.f32 0.0, %v1094
      %1096 = vmatmul.f32.gmra.mxu0 %v1041
      %v1097 = vpop.f32.mrf.mxu0
      %v1098 = vadd.f32 0.0, %v1097
      %1099 = vmatmul.f32.gmra.mxu0 %v1043
      %v1100 = vpop.f32.mrf.mxu0
      %v1101 = vadd.f32 0.0, %v1100
      %1102 = vmatmul.f32.gmra.mxu0 %v1045
      %v1103 = vpop.f32.mrf.mxu0
      %v1104 = vadd.f32 0.0, %v1103
      %1105 = vmatmul.f32.gmra.mxu0 %v1047
      %v1106 = vpop.f32.mrf.mxu0
      %v1107 = vadd.f32 0.0, %v1106
      %1108 = vmatmul.f32.gmra.mxu0 %v1049
      %v1109 = vpop.f32.mrf.mxu0
      %v1110 = vadd.f32 0.0, %v1109
      %1111 = vmatmul.f32.gmra.mxu0 %v1051
      %v1112 = vpop.f32.mrf.mxu0
      %v1113 = vadd.f32 0.0, %v1112
      %1114 = vmatmul.f32.gmra.mxu0 %v1053
      %v1115 = vpop.f32.mrf.mxu0
      %v1116 = vadd.f32 0.0, %v1115
      %1117 = vmatmul.f32.gmra.mxu0 %v1055
      %v1118 = vpop.f32.mrf.mxu0
      %v1119 = vadd.f32 0.0, %v1118
      %1120 = vmatmul.f32.gmra.mxu0 %v1057
      %v1121 = vpop.f32.mrf.mxu0
      %v1122 = vadd.f32 0.0, %v1121
      %1123 = vdwg.mxu0
      %v1124 = vadd.f32 %v937, %v1077
      %v1125 = vadd.f32 %v940, %v1080
      %v1126 = vadd.f32 %v943, %v1083
      %v1127 = vadd.f32 %v946, %v1086
      %v1128 = vadd.f32 %v949, %v1089
      %v1129 = vadd.f32 %v952, %v1092
      %v1130 = vadd.f32 %v955, %v1095
      %v1131 = vadd.f32 %v958, %v1098
      %v1132 = vadd.f32 %v961, %v1101
      %v1133 = vadd.f32 %v964, %v1104
      %v1134 = vadd.f32 %v967, %v1107
      %v1135 = vadd.f32 %v970, %v1110
      %v1136 = vadd.f32 %v973, %v1113
      %v1137 = vadd.f32 %v976, %v1116
      %v1138 = vadd.f32 %v979, %v1119
      %v1139 = vadd.f32 %v982, %v1122
      %s1140 = scalar_lea.vmem %s3, 24
      %v1141 = vld [vmem:[%s1140] sm:$0xff]
      %v1143 = vsel %vm789, %v717, 0
      %v1145 = vsel %vm789, %v685, 0
      %1147 = vmatpush.msra.mxu0 0.0
      %1148 = vmatpush.msra.mxu0 0.0
      %1149 = vmatpush.msra.mxu0 0.0
      %1150 = vmatpush.msra.mxu0 0.0
      %1151 = vmatpush.msra.mxu0 0.0
      %1152 = vmatpush.msra.mxu0 0.0
      %1153 = vmatpush.msra.mxu0 0.0
      %1154 = vmatpush.msra.mxu0 0.0
      %1155 = vmatpush.msra.mxu0 0.0
      %1156 = vmatpush.msra.mxu0 0.0
      %1157 = vmatpush.msra.mxu0 0.0
      %1158 = vmatpush.msra.mxu0 0.0
      %1159 = vmatpush.msra.mxu0 0.0
      %1160 = vmatpush.msra.mxu0 0.0
      %1161 = vmatpush.msra.mxu0 0.0
      %1162 = vmatpush.msra.mxu0 %v1141
      %1163 = vmatmul.f32.gmra.mxu0 %v891
      %v1164 = vpop.f32.mrf.mxu0
      %v1165 = vadd.f32 0.0, %v1164
      %1166 = vmatmul.f32.gmra.mxu0 %v893
      %v1167 = vpop.f32.mrf.mxu0
      %v1168 = vadd.f32 0.0, %v1167
      %1169 = vmatmul.f32.gmra.mxu0 %v895
      %v1170 = vpop.f32.mrf.mxu0
      %v1171 = vadd.f32 0.0, %v1170
      %1172 = vmatmul.f32.gmra.mxu0 %v897
      %v1173 = vpop.f32.mrf.mxu0
      %v1174 = vadd.f32 0.0, %v1173
      %1175 = vmatmul.f32.gmra.mxu0 %v899
      %v1176 = vpop.f32.mrf.mxu0
      %v1177 = vadd.f32 0.0, %v1176
      %1178 = vmatmul.f32.gmra.mxu0 %v901
      %v1179 = vpop.f32.mrf.mxu0
      %v1180 = vadd.f32 0.0, %v1179
      %1181 = vmatmul.f32.gmra.mxu0 %v903
      %v1182 = vpop.f32.mrf.mxu0
      %v1183 = vadd.f32 0.0, %v1182
      %1184 = vmatmul.f32.gmra.mxu0 %v905
      %v1185 = vpop.f32.mrf.mxu0
      %v1186 = vadd.f32 0.0, %v1185
      %1187 = vmatmul.f32.gmra.mxu0 %v907
      %v1188 = vpop.f32.mrf.mxu0
      %v1189 = vadd.f32 0.0, %v1188
      %1190 = vmatmul.f32.gmra.mxu0 %v909
      %v1191 = vpop.f32.mrf.mxu0
      %v1192 = vadd.f32 0.0, %v1191
      %1193 = vmatmul.f32.gmra.mxu0 %v911
      %v1194 = vpop.f32.mrf.mxu0
      %v1195 = vadd.f32 0.0, %v1194
      %1196 = vmatmul.f32.gmra.mxu0 %v913
      %v1197 = vpop.f32.mrf.mxu0
      %v1198 = vadd.f32 0.0, %v1197
      %1199 = vmatmul.f32.gmra.mxu0 %v915
      %v1200 = vpop.f32.mrf.mxu0
      %v1201 = vadd.f32 0.0, %v1200
      %1202 = vmatmul.f32.gmra.mxu0 %v917
      %v1203 = vpop.f32.mrf.mxu0
      %v1204 = vadd.f32 0.0, %v1203
      %1205 = vmatmul.f32.gmra.mxu0 %v1143
      %v1206 = vpop.f32.mrf.mxu0
      %v1207 = vadd.f32 0.0, %v1206
      %1208 = vmatmul.f32.gmra.mxu0 %v1145
      %v1209 = vpop.f32.mrf.mxu0
      %v1210 = vadd.f32 0.0, %v1209
      %1211 = vdwg.mxu0
      %v1212 = vadd.f32 %v1124, %v1165
      %v1213 = vadd.f32 %v1125, %v1168
      %v1214 = vadd.f32 %v1126, %v1171
      %v1215 = vadd.f32 %v1127, %v1174
      %v1216 = vadd.f32 %v1128, %v1177
      %v1217 = vadd.f32 %v1129, %v1180
      %v1218 = vadd.f32 %v1130, %v1183
      %v1219 = vadd.f32 %v1131, %v1186
      %v1220 = vadd.f32 %v1132, %v1189
      %v1221 = vadd.f32 %v1133, %v1192
      %v1222 = vadd.f32 %v1134, %v1195
      %v1223 = vadd.f32 %v1135, %v1198
      %v1224 = vadd.f32 %v1136, %v1201
      %v1225 = vadd.f32 %v1137, %v1204
      %v1226 = vadd.f32 %v1138, %v1207
      %v1227 = vadd.f32 %v1139, %v1210
      %v1229 = vrot.slane %v717, 1
      %v1230 = vrot.slane %v685, 1
      %v1231 = vsel %vm746, %v1229, %v1230
      %v1232 = vrot.slane %v727, 1
      %v1233 = vsel %vm746, %v1230, %v1232
      %s1234 = scalar_lea.vmem %s3, 32
      %v1235 = vld [vmem:[%s1234] sm:$0xff]
      %v1236 = vsel %vm789, %v1231, 0
      %v1238 = vsel %vm789, %v1233, 0
      %1240 = vmatpush.msra.mxu0 0.0
      %1241 = vmatpush.msra.mxu0 0.0
      %1242 = vmatpush.msra.mxu0 0.0
      %1243 = vmatpush.msra.mxu0 0.0
      %1244 = vmatpush.msra.mxu0 0.0
      %1245 = vmatpush.msra.mxu0 0.0
      %1246 = vmatpush.msra.mxu0 0.0
      %1247 = vmatpush.msra.mxu0 0.0
      %1248 = vmatpush.msra.mxu0 0.0
      %1249 = vmatpush.msra.mxu0 0.0
      %1250 = vmatpush.msra.mxu0 0.0
      %1251 = vmatpush.msra.mxu0 0.0
      %1252 = vmatpush.msra.mxu0 0.0
      %1253 = vmatpush.msra.mxu0 0.0
      %1254 = vmatpush.msra.mxu0 0.0
      %1255 = vmatpush.msra.mxu0 %v1235
      %1256 = vmatmul.f32.gmra.mxu0 %v794
      %v1257 = vpop.f32.mrf.mxu0
      %v1258 = vadd.f32 0.0, %v1257
      %1259 = vmatmul.f32.gmra.mxu0 %v796
      %v1260 = vpop.f32.mrf.mxu0
      %v1261 = vadd.f32 0.0, %v1260
      %1262 = vmatmul.f32.gmra.mxu0 %v798
      %v1263 = vpop.f32.mrf.mxu0
      %v1264 = vadd.f32 0.0, %v1263
      %1265 = vmatmul.f32.gmra.mxu0 %v800
      %v1266 = vpop.f32.mrf.mxu0
      %v1267 = vadd.f32 0.0, %v1266
      %1268 = vmatmul.f32.gmra.mxu0 %v802
      %v1269 = vpop.f32.mrf.mxu0
      %v1270 = vadd.f32 0.0, %v1269
      %1271 = vmatmul.f32.gmra.mxu0 %v804
      %v1272 = vpop.f32.mrf.mxu0
      %v1273 = vadd.f32 0.0, %v1272
      %1274 = vmatmul.f32.gmra.mxu0 %v806
      %v1275 = vpop.f32.mrf.mxu0
      %v1276 = vadd.f32 0.0, %v1275
      %1277 = vmatmul.f32.gmra.mxu0 %v808
      %v1278 = vpop.f32.mrf.mxu0
      %v1279 = vadd.f32 0.0, %v1278
      %1280 = vmatmul.f32.gmra.mxu0 %v810
      %v1281 = vpop.f32.mrf.mxu0
      %v1282 = vadd.f32 0.0, %v1281
      %1283 = vmatmul.f32.gmra.mxu0 %v812
      %v1284 = vpop.f32.mrf.mxu0
      %v1285 = vadd.f32 0.0, %v1284
      %1286 = vmatmul.f32.gmra.mxu0 %v814
      %v1287 = vpop.f32.mrf.mxu0
      %v1288 = vadd.f32 0.0, %v1287
      %1289 = vmatmul.f32.gmra.mxu0 %v816
      %v1290 = vpop.f32.mrf.mxu0
      %v1291 = vadd.f32 0.0, %v1290
      %1292 = vmatmul.f32.gmra.mxu0 %v818
      %v1293 = vpop.f32.mrf.mxu0
      %v1294 = vadd.f32 0.0, %v1293
      %1295 = vmatmul.f32.gmra.mxu0 %v820
      %v1296 = vpop.f32.mrf.mxu0
      %v1297 = vadd.f32 0.0, %v1296
      %1298 = vmatmul.f32.gmra.mxu0 %v1236
      %v1299 = vpop.f32.mrf.mxu0
      %v1300 = vadd.f32 0.0, %v1299
      %1301 = vmatmul.f32.gmra.mxu0 %v1238
      %v1302 = vpop.f32.mrf.mxu0
      %v1303 = vadd.f32 0.0, %v1302
      %1304 = vdwg.mxu0
      %v1305 = vadd.f32 %v1212, %v1258
      %v1306 = vadd.f32 %v1213, %v1261
      %v1307 = vadd.f32 %v1214, %v1264
      %v1308 = vadd.f32 %v1215, %v1267
      %v1309 = vadd.f32 %v1216, %v1270
      %v1310 = vadd.f32 %v1217, %v1273
      %v1311 = vadd.f32 %v1218, %v1276
      %v1312 = vadd.f32 %v1219, %v1279
      %v1313 = vadd.f32 %v1220, %v1282
      %v1314 = vadd.f32 %v1221, %v1285
      %v1315 = vadd.f32 %v1222, %v1288
      %v1316 = vadd.f32 %v1223, %v1291
      %v1317 = vadd.f32 %v1224, %v1294
      %v1318 = vadd.f32 %v1225, %v1297
      %v1319 = vadd.f32 %v1226, %v1300
      %v1320 = vadd.f32 %v1227, %v1303
      %v1321 = vrot.slane %v717, 2
      %v1322 = vrot.slane %v685, 2
      %v1323 = vsel %vm984, %v1321, %v1322
      %v1324 = vrot.slane %v727, 2
      %v1325 = vsel %vm984, %v1322, %v1324
      %s1326 = scalar_lea.vmem %s3, 40
      %v1327 = vld [vmem:[%s1326] sm:$0xff]
      %v1328 = vsel %vm789, %v1323, 0
      %v1330 = vsel %vm789, %v1325, 0
      %1332 = vmatpush.msra.mxu0 0.0
      %1333 = vmatpush.msra.mxu0 0.0
      %1334 = vmatpush.msra.mxu0 0.0
      %1335 = vmatpush.msra.mxu0 0.0
      %1336 = vmatpush.msra.mxu0 0.0
      %1337 = vmatpush.msra.mxu0 0.0
      %1338 = vmatpush.msra.mxu0 0.0
      %1339 = vmatpush.msra.mxu0 0.0
      %1340 = vmatpush.msra.mxu0 0.0
      %1341 = vmatpush.msra.mxu0 0.0
      %1342 = vmatpush.msra.mxu0 0.0
      %1343 = vmatpush.msra.mxu0 0.0
      %1344 = vmatpush.msra.mxu0 0.0
      %1345 = vmatpush.msra.mxu0 0.0
      %1346 = vmatpush.msra.mxu0 0.0
      %1347 = vmatpush.msra.mxu0 %v1327
      %1348 = vmatmul.f32.gmra.mxu0 %v1031
      %v1349 = vpop.f32.mrf.mxu0
      %v1350 = vadd.f32 0.0, %v1349
      %1351 = vmatmul.f32.gmra.mxu0 %v1033
      %v1352 = vpop.f32.mrf.mxu0
      %v1353 = vadd.f32 0.0, %v1352
      %1354 = vmatmul.f32.gmra.mxu0 %v1035
      %v1355 = vpop.f32.mrf.mxu0
      %v1356 = vadd.f32 0.0, %v1355
      %1357 = vmatmul.f32.gmra.mxu0 %v1037
      %v1358 = vpop.f32.mrf.mxu0
      %v1359 = vadd.f32 0.0, %v1358
      %1360 = vmatmul.f32.gmra.mxu0 %v1039
      %v1361 = vpop.f32.mrf.mxu0
      %v1362 = vadd.f32 0.0, %v1361
      %1363 = vmatmul.f32.gmra.mxu0 %v1041
      %v1364 = vpop.f32.mrf.mxu0
      %v1365 = vadd.f32 0.0, %v1364
      %1366 = vmatmul.f32.gmra.mxu0 %v1043
      %v1367 = vpop.f32.mrf.mxu0
      %v1368 = vadd.f32 0.0, %v1367
      %1369 = vmatmul.f32.gmra.mxu0 %v1045
      %v1370 = vpop.f32.mrf.mxu0
      %v1371 = vadd.f32 0.0, %v1370
      %1372 = vmatmul.f32.gmra.mxu0 %v1047
      %v1373 = vpop.f32.mrf.mxu0
      %v1374 = vadd.f32 0.0, %v1373
      %1375 = vmatmul.f32.gmra.mxu0 %v1049
      %v1376 = vpop.f32.mrf.mxu0
      %v1377 = vadd.f32 0.0, %v1376
      %1378 = vmatmul.f32.gmra.mxu0 %v1051
      %v1379 = vpop.f32.mrf.mxu0
      %v1380 = vadd.f32 0.0, %v1379
      %1381 = vmatmul.f32.gmra.mxu0 %v1053
      %v1382 = vpop.f32.mrf.mxu0
      %v1383 = vadd.f32 0.0, %v1382
      %1384 = vmatmul.f32.gmra.mxu0 %v1055
      %v1385 = vpop.f32.mrf.mxu0
      %v1386 = vadd.f32 0.0, %v1385
      %1387 = vmatmul.f32.gmra.mxu0 %v1057
      %v1388 = vpop.f32.mrf.mxu0
      %v1389 = vadd.f32 0.0, %v1388
      %1390 = vmatmul.f32.gmra.mxu0 %v1328
      %v1391 = vpop.f32.mrf.mxu0
      %v1392 = vadd.f32 0.0, %v1391
      %1393 = vmatmul.f32.gmra.mxu0 %v1330
      %v1394 = vpop.f32.mrf.mxu0
      %v1395 = vadd.f32 0.0, %v1394
      %1396 = vdwg.mxu0
      %v1397 = vadd.f32 %v1305, %v1350
      %v1398 = vadd.f32 %v1306, %v1353
      %v1399 = vadd.f32 %v1307, %v1356
      %v1400 = vadd.f32 %v1308, %v1359
      %v1401 = vadd.f32 %v1309, %v1362
      %v1402 = vadd.f32 %v1310, %v1365
      %v1403 = vadd.f32 %v1311, %v1368
      %v1404 = vadd.f32 %v1312, %v1371
      %v1405 = vadd.f32 %v1313, %v1374
      %v1406 = vadd.f32 %v1314, %v1377
      %v1407 = vadd.f32 %v1315, %v1380
      %v1408 = vadd.f32 %v1316, %v1383
      %v1409 = vadd.f32 %v1317, %v1386
      %v1410 = vadd.f32 %v1318, %v1389
      %v1411 = vadd.f32 %v1319, %v1392
      %v1412 = vadd.f32 %v1320, %v1395
      %s1413 = scalar_lea.vmem %s3, 48
      %v1414 = vld [vmem:[%s1413] sm:$0xff]
      %v1416 = vsel %vm789, %v718, 0
      %v1418 = vsel %vm789, %v688, 0
      %1420 = vmatpush.msra.mxu0 0.0
      %1421 = vmatpush.msra.mxu0 0.0
      %1422 = vmatpush.msra.mxu0 0.0
      %1423 = vmatpush.msra.mxu0 0.0
      %1424 = vmatpush.msra.mxu0 0.0
      %1425 = vmatpush.msra.mxu0 0.0
      %1426 = vmatpush.msra.mxu0 0.0
      %1427 = vmatpush.msra.mxu0 0.0
      %1428 = vmatpush.msra.mxu0 0.0
      %1429 = vmatpush.msra.mxu0 0.0
      %1430 = vmatpush.msra.mxu0 0.0
      %1431 = vmatpush.msra.mxu0 0.0
      %1432 = vmatpush.msra.mxu0 0.0
      %1433 = vmatpush.msra.mxu0 0.0
      %1434 = vmatpush.msra.mxu0 0.0
      %1435 = vmatpush.msra.mxu0 %v1414
      %1436 = vmatmul.f32.gmra.mxu0 %v895
      %v1437 = vpop.f32.mrf.mxu0
      %v1438 = vadd.f32 0.0, %v1437
      %1439 = vmatmul.f32.gmra.mxu0 %v897
      %v1440 = vpop.f32.mrf.mxu0
      %v1441 = vadd.f32 0.0, %v1440
      %1442 = vmatmul.f32.gmra.mxu0 %v899
      %v1443 = vpop.f32.mrf.mxu0
      %v1444 = vadd.f32 0.0, %v1443
      %1445 = vmatmul.f32.gmra.mxu0 %v901
      %v1446 = vpop.f32.mrf.mxu0
      %v1447 = vadd.f32 0.0, %v1446
      %1448 = vmatmul.f32.gmra.mxu0 %v903
      %v1449 = vpop.f32.mrf.mxu0
      %v1450 = vadd.f32 0.0, %v1449
      %1451 = vmatmul.f32.gmra.mxu0 %v905
      %v1452 = vpop.f32.mrf.mxu0
      %v1453 = vadd.f32 0.0, %v1452
      %1454 = vmatmul.f32.gmra.mxu0 %v907
      %v1455 = vpop.f32.mrf.mxu0
      %v1456 = vadd.f32 0.0, %v1455
      %1457 = vmatmul.f32.gmra.mxu0 %v909
      %v1458 = vpop.f32.mrf.mxu0
      %v1459 = vadd.f32 0.0, %v1458
      %1460 = vmatmul.f32.gmra.mxu0 %v911
      %v1461 = vpop.f32.mrf.mxu0
      %v1462 = vadd.f32 0.0, %v1461
      %1463 = vmatmul.f32.gmra.mxu0 %v913
      %v1464 = vpop.f32.mrf.mxu0
      %v1465 = vadd.f32 0.0, %v1464
      %1466 = vmatmul.f32.gmra.mxu0 %v915
      %v1467 = vpop.f32.mrf.mxu0
      %v1468 = vadd.f32 0.0, %v1467
      %1469 = vmatmul.f32.gmra.mxu0 %v917
      %v1470 = vpop.f32.mrf.mxu0
      %v1471 = vadd.f32 0.0, %v1470
      %1472 = vmatmul.f32.gmra.mxu0 %v1143
      %v1473 = vpop.f32.mrf.mxu0
      %v1474 = vadd.f32 0.0, %v1473
      %1475 = vmatmul.f32.gmra.mxu0 %v1145
      %v1476 = vpop.f32.mrf.mxu0
      %v1477 = vadd.f32 0.0, %v1476
      %1478 = vmatmul.f32.gmra.mxu0 %v1416
      %v1479 = vpop.f32.mrf.mxu0
      %v1480 = vadd.f32 0.0, %v1479
      %1481 = vmatmul.f32.gmra.mxu0 %v1418
      %v1482 = vpop.f32.mrf.mxu0
      %v1483 = vadd.f32 0.0, %v1482
      %1484 = vdwg.mxu0
      %v1485 = vadd.f32 %v1397, %v1438
      %v1486 = vadd.f32 %v1398, %v1441
      %v1487 = vadd.f32 %v1399, %v1444
      %v1488 = vadd.f32 %v1400, %v1447
      %v1489 = vadd.f32 %v1401, %v1450
      %v1490 = vadd.f32 %v1402, %v1453
      %v1491 = vadd.f32 %v1403, %v1456
      %v1492 = vadd.f32 %v1404, %v1459
      %v1493 = vadd.f32 %v1405, %v1462
      %v1494 = vadd.f32 %v1406, %v1465
      %v1495 = vadd.f32 %v1407, %v1468
      %v1496 = vadd.f32 %v1408, %v1471
      %v1497 = vadd.f32 %v1409, %v1474
      %v1498 = vadd.f32 %v1410, %v1477
      %v1499 = vadd.f32 %v1411, %v1480
      %v1500 = vadd.f32 %v1412, %v1483
      %v1502 = vrot.slane %v718, 1
      %v1503 = vrot.slane %v688, 1
      %v1504 = vsel %vm746, %v1502, %v1503
      %v1505 = vrot.slane %v728, 1
      %v1506 = vsel %vm746, %v1503, %v1505
      %s1507 = scalar_lea.vmem %s3, 56
      %v1508 = vld [vmem:[%s1507] sm:$0xff]
      %v1509 = vsel %vm789, %v1504, 0
      %v1511 = vsel %vm789, %v1506, 0
      %1513 = vmatpush.msra.mxu0 0.0
      %1514 = vmatpush.msra.mxu0 0.0
      %1515 = vmatpush.msra.mxu0 0.0
      %1516 = vmatpush.msra.mxu0 0.0
      %1517 = vmatpush.msra.mxu0 0.0
      %1518 = vmatpush.msra.mxu0 0.0
      %1519 = vmatpush.msra.mxu0 0.0
      %1520 = vmatpush.msra.mxu0 0.0
      %1521 = vmatpush.msra.mxu0 0.0
      %1522 = vmatpush.msra.mxu0 0.0
      %1523 = vmatpush.msra.mxu0 0.0
      %1524 = vmatpush.msra.mxu0 0.0
      %1525 = vmatpush.msra.mxu0 0.0
      %1526 = vmatpush.msra.mxu0 0.0
      %1527 = vmatpush.msra.mxu0 0.0
      %1528 = vmatpush.msra.mxu0 %v1508
      %1529 = vmatmul.f32.gmra.mxu0 %v798
      %v1530 = vpop.f32.mrf.mxu0
      %v1531 = vadd.f32 0.0, %v1530
      %1532 = vmatmul.f32.gmra.mxu0 %v800
      %v1533 = vpop.f32.mrf.mxu0
      %v1534 = vadd.f32 0.0, %v1533
      %1535 = vmatmul.f32.gmra.mxu0 %v802
      %v1536 = vpop.f32.mrf.mxu0
      %v1537 = vadd.f32 0.0, %v1536
      %1538 = vmatmul.f32.gmra.mxu0 %v804
      %v1539 = vpop.f32.mrf.mxu0
      %v1540 = vadd.f32 0.0, %v1539
      %1541 = vmatmul.f32.gmra.mxu0 %v806
      %v1542 = vpop.f32.mrf.mxu0
      %v1543 = vadd.f32 0.0, %v1542
      %1544 = vmatmul.f32.gmra.mxu0 %v808
      %v1545 = vpop.f32.mrf.mxu0
      %v1546 = vadd.f32 0.0, %v1545
      %1547 = vmatmul.f32.gmra.mxu0 %v810
      %v1548 = vpop.f32.mrf.mxu0
      %v1549 = vadd.f32 0.0, %v1548
      %1550 = vmatmul.f32.gmra.mxu0 %v812
      %v1551 = vpop.f32.mrf.mxu0
      %v1552 = vadd.f32 0.0, %v1551
      %1553 = vmatmul.f32.gmra.mxu0 %v814
      %v1554 = vpop.f32.mrf.mxu0
      %v1555 = vadd.f32 0.0, %v1554
      %1556 = vmatmul.f32.gmra.mxu0 %v816
      %v1557 = vpop.f32.mrf.mxu0
      %v1558 = vadd.f32 0.0, %v1557
      %1559 = vmatmul.f32.gmra.mxu0 %v818
      %v1560 = vpop.f32.mrf.mxu0
      %v1561 = vadd.f32 0.0, %v1560
      %1562 = vmatmul.f32.gmra.mxu0 %v820
      %v1563 = vpop.f32.mrf.mxu0
      %v1564 = vadd.f32 0.0, %v1563
      %1565 = vmatmul.f32.gmra.mxu0 %v1236
      %v1566 = vpop.f32.mrf.mxu0
      %v1567 = vadd.f32 0.0, %v1566
      %1568 = vmatmul.f32.gmra.mxu0 %v1238
      %v1569 = vpop.f32.mrf.mxu0
      %v1570 = vadd.f32 0.0, %v1569
      %1571 = vmatmul.f32.gmra.mxu0 %v1509
      %v1572 = vpop.f32.mrf.mxu0
      %v1573 = vadd.f32 0.0, %v1572
      %1574 = vmatmul.f32.gmra.mxu0 %v1511
      %v1575 = vpop.f32.mrf.mxu0
      %v1576 = vadd.f32 0.0, %v1575
      %1577 = vdwg.mxu0
      %v1578 = vadd.f32 %v1485, %v1531
      %v1579 = vadd.f32 %v1486, %v1534
      %v1580 = vadd.f32 %v1487, %v1537
      %v1581 = vadd.f32 %v1488, %v1540
      %v1582 = vadd.f32 %v1489, %v1543
      %v1583 = vadd.f32 %v1490, %v1546
      %v1584 = vadd.f32 %v1491, %v1549
      %v1585 = vadd.f32 %v1492, %v1552
      %v1586 = vadd.f32 %v1493, %v1555
      %v1587 = vadd.f32 %v1494, %v1558
      %v1588 = vadd.f32 %v1495, %v1561
      %v1589 = vadd.f32 %v1496, %v1564
      %v1590 = vadd.f32 %v1497, %v1567
      %v1591 = vadd.f32 %v1498, %v1570
      %v1592 = vadd.f32 %v1499, %v1573
      %v1593 = vadd.f32 %v1500, %v1576
      %v1594 = vrot.slane %v718, 2
      %v1595 = vrot.slane %v688, 2
      %v1596 = vsel %vm984, %v1594, %v1595
      %v1597 = vrot.slane %v728, 2
      %v1598 = vsel %vm984, %v1595, %v1597
      %s1599 = scalar_lea.vmem %s3, 64
      %v1600 = vld [vmem:[%s1599] sm:$0xff]
      %v1601 = vsel %vm789, %v1596, 0
      %v1603 = vsel %vm789, %v1598, 0
      %1605 = vmatpush.msra.mxu0 0.0
      %1606 = vmatpush.msra.mxu0 0.0
      %1607 = vmatpush.msra.mxu0 0.0
      %1608 = vmatpush.msra.mxu0 0.0
      %1609 = vmatpush.msra.mxu0 0.0
      %1610 = vmatpush.msra.mxu0 0.0
      %1611 = vmatpush.msra.mxu0 0.0
      %1612 = vmatpush.msra.mxu0 0.0
      %1613 = vmatpush.msra.mxu0 0.0
      %1614 = vmatpush.msra.mxu0 0.0
      %1615 = vmatpush.msra.mxu0 0.0
      %1616 = vmatpush.msra.mxu0 0.0
      %1617 = vmatpush.msra.mxu0 0.0
      %1618 = vmatpush.msra.mxu0 0.0
      %1619 = vmatpush.msra.mxu0 0.0
      %1620 = vmatpush.msra.mxu0 %v1600
      %1621 = vmatmul.f32.gmra.mxu0 %v1035
      %v1622 = vpop.f32.mrf.mxu0
      %v1623 = vadd.f32 0.0, %v1622
      %1624 = vmatmul.f32.gmra.mxu0 %v1037
      %v1625 = vpop.f32.mrf.mxu0
      %v1626 = vadd.f32 0.0, %v1625
      %1627 = vmatmul.f32.gmra.mxu0 %v1039
      %v1628 = vpop.f32.mrf.mxu0
      %v1629 = vadd.f32 0.0, %v1628
      %1630 = vmatmul.f32.gmra.mxu0 %v1041
      %v1631 = vpop.f32.mrf.mxu0
      %v1632 = vadd.f32 0.0, %v1631
      %1633 = vmatmul.f32.gmra.mxu0 %v1043
      %v1634 = vpop.f32.mrf.mxu0
      %v1635 = vadd.f32 0.0, %v1634
      %1636 = vmatmul.f32.gmra.mxu0 %v1045
      %v1637 = vpop.f32.mrf.mxu0
      %v1638 = vadd.f32 0.0, %v1637
      %1639 = vmatmul.f32.gmra.mxu0 %v1047
      %v1640 = vpop.f32.mrf.mxu0
      %v1641 = vadd.f32 0.0, %v1640
      %1642 = vmatmul.f32.gmra.mxu0 %v1049
      %v1643 = vpop.f32.mrf.mxu0
      %v1644 = vadd.f32 0.0, %v1643
      %1645 = vmatmul.f32.gmra.mxu0 %v1051
      %v1646 = vpop.f32.mrf.mxu0
      %v1647 = vadd.f32 0.0, %v1646
      %1648 = vmatmul.f32.gmra.mxu0 %v1053
      %v1649 = vpop.f32.mrf.mxu0
      %v1650 = vadd.f32 0.0, %v1649
      %1651 = vmatmul.f32.gmra.mxu0 %v1055
      %v1652 = vpop.f32.mrf.mxu0
      %v1653 = vadd.f32 0.0, %v1652
      %1654 = vmatmul.f32.gmra.mxu0 %v1057
      %v1655 = vpop.f32.mrf.mxu0
      %v1656 = vadd.f32 0.0, %v1655
      %1657 = vmatmul.f32.gmra.mxu0 %v1328
      %v1658 = vpop.f32.mrf.mxu0
      %v1659 = vadd.f32 0.0, %v1658
      %1660 = vmatmul.f32.gmra.mxu0 %v1330
      %v1661 = vpop.f32.mrf.mxu0
      %v1662 = vadd.f32 0.0, %v1661
      %1663 = vmatmul.f32.gmra.mxu0 %v1601
      %v1664 = vpop.f32.mrf.mxu0
      %v1665 = vadd.f32 0.0, %v1664
      %1666 = vmatmul.f32.gmra.mxu0 %v1603
      %v1667 = vpop.f32.mrf.mxu0
      %v1668 = vadd.f32 0.0, %v1667
      %1669 = vdwg.mxu0
      %v1670 = vadd.f32 %v1578, %v1623
      %v1671 = vadd.f32 %v1579, %v1626
      %v1672 = vadd.f32 %v1580, %v1629
      %v1673 = vadd.f32 %v1581, %v1632
      %v1674 = vadd.f32 %v1582, %v1635
      %v1675 = vadd.f32 %v1583, %v1638
      %v1676 = vadd.f32 %v1584, %v1641
      %v1677 = vadd.f32 %v1585, %v1644
      %v1678 = vadd.f32 %v1586, %v1647
      %v1679 = vadd.f32 %v1587, %v1650
      %v1680 = vadd.f32 %v1588, %v1653
      %v1681 = vadd.f32 %v1589, %v1656
      %v1682 = vadd.f32 %v1590, %v1659
      %v1683 = vadd.f32 %v1591, %v1662
      %v1684 = vadd.f32 %v1592, %v1665
      %v1685 = vadd.f32 %v1593, %v1668
      %v1686 = vld [vmem:[%s4] sm:$0x1]
      %v1688 = vperm.slane %v1686, 0
      %v1690 = vadd.f32 %v1670, %v1688
      %v1691 = vadd.f32 %v1671, %v1688
      %v1692 = vadd.f32 %v1672, %v1688
      %v1693 = vadd.f32 %v1673, %v1688
      %v1694 = vadd.f32 %v1674, %v1688
      %v1695 = vadd.f32 %v1675, %v1688
      %v1696 = vadd.f32 %v1676, %v1688
      %v1697 = vadd.f32 %v1677, %v1688
      %v1698 = vadd.f32 %v1678, %v1688
      %v1699 = vadd.f32 %v1679, %v1688
      %v1700 = vadd.f32 %v1680, %v1688
      %v1701 = vadd.f32 %v1681, %v1688
      %v1702 = vadd.f32 %v1682, %v1688
      %v1703 = vadd.f32 %v1683, %v1688
      %v1704 = vadd.f32 %v1684, %v1688
      %v1705 = vadd.f32 %v1685, %v1688
      %1706 = vst.msk [vmem:[%s522] sm:$0xff] %vm789, %v1690
      %1707 = vst.msk [vmem:[%s522 + $0x8] sm:$0xff] %vm789, %v1691
      %1708 = vst.msk [vmem:[%s522 + $0x10] sm:$0xff] %vm789, %v1692
      %1709 = vst.msk [vmem:[%s522 + $0x18] sm:$0xff] %vm789, %v1693
      %1710 = vst.msk [vmem:[%s522 + $0x20] sm:$0xff] %vm789, %v1694
      %1711 = vst.msk [vmem:[%s522 + $0x28] sm:$0xff] %vm789, %v1695
      %1712 = vst.msk [vmem:[%s522 + $0x30] sm:$0xff] %vm789, %v1696
      %1713 = vst.msk [vmem:[%s522 + $0x38] sm:$0xff] %vm789, %v1697
      %1714 = vst.msk [vmem:[%s522 + $0x40] sm:$0xff] %vm789, %v1698
      %1715 = vst.msk [vmem:[%s522 + $0x48] sm:$0xff] %vm789, %v1699
      %1716 = vst.msk [vmem:[%s522 + $0x50] sm:$0xff] %vm789, %v1700
      %1717 = vst.msk [vmem:[%s522 + $0x58] sm:$0xff] %vm789, %v1701
      %1718 = vst.msk [vmem:[%s522 + $0x60] sm:$0xff] %vm789, %v1702
      %1719 = vst.msk [vmem:[%s522 + $0x68] sm:$0xff] %vm789, %v1703
      %1720 = vst.msk [vmem:[%s522 + $0x70] sm:$0xff] %vm789, %v1704
      %1721 = vst.msk [vmem:[%s522 + $0x78] sm:$0xff] %vm789, %v1705
      %v1722 = vsel %vm789, %v1690, 0.0
      %v1723 = vsel %vm789, %v1691, 0.0
      %v1724 = vadd.f32 %v1722, %v1723
      %v1725 = vsel %vm789, %v1692, 0.0
      %v1726 = vadd.f32 %v1724, %v1725
      %v1727 = vsel %vm789, %v1693, 0.0
      %v1728 = vadd.f32 %v1726, %v1727
      %v1729 = vsel %vm789, %v1694, 0.0
      %v1730 = vadd.f32 %v1728, %v1729
      %v1731 = vsel %vm789, %v1695, 0.0
      %v1732 = vadd.f32 %v1730, %v1731
      %v1733 = vsel %vm789, %v1696, 0.0
      %v1734 = vadd.f32 %v1732, %v1733
      %v1735 = vsel %vm789, %v1697, 0.0
      %v1736 = vadd.f32 %v1734, %v1735
      %v1737 = vsel %vm789, %v1698, 0.0
      %v1738 = vadd.f32 %v1736, %v1737
      %v1739 = vsel %vm789, %v1699, 0.0
      %v1740 = vadd.f32 %v1738, %v1739
      %v1741 = vsel %vm789, %v1700, 0.0
      %v1742 = vadd.f32 %v1740, %v1741
      %v1743 = vsel %vm789, %v1701, 0.0
      %v1744 = vadd.f32 %v1742, %v1743
      %v1745 = vsel %vm789, %v1702, 0.0
      %v1746 = vadd.f32 %v1744, %v1745
      %v1747 = vsel %vm789, %v1703, 0.0
      %v1748 = vadd.f32 %v1746, %v1747
      %v1749 = vsel %vm789, %v1704, 0.0
      %v1750 = vadd.f32 %v1748, %v1749
      %v1751 = vsel %vm789, %v1705, 0.0
      %v1752 = vadd.f32 %v1750, %v1751
      %v1753 = vrot.slane %v1752, 4
      %v1754 = vadd.f32 %v1752, %v1753
      %v1755 = vrot.slane %v1754, 2
      %v1756 = vadd.f32 %v1754, %v1755
      %v1757 = vrot.slane %v1756, 1
      %v1758 = vadd.f32 %v1756, %v1757
      %v1759 = vmul.f32 %v1758, 0.0078125
      %v1760 = vsub.f32 %v1690, %v1759
      %v1761 = vsub.f32 %v1691, %v1759
      %v1762 = vsub.f32 %v1692, %v1759
      %v1763 = vsub.f32 %v1693, %v1759
      %v1764 = vsub.f32 %v1694, %v1759
      %v1765 = vsub.f32 %v1695, %v1759
      %v1766 = vsub.f32 %v1696, %v1759
      %v1767 = vsub.f32 %v1697, %v1759
      %v1768 = vsub.f32 %v1698, %v1759
      %v1769 = vsub.f32 %v1699, %v1759
      %v1770 = vsub.f32 %v1700, %v1759
      %v1771 = vsub.f32 %v1701, %v1759
      %v1772 = vsub.f32 %v1702, %v1759
      %v1773 = vsub.f32 %v1703, %v1759
      %v1774 = vsub.f32 %v1704, %v1759
      %v1775 = vsub.f32 %v1705, %v1759
      %v1776 = vmul.f32 %v1760, %v1760
      %v1777 = vmul.f32 %v1761, %v1761
      %v1778 = vmul.f32 %v1762, %v1762
      %v1779 = vmul.f32 %v1763, %v1763
      %v1780 = vmul.f32 %v1764, %v1764
      %v1781 = vmul.f32 %v1765, %v1765
      %v1782 = vmul.f32 %v1766, %v1766
      %v1783 = vmul.f32 %v1767, %v1767
      %v1784 = vmul.f32 %v1768, %v1768
      %v1785 = vmul.f32 %v1769, %v1769
      %v1786 = vmul.f32 %v1770, %v1770
      %v1787 = vmul.f32 %v1771, %v1771
      %v1788 = vmul.f32 %v1772, %v1772
      %v1789 = vmul.f32 %v1773, %v1773
      %v1790 = vmul.f32 %v1774, %v1774
      %v1791 = vmul.f32 %v1775, %v1775
      %v1792 = vsel %vm789, %v1776, 0.0
      %v1793 = vsel %vm789, %v1777, 0.0
      %v1794 = vadd.f32 %v1792, %v1793
      %v1795 = vsel %vm789, %v1778, 0.0
      %v1796 = vadd.f32 %v1794, %v1795
      %v1797 = vsel %vm789, %v1779, 0.0
      %v1798 = vadd.f32 %v1796, %v1797
      %v1799 = vsel %vm789, %v1780, 0.0
      %v1800 = vadd.f32 %v1798, %v1799
      %v1801 = vsel %vm789, %v1781, 0.0
      %v1802 = vadd.f32 %v1800, %v1801
      %v1803 = vsel %vm789, %v1782, 0.0
      %v1804 = vadd.f32 %v1802, %v1803
      %v1805 = vsel %vm789, %v1783, 0.0
      %v1806 = vadd.f32 %v1804, %v1805
      %v1807 = vsel %vm789, %v1784, 0.0
      %v1808 = vadd.f32 %v1806, %v1807
      %v1809 = vsel %vm789, %v1785, 0.0
      %v1810 = vadd.f32 %v1808, %v1809
      %v1811 = vsel %vm789, %v1786, 0.0
      %v1812 = vadd.f32 %v1810, %v1811
      %v1813 = vsel %vm789, %v1787, 0.0
      %v1814 = vadd.f32 %v1812, %v1813
      %v1815 = vsel %vm789, %v1788, 0.0
      %v1816 = vadd.f32 %v1814, %v1815
      %v1817 = vsel %vm789, %v1789, 0.0
      %v1818 = vadd.f32 %v1816, %v1817
      %v1819 = vsel %vm789, %v1790, 0.0
      %v1820 = vadd.f32 %v1818, %v1819
      %v1821 = vsel %vm789, %v1791, 0.0
      %v1822 = vadd.f32 %v1820, %v1821
      %v1823 = vrot.slane %v1822, 4
      %v1824 = vadd.f32 %v1822, %v1823
      %v1825 = vrot.slane %v1824, 2
      %v1826 = vadd.f32 %v1824, %v1825
      %v1827 = vrot.slane %v1826, 1
      %v1828 = vadd.f32 %v1826, %v1827
      %vm1829 = vcmask 57344
      %1830 = vst.msk [vmem:[%s530] sm:$0x1] %vm1829, %v1758
      %1831 = vst.msk [vmem:[%s537] sm:$0x1] %vm1829, %v1828
      %s1832 = smul.u32 8, %s26
      %p1833 = scmp.lt.s32.totalorder %s25, 1
      %s1834 = scalar_select %p1833, %s25, 1
      %p1835 = scmp.lt.s32.totalorder %s1832, 15
      %s1836 = scalar_select %p1835, %s1832, 15
      %s1837 = smul.addr %s1836, 2
      %s1838 = smul.addr %s1834, 32
      %s1839 = sadd.s32 %s1837, %s1838
      %s1840 = smul.addr %s1839, 8
      %s1841 = scalar_lea.vmem %s7, %s1840
      %p1842 = scmp.lt.s32.totalorder %s25, 1
      %s1843 = scalar_select %p1842, %s25, 1
      %p1844 = scmp.lt.s32.totalorder %s26, 1
      %s1845 = scalar_select %p1844, %s26, 1
      %s1846 = smul.addr %s1843, 2
      %s1847 = sadd.s32 %s1845, %s1846
      %s1848 = scalar_lea.vmem %s8, %s1847
      %p1849 = scmp.lt.s32.totalorder %s25, 1
      %s1850 = scalar_select %p1849, %s25, 1
      %p1851 = scmp.lt.s32.totalorder %s26, 1
      %s1852 = scalar_select %p1851, %s26, 1
      %s1853 = smul.addr %s1850, 2
      %s1854 = sadd.s32 %s1852, %s1853
      %s1855 = scalar_lea.vmem %s9, %s1854
      // Predicated region
      $region49: #{upsample_block.4} parent=47 // pred_check
        %p1856 = pneg %p237
      $region50: #{upsample_block.4} parent=47 // pred_check_branch
        %1858 = sbr.rel (%p1856) target = $region52
      $region51: #{upsample_block.4} parent=47 // pred_region
        %s1859 = smul.u32 8, %s26
      $region52: #{upsample_block.4} parent=47 // pred_fallthru
        _
      // Predicated region
      $region53: #{upsample_block.4} parent=47 // pred_check
        %p1860 = pneg %p265
      $region54: #{upsample_block.4} parent=47 // pred_check_branch
        %1862 = sbr.rel (%p1860) target = $region56
      $region55: #{upsample_block.4} parent=47 // pred_region
        _
      $region56: #{upsample_block.4} parent=47 // pred_fallthru
        _
      // Predicated region
      $region57: #{upsample_block.4} parent=47 // pred_check
        %p1863 = pneg %p293
      $region58: #{upsample_block.4} parent=47 // pred_check_branch
        %1865 = sbr.rel (%p1863) target = $region60
      $region59: #{upsample_block.4} parent=47 // pred_region
        _
      $region60: #{upsample_block.4} parent=47 // pred_fallthru
        _
    $region48: #{upsample_block.4} parent=5 // pred_fallthru
      _
    %p1866 = scmp.le.s32.totalorder 2, %s16
    // Predicated region
    $region61: #{upsample_block.4} parent=5 // pred_check
      %p1867 = pneg %p1866
    $region62: #{upsample_block.4} parent=5 // pred_check_branch
      %1869 = sbr.rel (%p1867) target = $region64
    $region63: #{upsample_block.4} parent=5 // pred_region
      %s1870 = ssub.s32 %s16, 2
      // Predicated region
      $region65: #{upsample_block.4} parent=63 // pred_check
        %p1871 = pneg %p243
      $region66: #{upsample_block.4} parent=63 // pred_check_branch
        %1873 = sbr.rel (%p1871) target = $region68
      $region67: #{upsample_block.4} parent=63 // pred_region
        %s1874 = smul.u32 8, %s28
        %p1875 = scmp.lt.s32.totalorder %s27, 1
        %s1876 = scalar_select %p1875, %s27, 1
        %p1877 = scmp.lt.s32.totalorder %s1874, 15
        %s1878 = scalar_select %p1877, %s1874, 15
        %s1879 = smul.addr %s1878, 2
        %s1880 = smul.addr %s1876, 32
        %s1881 = sadd.s32 %s1879, %s1880
        %s1882 = smul.addr %s1881, 8
        %s1883 = scalar_lea.vmem %s7, %s1882
      $region68: #{upsample_block.4} parent=63 // pred_fallthru
        _
      // Predicated region
      $region69: #{upsample_block.4} parent=63 // pred_check
        %p1884 = pneg %p271
      $region70: #{upsample_block.4} parent=63 // pred_check_branch
        %1886 = sbr.rel (%p1884) target = $region72
      $region71: #{upsample_block.4} parent=63 // pred_region
        %p1887 = scmp.lt.s32.totalorder %s27, 1
        %s1888 = scalar_select %p1887, %s27, 1
        %p1889 = scmp.lt.s32.totalorder %s28, 1
        %s1890 = scalar_select %p1889, %s28, 1
        %s1891 = smul.addr %s1888, 2
        %s1892 = sadd.s32 %s1890, %s1891
        %s1893 = scalar_lea.vmem %s8, %s1892
      $region72: #{upsample_block.4} parent=63 // pred_fallthru
        _
      // Predicated region
      $region73: #{upsample_block.4} parent=63 // pred_check
        %p1894 = pneg %p299
      $region74: #{upsample_block.4} parent=63 // pred_check_branch
        %1896 = sbr.rel (%p1894) target = $region76
      $region75: #{upsample_block.4} parent=63 // pred_region
        %p1897 = scmp.lt.s32.totalorder %s27, 1
        %s1898 = scalar_select %p1897, %s27, 1
        %p1899 = scmp.lt.s32.totalorder %s28, 1
        %s1900 = scalar_select %p1899, %s28, 1
        %s1901 = smul.addr %s1898, 2
        %s1902 = sadd.s32 %s1900, %s1901
        %s1903 = scalar_lea.vmem %s9, %s1902
      $region76: #{upsample_block.4} parent=63 // pred_fallthru
        _
    $region64: #{upsample_block.4} parent=5 // pred_fallthru
      _
  $region6: #{upsample_block.4} parent=0 // loop_footer
    %s20 = sadd.s32 1, %s16
  $region7: #{upsample_block.4} parent=0 // loop_footer_branch
    %15 = sbr.rel target = $region3
  $region8: #{upsample_block.4} parent=0 // loop_exit
    _

// kernel: upsample_block.3
$region0: #{upsample_block.3}
  #allocation0 [shape = 'u32[]', space=smem, size = 0x4, offset = 0x4, fixed_abs, tag = 'smem constant byte address 0x4 - core index']
  #allocation1 [shape = 'u32[72,128]{1,0:T(1,128)}', space=vmem, size = 0x9000, scoped, tag = 'internal scratch']
  %s0 = inlined_call_operand.vmem [shape: f32[2,16,16,4], index: 0, kind: input, shape index: {}, may-alias: {0,1,2}]
  %s1 = inlined_call_operand.vmem [shape: f32[2,16,16,4], index: 1, kind: input, shape index: {}, may-alias: {0,1,2}]
  %s2 = inlined_call_operand.vmem [shape: f32[2,16,16,4], index: 2, kind: input, shape index: {}, may-alias: {0,1,2}]
  %s3 = inlined_call_operand.vmem [shape: f32[9,4,8], index: 3, kind: input, shape index: {}]
  %s4 = inlined_call_operand.vmem [shape: f32[1,8], index: 4, kind: input, shape index: {}]
  %s5 = inlined_call_operand.vmem [shape: f32[1,4], index: 5, kind: input, shape index: {}]
  %s6 = inlined_call_operand.vmem [shape: f32[1,4], index: 6, kind: input, shape index: {}]
  %s7 = inlined_call_operand.vmem [shape: f32[2,16,16,8], index: 7, kind: output, shape index: {0}]
  %s8 = inlined_call_operand.vmem [shape: f32[2,2,1,8], index: 8, kind: output, shape index: {1}]
  %s9 = inlined_call_operand.vmem [shape: f32[2,2,1,8], index: 9, kind: output, shape index: {2}]
  %10 = xla_tuple %s7, %s8, %s9
  %s11 = sld [smem:[#allocation0]]
  $region77: #{upsample_block.3} parent=0
    _
  %s13 = ssub.s32 1, %s11
  %s14 = scalar_select 0, %s13, %s11
  loop: start=0, step=1, limit=6
  $region2: #{upsample_block.3} parent=0 // loop_pre_header
    _
  $region3: #{upsample_block.3} parent=0 // loop_header
    %s16 = sphi 0, %s20
    %p17 = scmp.ge.s32.totalorder %s16, 6
    %s23 = sphi 0, %s35
    %s24 = sphi 0, %s31
    %s25 = sphi 0, %s23
    %s26 = sphi 0, %s24
    %s27 = sphi 0, %s25
    %s28 = sphi 0, %s26
    %s40 = sphi 0, %s42
    %s43 = sphi 0, %s40
    %s44 = sphi 0, %s43
    %s60 = sphi 0, %s44
    %s76 = sphi 0, %s78
    %s79 = sphi 0, %s76
    %s80 = sphi 0, %s79
    %s96 = sphi 0, %s80
    %s112 = sphi 0, %s114
    %s115 = sphi 0, %s112
    %s116 = sphi 0, %s115
    %s132 = sphi 0, %s116
    %s136 = sphi 0, %s136
    %s138 = sphi 0, %s136
    %s139 = sphi 0, %s138
    %s153 = sphi 0, %s139
    %s157 = sphi 0, %s157
    %s159 = sphi 0, %s157
    %s160 = sphi 0, %s159
    %s174 = sphi 0, %s160
    %s178 = sphi 0, %s178
    %s180 = sphi 0, %s178
    %s181 = sphi 0, %s180
    %s195 = sphi 0, %s181
    %s199 = sphi 0, %s199
    %s201 = sphi 0, %s199
    %s202 = sphi 0, %s201
    %s216 = sphi 0, %s202
    %s224 = sphi 0, %s226
    %s227 = sphi 0, %s224
    %s228 = sphi 0, %s227
    %s244 = sphi 0, %s228
    %s252 = sphi 0, %s254
    %s255 = sphi 0, %s252
    %s256 = sphi 0, %s255
    %s272 = sphi 0, %s256
    %s280 = sphi 0, %s282
    %s283 = sphi 0, %s280
    %s284 = sphi 0, %s283
    %s300 = sphi 0, %s284
  $region4: #{upsample_block.3} parent=0 // loop_header_branch
    %19 = sbr.rel (%p17) target = $region8
  $region5: #{upsample_block.3} parent=0 // loop_body
    %s21 = ssub.s32 %s16, 1
    %s22 = ssub.s32 %s16, 2
    %s29 = sadd.s32 1, %s24
    %p30 = scmp.ge.s32.totalorder %s29, 2
    %s31 = scalar_select %p30, 0, %s29
    %s32 = sadd.s32 1, %s23
    %s33 = scalar_select %p30, %s32, %s23
    %p34 = scmp.ge.s32.totalorder %s33, 2
    %s35 = scalar_select %p34, 0, %s33
    %s36 = ssub.s32 %s23, %s35
    %s37 = ssub.s32 %s24, %s31
    %s38 = sor.u32 %s36, %s37
    %p39 = scmp.eq.s32.totalorder %s38, 0
    %s41 = sadd.s32 %s40, 1
    %s42 = scalar_select %p39, %s40, %s41
    %p45 = pneg %p39
    %p46 = scmp.eq.s32.totalorder %s16, 3
    %p47 = por %p45, %p46
    %p48 = scmp.ne.s32.totalorder %s40, %s43
    %p49 = scmp.eq.s32.totalorder %s16, 0
    %p50 = por %p48, %p49
    %p51 = scmp.ne.s32.totalorder %s40, %s43
    %p52 = scmp.eq.s32.totalorder %s21, 3
    %p53 = por %p51, %p52
    %p54 = scmp.ne.s32.totalorder %s43, %s44
    %p55 = scmp.eq.s32.totalorder %s21, 0
    %p56 = por %p54, %p55
    %p57 = scmp.ne.s32.totalorder %s43, %s44
    %p58 = scmp.eq.s32.totalorder %s22, 3
    %p59 = por %p57, %p58
    %p61 = scmp.ne.s32.totalorder %s44, %s60
    %p62 = scmp.eq.s32.totalorder %s22, 0
    %p63 = por %p61, %p62
    %s64 = smul.u32 %s24, 8
    %s65 = ssub.s32 %s64, 1
    %p66 = scmp.gt.s32.totalorder %s65, 0
    %s67 = scalar_select %p66, %s65, 0
    %s68 = smul.u32 %s31, 8
    %s69 = ssub.s32 %s68, 1
    %p70 = scmp.gt.s32.totalorder %s69, 0
    %s71 = scalar_select %p70, %s69, 0
    %s72 = ssub.s32 %s23, %s35
    %s73 = ssub.s32 %s67, %s71
    %s74 = sor.u32 %s72, %s73
    %p75 = scmp.eq.s32.totalorder %s74, 0
    %s77 = sadd.s32 %s76, 1
    %s78 = scalar_select %p75, %s76, %s77
    %p81 = pneg %p75
    %p82 = scmp.eq.s32.totalorder %s16, 3
    %p83 = por %p81, %p82
    %p84 = scmp.ne.s32.totalorder %s76, %s79
    %p85 = scmp.eq.s32.totalorder %s16, 0
    %p86 = por %p84, %p85
    %p87 = scmp.ne.s32.totalorder %s76, %s79
    %p88 = scmp.eq.s32.totalorder %s21, 3
    %p89 = por %p87, %p88
    %p90 = scmp.ne.s32.totalorder %s79, %s80
    %p91 = scmp.eq.s32.totalorder %s21, 0
    %p92 = por %p90, %p91
    %p93 = scmp.ne.s32.totalorder %s79, %s80
    %p94 = scmp.eq.s32.totalorder %s22, 3
    %p95 = por %p93, %p94
    %p97 = scmp.ne.s32.totalorder %s80, %s96
    %p98 = scmp.eq.s32.totalorder %s22, 0
    %p99 = por %p97, %p98
    %s100 = sadd.s32 %s24, 1
    %s101 = smul.u32 %s100, 8
    %p102 = scmp.lt.s32.totalorder %s101, 15
    %s103 = scalar_select %p102, %s101, 15
    %s104 = sadd.s32 %s31, 1
    %s105 = smul.u32 %s104, 8
    %p106 = scmp.lt.s32.totalorder %s105, 15
    %s107 = scalar_select %p106, %s105, 15
    %s108 = ssub.s32 %s23, %s35
    %s109 = ssub.s32 %s103, %s107
    %s110 = sor.u32 %s108, %s109
    %p111 = scmp.eq.s32.totalorder %s110, 0
    %s113 = sadd.s32 %s112, 1
    %s114 = scalar_select %p111, %s112, %s113
    %p117 = pneg %p111
    %p118 = scmp.eq.s32.totalorder %s16, 3
    %p119 = por %p117, %p118
    %p120 = scmp.ne.s32.totalorder %s112, %s115
    %p121 = scmp.eq.s32.totalorder %s16, 0
    %p122 = por %p120, %p121
    %p123 = scmp.ne.s32.totalorder %s112, %s115
    %p124 = scmp.eq.s32.totalorder %s21, 3
    %p125 = por %p123, %p124
    %p126 = scmp.ne.s32.totalorder %s115, %s116
    %p127 = scmp.eq.s32.totalorder %s21, 0
    %p128 = por %p126, %p127
    %p129 = scmp.ne.s32.totalorder %s115, %s116
    %p130 = scmp.eq.s32.totalorder %s22, 3
    %p131 = por %p129, %p130
    %p133 = scmp.ne.s32.totalorder %s116, %s132
    %p134 = scmp.eq.s32.totalorder %s22, 0
    %p135 = por %p133, %p134
    %s137 = sadd.s32 %s136, 1
    %p140 = scmp.eq.s32.totalorder %s16, 3
    %p141 = scmp.ne.s32.totalorder %s136, %s138
    %p142 = scmp.eq.s32.totalorder %s16, 0
    %p143 = por %p141, %p142
    %p144 = scmp.ne.s32.totalorder %s136, %s138
    %p145 = scmp.eq.s32.totalorder %s21, 3
    %p146 = por %p144, %p145
    %p147 = scmp.ne.s32.totalorder %s138, %s139
    %p148 = scmp.eq.s32.totalorder %s21, 0
    %p149 = por %p147, %p148
    %p150 = scmp.ne.s32.totalorder %s138, %s139
    %p151 = scmp.eq.s32.totalorder %s22, 3
    %p152 = por %p150, %p151
    %p154 = scmp.ne.s32.totalorder %s139, %s153
    %p155 = scmp.eq.s32.totalorder %s22, 0
    %p156 = por %p154, %p155
    %s158 = sadd.s32 %s157, 1
    %p161 = scmp.eq.s32.totalorder %s16, 3
    %p162 = scmp.ne.s32.totalorder %s157, %s159
    %p163 = scmp.eq.s32.totalorder %s16, 0
    %p164 = por %p162, %p163
    %p165 = scmp.ne.s32.totalorder %s157, %s159
    %p166 = scmp.eq.s32.totalorder %s21, 3
    %p167 = por %p165, %p166
    %p168 = scmp.ne.s32.totalorder %s159, %s160
    %p169 = scmp.eq.s32.totalorder %s21, 0
    %p170 = por %p168, %p169
    %p171 = scmp.ne.s32.totalorder %s159, %s160
    %p172 = scmp.eq.s32.totalorder %s22, 3
    %p173 = por %p171, %p172
    %p175 = scmp.ne.s32.totalorder %s160, %s174
    %p176 = scmp.eq.s32.totalorder %s22, 0
    %p177 = por %p175, %p176
    %s179 = sadd.s32 %s178, 1
    %p182 = scmp.eq.s32.totalorder %s16, 3
    %p183 = scmp.ne.s32.totalorder %s178, %s180
    %p184 = scmp.eq.s32.totalorder %s16, 0
    %p185 = por %p183, %p184
    %p186 = scmp.ne.s32.totalorder %s178, %s180
    %p187 = scmp.eq.s32.totalorder %s21, 3
    %p188 = por %p186, %p187
    %p189 = scmp.ne.s32.totalorder %s180, %s181
    %p190 = scmp.eq.s32.totalorder %s21, 0
    %p191 = por %p189, %p190
    %p192 = scmp.ne.s32.totalorder %s180, %s181
    %p193 = scmp.eq.s32.totalorder %s22, 3
    %p194 = por %p192, %p193
    %p196 = scmp.ne.s32.totalorder %s181, %s195
    %p197 = scmp.eq.s32.totalorder %s22, 0
    %p198 = por %p196, %p197
    %s200 = sadd.s32 %s199, 1
    %p203 = scmp.eq.s32.totalorder %s16, 3
    %p204 = scmp.ne.s32.totalorder %s199, %s201
    %p205 = scmp.eq.s32.totalorder %s16, 0
    %p206 = por %p204, %p205
    %p207 = scmp.ne.s32.totalorder %s199, %s201
    %p208 = scmp.eq.s32.totalorder %s21, 3
    %p209 = por %p207, %p208
    %p210 = scmp.ne.s32.totalorder %s201, %s202
    %p211 = scmp.eq.s32.totalorder %s21, 0
    %p212 = por %p210, %p211
    %p213 = scmp.ne.s32.totalorder %s201, %s202
    %p214 = scmp.eq.s32.totalorder %s22, 3
    %p215 = por %p213, %p214
    %p217 = scmp.ne.s32.totalorder %s202, %s216
    %p218 = scmp.eq.s32.totalorder %s22, 0
    %p219 = por %p217, %p218
    %s220 = ssub.s32 %s23, %s35
    %s221 = ssub.s32 %s24, %s31
    %s222 = sor.u32 %s220, %s221
    %p223 = scmp.eq.s32.totalorder %s222, 0
    %s225 = sadd.s32 %s224, 1
    %s226 = scalar_select %p223, %s224, %s225
    %p229 = pneg %p223
    %p230 = scmp.eq.s32.totalorder %s16, 3
    %p231 = por %p229, %p230
    %p232 = scmp.ne.s32.totalorder %s224, %s227
    %p233 = scmp.eq.s32.totalorder %s16, 0
    %p234 = por %p232, %p233
    %p235 = scmp.ne.s32.totalorder %s224, %s227
    %p236 = scmp.eq.s32.totalorder %s21, 3
    %p237 = por %p235, %p236
    %p238 = scmp.ne.s32.totalorder %s227, %s228
    %p239 = scmp.eq.s32.totalorder %s21, 0
    %p240 = por %p238, %p239
    %p241 = scmp.ne.s32.totalorder %s227, %s228
    %p242 = scmp.eq.s32.totalorder %s22, 3
    %p243 = por %p241, %p242
    %p245 = scmp.ne.s32.totalorder %s228, %s244
    %p246 = scmp.eq.s32.totalorder %s22, 0
    %p247 = por %p245, %p246
    %s248 = ssub.s32 %s23, %s35
    %s249 = ssub.s32 %s24, %s31
    %s250 = sor.u32 %s248, %s249
    %p251 = scmp.eq.s32.totalorder %s250, 0
    %s253 = sadd.s32 %s252, 1
    %s254 = scalar_select %p251, %s252, %s253
    %p257 = pneg %p251
    %p258 = scmp.eq.s32.totalorder %s16, 3
    %p259 = por %p257, %p258
    %p260 = scmp.ne.s32.totalorder %s252, %s255
    %p261 = scmp.eq.s32.totalorder %s16, 0
    %p262 = por %p260, %p261
    %p263 = scmp.ne.s32.totalorder %s252, %s255
    %p264 = scmp.eq.s32.totalorder %s21, 3
    %p265 = por %p263, %p264
    %p266 = scmp.ne.s32.totalorder %s255, %s256
    %p267 = scmp.eq.s32.totalorder %s21, 0
    %p268 = por %p266, %p267
    %p269 = scmp.ne.s32.totalorder %s255, %s256
    %p270 = scmp.eq.s32.totalorder %s22, 3
    %p271 = por %p269, %p270
    %p273 = scmp.ne.s32.totalorder %s256, %s272
    %p274 = scmp.eq.s32.totalorder %s22, 0
    %p275 = por %p273, %p274
    %s276 = ssub.s32 %s23, %s35
    %s277 = ssub.s32 %s24, %s31
    %s278 = sor.u32 %s276, %s277
    %p279 = scmp.eq.s32.totalorder %s278, 0
    %s281 = sadd.s32 %s280, 1
    %s282 = scalar_select %p279, %s280, %s281
    %p285 = pneg %p279
    %p286 = scmp.eq.s32.totalorder %s16, 3
    %p287 = por %p285, %p286
    %p288 = scmp.ne.s32.totalorder %s280, %s283
    %p289 = scmp.eq.s32.totalorder %s16, 0
    %p290 = por %p288, %p289
    %p291 = scmp.ne.s32.totalorder %s280, %s283
    %p292 = scmp.eq.s32.totalorder %s21, 3
    %p293 = por %p291, %p292
    %p294 = scmp.ne.s32.totalorder %s283, %s284
    %p295 = scmp.eq.s32.totalorder %s21, 0
    %p296 = por %p294, %p295
    %p297 = scmp.ne.s32.totalorder %s283, %s284
    %p298 = scmp.eq.s32.totalorder %s22, 3
    %p299 = por %p297, %p298
    %p301 = scmp.ne.s32.totalorder %s284, %s300
    %p302 = scmp.eq.s32.totalorder %s22, 0
    %p303 = por %p301, %p302
    %p304 = scmp.le.s32.totalorder 1, %s16
    %p305 = scmp.lt.s32.totalorder %s16, 5
    %p306 = pnand %p304, %p305
    %p307 = pneg %p306
    // Predicated region
    $region9: #{upsample_block.3} parent=5 // pred_check
      _
    $region10: #{upsample_block.3} parent=5 // pred_check_branch
      %309 = sbr.rel (%p306) target = $region12
    $region11: #{upsample_block.3} parent=5 // pred_region
      %s310 = ssub.s32 %s16, 1
      // Predicated region
      $region13: #{upsample_block.3} parent=11 // pred_check
        %p311 = pneg %p149
      $region14: #{upsample_block.3} parent=11 // pred_check_branch
        %313 = sbr.rel (%p311) target = $region16
      $region15: #{upsample_block.3} parent=11 // pred_region
        _
      $region16: #{upsample_block.3} parent=11 // pred_fallthru
        _
      // Predicated region
      $region17: #{upsample_block.3} parent=11 // pred_check
        %p314 = pneg %p170
      $region18: #{upsample_block.3} parent=11 // pred_check_branch
        %316 = sbr.rel (%p314) target = $region20
      $region19: #{upsample_block.3} parent=11 // pred_region
        _
      $region20: #{upsample_block.3} parent=11 // pred_fallthru
        _
      // Predicated region
      $region21: #{upsample_block.3} parent=11 // pred_check
        %p317 = pneg %p191
      $region22: #{upsample_block.3} parent=11 // pred_check_branch
        %319 = sbr.rel (%p317) target = $region24
      $region23: #{upsample_block.3} parent=11 // pred_region
        _
      $region24: #{upsample_block.3} parent=11 // pred_fallthru
        _
      // Predicated region
      $region25: #{upsample_block.3} parent=11 // pred_check
        %p320 = pneg %p212
      $region26: #{upsample_block.3} parent=11 // pred_check_branch
        %322 = sbr.rel (%p320) target = $region28
      $region27: #{upsample_block.3} parent=11 // pred_region
        _
      $region28: #{upsample_block.3} parent=11 // pred_fallthru
        _
    $region12: #{upsample_block.3} parent=5 // pred_fallthru
      _
    %p323 = scmp.lt.s32.totalorder %s16, 4
    // Predicated region
    $region29: #{upsample_block.3} parent=5 // pred_check
      %p324 = pneg %p323
    $region30: #{upsample_block.3} parent=5 // pred_check_branch
      %326 = sbr.rel (%p324) target = $region32
    $region31: #{upsample_block.3} parent=5 // pred_region
      // Predicated region
      $region33: #{upsample_block.3} parent=31 // pred_check
        %p327 = pneg %p50
      $region34: #{upsample_block.3} parent=31 // pred_check_branch
        %329 = sbr.rel (%p327) target = $region36
      $region35: #{upsample_block.3} parent=31 // pred_region
        %s330 = smul.u32 8, %s24
        %p331 = scmp.lt.s32.totalorder %s23, 1
        %s332 = scalar_select %p331, %s23, 1
        %p333 = scmp.lt.s32.totalorder %s330, 15
        %s334 = scalar_select %p333, %s330, 15
        %s335 = smul.addr %s334, 2
        %s336 = smul.addr %s332, 32
        %s337 = sadd.s32 %s335, %s336
        %s338 = smul.addr %s337, 8
        %s339 = scalar_lea.vmem %s0, %s338
        %s340 = smul.u32 8, %s24
      $region36: #{upsample_block.3} parent=31 // pred_fallthru
        _
      // Predicated region
      $region37: #{upsample_block.3} parent=31 // pred_check
        %p341 = pneg %p86
      $region38: #{upsample_block.3} parent=31 // pred_check_branch
        %343 = sbr.rel (%p341) target = $region40
      $region39: #{upsample_block.3} parent=31 // pred_region
        %s344 = smul.u32 %s24, 8
        %s345 = ssub.s32 %s344, 1
        %p346 = scmp.gt.s32.totalorder %s345, 0
        %s347 = scalar_select %p346, %s345, 0
        %p348 = scmp.lt.s32.totalorder %s23, 1
        %s349 = scalar_select %p348, %s23, 1
        %p350 = scmp.lt.s32.totalorder %s347, 15
        %s351 = scalar_select %p350, %s347, 15
        %s352 = smul.addr %s351, 2
        %s353 = smul.addr %s349, 32
        %s354 = sadd.s32 %s352, %s353
        %s355 = smul.addr %s354, 8
        %s356 = scalar_lea.vmem %s1, %s355
        %s357 = smul.u32 %s24, 8
        %s358 = ssub.s32 %s357, 1
        %p359 = scmp.gt.s32.totalorder %s358, 0
        %s360 = scalar_select %p359, %s358, 0
      $region40: #{upsample_block.3} parent=31 // pred_fallthru
        _
      // Predicated region
      $region41: #{upsample_block.3} parent=31 // pred_check
        %p361 = pneg %p122
      $region42: #{upsample_block.3} parent=31 // pred_check_branch
        %363 = sbr.rel (%p361) target = $region44
      $region43: #{upsample_block.3} parent=31 // pred_region
        %s364 = sadd.s32 %s24, 1
        %s365 = smul.u32 %s364, 8
        %p366 = scmp.lt.s32.totalorder %s365, 15
        %s367 = scalar_select %p366, %s365, 15
        %p368 = scmp.lt.s32.totalorder %s23, 1
        %s369 = scalar_select %p368, %s23, 1
        %p370 = scmp.lt.s32.totalorder %s367, 15
        %s371 = scalar_select %p370, %s367, 15
        %s372 = smul.addr %s371, 2
        %s373 = smul.addr %s369, 32
        %s374 = sadd.s32 %s372, %s373
        %s375 = smul.addr %s374, 8
        %s376 = scalar_lea.vmem %s2, %s375
        %s377 = sadd.s32 %s24, 1
        %s378 = smul.u32 %s377, 8
        %p379 = scmp.lt.s32.totalorder %s378, 15
        %s380 = scalar_select %p379, %s378, 15
      $region44: #{upsample_block.3} parent=31 // pred_fallthru
        _
    $region32: #{upsample_block.3} parent=5 // pred_fallthru
      _
    %p381 = scmp.le.s32.totalorder 1, %s16
    %p382 = scmp.lt.s32.totalorder %s16, 5
    %p383 = pnand %p381, %p382
    %p384 = pneg %p383
    // Predicated region
    $region45: #{upsample_block.3} parent=5 // pred_check
      _
    $region46: #{upsample_block.3} parent=5 // pred_check_branch
      %386 = sbr.rel (%p383) target = $region48
    $region47: #{upsample_block.3} parent=5 // pred_region
      %s387 = ssub.s32 %s16, 1
      %s388 = smul.u32 8, %s26
      %p389 = scmp.lt.s32.totalorder %s25, 1
      %s390 = scalar_select %p389, %s25, 1
      %p391 = scmp.lt.s32.totalorder %s388, 15
      %s392 = scalar_select %p391, %s388, 15
      %s393 = smul.addr %s392, 2
      %s394 = smul.addr %s390, 32
      %s395 = sadd.s32 %s393, %s394
      %s396 = smul.addr %s395, 8
      %s397 = scalar_lea.vmem %s0, %s396
      %p398 = pneg %p56
      %p399 = pneg %p53
      %s400 = smul.u32 %s26, 8
      %s401 = ssub.s32 %s400, 1
      %p402 = scmp.gt.s32.totalorder %s401, 0
      %s403 = scalar_select %p402, %s401, 0
      %p404 = scmp.lt.s32.totalorder %s25, 1
      %s405 = scalar_select %p404, %s25, 1
      %p406 = scmp.lt.s32.totalorder %s403, 15
      %s407 = scalar_select %p406, %s403, 15
      %s408 = smul.addr %s407, 2
      %s409 = smul.addr %s405, 32
      %s410 = sadd.s32 %s408, %s409
      %s411 = smul.addr %s410, 8
      %s412 = scalar_lea.vmem %s1, %s411
      %p413 = pneg %p92
      %p414 = pneg %p89
      %s415 = sadd.s32 %s26, 1
      %s416 = smul.u32 %s415, 8
      %p417 = scmp.lt.s32.totalorder %s416, 15
      %s418 = scalar_select %p417, %s416, 15
      %p419 = scmp.lt.s32.totalorder %s25, 1
      %s420 = scalar_select %p419, %s25, 1
      %p421 = scmp.lt.s32.totalorder %s418, 15
      %s422 = scalar_select %p421, %s418, 15
      %s423 = smul.addr %s422, 2
      %s424 = smul.addr %s420, 32
      %s425 = sadd.s32 %s423, %s424
      %s426 = smul.addr %s425, 8
      %s427 = scalar_lea.vmem %s2, %s426
      %p428 = pneg %p128
      %p429 = pneg %p125
      %p430 = pneg %p149
      %p431 = pneg %p146
      %p432 = pneg %p170
      %p433 = pneg %p167
      %p434 = pneg %p191
      %p435 = pneg %p188
      %p436 = pneg %p212
      %p437 = pneg %p209
      %p438 = pneg %p240
      %p439 = pneg %p237
      %s440 = smul.u32 8, %s26
      %p441 = scmp.lt.s32.totalorder %s25, 1
      %s442 = scalar_select %p441, %s25, 1
      %p443 = scmp.lt.s32.totalorder %s440, 15
      %s444 = scalar_select %p443, %s440, 15
      %s445 = smul.addr %s444, 2
      %s446 = smul.addr %s442, 32
      %s447 = sadd.s32 %s445, %s446
      %s448 = smul.addr %s447, 8
      %s449 = scalar_lea.vmem %s7, %s448
      %p450 = pneg %p268
      %p451 = pneg %p265
      %p452 = scmp.lt.s32.totalorder %s25, 1
      %s453 = scalar_select %p452, %s25, 1
      %p454 = scmp.lt.s32.totalorder %s26, 1
      %s455 = scalar_select %p454, %s26, 1
      %s456 = smul.addr %s453, 2
      %s457 = sadd.s32 %s455, %s456
      %s458 = scalar_lea.vmem %s8, %s457
      %p459 = pneg %p296
      %p460 = pneg %p293
      %p461 = scmp.lt.s32.totalorder %s25, 1
      %s462 = scalar_select %p461, %s25, 1
      %p463 = scmp.lt.s32.totalorder %s26, 1
      %s464 = scalar_select %p463, %s26, 1
      %s465 = smul.addr %s462, 2
      %s466 = sadd.s32 %s464, %s465
      %s467 = scalar_lea.vmem %s9, %s466
      %s468 = smul.u32 8, %s26
      %p469 = scmp.lt.s32.totalorder %s25, 1
      %s470 = scalar_select %p469, %s25, 1
      %p471 = scmp.lt.s32.totalorder %s468, 15
      %s472 = scalar_select %p471, %s468, 15
      %s473 = smul.addr %s472, 2
      %s474 = smul.addr %s470, 32
      %s475 = sadd.s32 %s473, %s474
      %s476 = smul.addr %s475, 8
      %s477 = scalar_lea.vmem %s0, %s476
      %s478 = smul.u32 8, %s26
      %s479 = smul.u32 %s26, 8
      %s480 = ssub.s32 %s479, 1
      %p481 = scmp.gt.s32.totalorder %s480, 0
      %s482 = scalar_select %p481, %s480, 0
      %p483 = scmp.lt.s32.totalorder %s25, 1
      %s484 = scalar_select %p483, %s25, 1
      %p485 = scmp.lt.s32.totalorder %s482, 15
      %s486 = scalar_select %p485, %s482, 15
      %s487 = smul.addr %s486, 2
      %s488 = smul.addr %s484, 32
      %s489 = sadd.s32 %s487, %s488
      %s490 = smul.addr %s489, 8
      %s491 = scalar_lea.vmem %s1, %s490
      %s492 = smul.u32 %s26, 8
      %s493 = ssub.s32 %s492, 1
      %p494 = scmp.gt.s32.totalorder %s493, 0
      %s495 = scalar_select %p494, %s493, 0
      %s496 = sadd.s32 %s26, 1
      %s497 = smul.u32 %s496, 8
      %p498 = scmp.lt.s32.totalorder %s497, 15
      %s499 = scalar_select %p498, %s497, 15
      %p500 = scmp.lt.s32.totalorder %s25, 1
      %s501 = scalar_select %p500, %s25, 1
      %p502 = scmp.lt.s32.totalorder %s499, 15
      %s503 = scalar_select %p502, %s499, 15
      %s504 = smul.addr %s503, 2
      %s505 = smul.addr %s501, 32
      %s506 = sadd.s32 %s504, %s505
      %s507 = smul.addr %s506, 8
      %s508 = scalar_lea.vmem %s2, %s507
      %s509 = sadd.s32 %s26, 1
      %s510 = smul.u32 %s509, 8
      %p511 = scmp.lt.s32.totalorder %s510, 15
      %s512 = scalar_select %p511, %s510, 15
      %s513 = smul.u32 8, %s26
      %p514 = scmp.lt.s32.totalorder %s25, 1
      %s515 = scalar_select %p514, %s25, 1
      %p516 = scmp.lt.s32.totalorder %s513, 15
      %s517 = scalar_select %p516, %s513, 15
      %s518 = smul.addr %s517, 2
      %s519 = smul.addr %s515, 32
      %s520 = sadd.s32 %s518, %s519
      %s521 = smul.addr %s520, 8
      %s522 = scalar_lea.vmem %s7, %s521
      %s523 = smul.u32 8, %s26
      %p524 = scmp.lt.s32.totalorder %s25, 1
      %s525 = scalar_select %p524, %s25, 1
      %p526 = scmp.lt.s32.totalorder %s26, 1
      %s527 = scalar_select %p526, %s26, 1
      %s528 = smul.addr %s525, 2
      %s529 = sadd.s32 %s527, %s528
      %s530 = scalar_lea.vmem %s8, %s529
      %p531 = scmp.lt.s32.totalorder %s25, 1
      %s532 = scalar_select %p531, %s25, 1
      %p533 = scmp.lt.s32.totalorder %s26, 1
      %s534 = scalar_select %p533, %s26, 1
      %s535 = smul.addr %s532, 2
      %s536 = sadd.s32 %s534, %s535
      %s537 = scalar_lea.vmem %s9, %s536
      %v538 = vld [vmem:[%s477] sm:$0xff]
      %v539 = vld [vmem:[%s477 + $0x8] sm:$0xff]
      %v540 = vld [vmem:[%s477 + $0x10] sm:$0xff]
      %v541 = vld [vmem:[%s477 + $0x18] sm:$0xff]
      %v542 = vld [vmem:[%s477 + $0x20] sm:$0xff]
      %v543 = vld [vmem:[%s477 + $0x28] sm:$0xff]
      %v544 = vld [vmem:[%s477 + $0x30] sm:$0xff]
      %v545 = vld [vmem:[%s477 + $0x38] sm:$0xff]
      %v546 = vld [vmem:[%s477 + $0x40] sm:$0xff]
      %v547 = vld [vmem:[%s477 + $0x48] sm:$0xff]
      %v548 = vld [vmem:[%s477 + $0x50] sm:$0xff]
      %v549 = vld [vmem:[%s477 + $0x58] sm:$0xff]
      %v550 = vld [vmem:[%s477 + $0x60] sm:$0xff]
      %v551 = vld [vmem:[%s477 + $0x68] sm:$0xff]
      %v552 = vld [vmem:[%s477 + $0x70] sm:$0xff]
      %v553 = vld [vmem:[%s477 + $0x78] sm:$0xff]
      %v554 = vld [vmem:[%s491] sm:$0xff]
      %v555 = vld [vmem:[%s491 + $0x8] sm:$0xff]
      %v556 = vld [vmem:[%s508] sm:$0xff]
      %v557 = vld [vmem:[%s508 + $0x8] sm:$0xff]
      %p558 = scmp.gt.s32.totalorder %s26, 0
      %s559 = scalar_select %p558, 1, 0
      %s560 = scvt.s32.f32 %s559
      %v561 = vstv %s560
      %v562 = vmul.f32 %v554, %v561
      %v563 = vmul.f32 %v555, %v561
      %p564 = scmp.lt.s32.totalorder %s26, 1
      %s565 = scalar_select %p564, 1, 0
      %s566 = scvt.s32.f32 %s565
      %v567 = vstv %s566
      %v568 = vmul.f32 %v556, %v567
      %v569 = vmul.f32 %v557, %v567
      %vm590 = vcmask 1040384
      %v591 = vrot.slane %v562, 7
      %v592 = vrot.slane %v563, 7
      %v593 = vsel %vm590, %v591, %v592
      %v594 = vrot.slane %v538, 7
      %v595 = vrot.slane %v539, 7
      %v596 = vsel %vm590, %v594, %v595
      %v597 = vrot.slane %v540, 7
      %v598 = vrot.slane %v541, 7
      %v599 = vsel %vm590, %v597, %v598
      %v600 = vrot.slane %v542, 7
      %v601 = vrot.slane %v543, 7
      %v602 = vsel %vm590, %v600, %v601
      %v603 = vrot.slane %v544, 7
      %v604 = vrot.slane %v545, 7
      %v605 = vsel %vm590, %v603, %v604
      %v606 = vrot.slane %v546, 7
      %v607 = vrot.slane %v547, 7
      %v608 = vsel %vm590, %v606, %v607
      %v609 = vrot.slane %v548, 7
      %v610 = vrot.slane %v549, 7
      %v611 = vsel %vm590, %v609, %v610
      %v612 = vrot.slane %v550, 7
      %v613 = vrot.slane %v551, 7
      %v614 = vsel %vm590, %v612, %v613
      %v615 = vrot.slane %v552, 7
      %v616 = vrot.slane %v553, 7
      %v617 = vsel %vm590, %v615, %v616
      %v618 = vrot.slane %v568, 7
      %v619 = vrot.slane %v569, 7
      %v620 = vsel %vm590, %v618, %v619
      %v641 = vsel %vm590, 0.0, %v591
      %v642 = vsel %vm590, 0.0, %v594
      %v643 = vsel %vm590, 0.0, %v597
      %v644 = vsel %vm590, 0.0, %v600
      %v645 = vsel %vm590, 0.0, %v603
      %v646 = vsel %vm590, 0.0, %v606
      %v647 = vsel %vm590, 0.0, %v609
      %v648 = vsel %vm590, 0.0, %v612
      %v649 = vsel %vm590, 0.0, %v615
      %v650 = vsel %vm590, 0.0, %v618
      %v651 = vsel %vm590, %v592, 0.0
      %v652 = vsel %vm590, %v595, 0.0
      %v653 = vsel %vm590, %v598, 0.0
      %v654 = vsel %vm590, %v601, 0.0
      %v655 = vsel %vm590, %v604, 0.0
      %v656 = vsel %vm590, %v607, 0.0
      %v657 = vsel %vm590, %v610, 0.0
      %v658 = vsel %vm590, %v613, 0.0
      %v659 = vsel %vm590, %v616, 0.0
      %v660 = vsel %vm590, %v619, 0.0
      %v661 = vld [vmem:[%s3] sm:$0xf]
      %vm678 = vcmask 1046528
      %v679 = vrot.slane %v641, 1
      %v680 = vrot.slane %v593, 1
      %v681 = vsel %vm678, %v679, %v680
      %v682 = vrot.slane %v651, 1
      %v683 = vsel %vm678, %v680, %v682
      %v684 = vrot.slane %v642, 1
      %v685 = vrot.slane %v596, 1
      %v686 = vsel %vm678, %v684, %v685
      %v687 = vrot.slane %v652, 1
      %v688 = vsel %vm678, %v685, %v687
      %v689 = vrot.slane %v643, 1
      %v690 = vrot.slane %v599, 1
      %v691 = vsel %vm678, %v689, %v690
      %v692 = vrot.slane %v653, 1
      %v693 = vsel %vm678, %v690, %v692
      %v694 = vrot.slane %v644, 1
      %v695 = vrot.slane %v602, 1
      %v696 = vsel %vm678, %v694, %v695
      %v697 = vrot.slane %v654, 1
      %v698 = vsel %vm678, %v695, %v697
      %v699 = vrot.slane %v645, 1
      %v700 = vrot.slane %v605, 1
      %v701 = vsel %vm678, %v699, %v700
      %v702 = vrot.slane %v655, 1
      %v703 = vsel %vm678, %v700, %v702
      %v704 = vrot.slane %v646, 1
      %v705 = vrot.slane %v608, 1
      %v706 = vsel %vm678, %v704, %v705
      %v707 = vrot.slane %v656, 1
      %v708 = vsel %vm678, %v705, %v707
      %v709 = vrot.slane %v647, 1
      %v710 = vrot.slane %v611, 1
      %v711 = vsel %vm678, %v709, %v710
      %v712 = vrot.slane %v657, 1
      %v713 = vsel %vm678, %v710, %v712
      %v714 = vrot.slane %v648, 1
      %v715 = vrot.slane %v614, 1
      %v716 = vsel %vm678, %v714, %v715
      %v717 = vrot.slane %v658, 1
      %v718 = vsel %vm678, %v715, %v717
      %s719 = scalar_lea.vmem %s3, 4
      %v720 = vld [vmem:[%s719] sm:$0xf]
      %vm721 = vcmask 31744
      %v722 = vsel %vm721, %v681, 0
      %v724 = vsel %vm721, %v683, 0
      %v726 = vsel %vm721, %v686, 0
      %v728 = vsel %vm721, %v688, 0
      %v730 = vsel %vm721, %v691, 0
      %v732 = vsel %vm721, %v693, 0
      %v734 = vsel %vm721, %v696, 0
      %v736 = vsel %vm721, %v698, 0
      %v738 = vsel %vm721, %v701, 0
      %v740 = vsel %vm721, %v703, 0
      %v742 = vsel %vm721, %v706, 0
      %v744 = vsel %vm721, %v708, 0
      %v746 = vsel %vm721, %v711, 0
      %v748 = vsel %vm721, %v713, 0
      %v750 = vsel %vm721, %v716, 0
      %v752 = vsel %vm721, %v718, 0
      %vm754 = vcmask 1043456
      %v756 = vsel %vm754, %v720, 0
      %758 = vmatpush.msra.mxu0 0.0
      %759 = vmatpush.msra.mxu0 0.0
      %760 = vmatpush.msra.mxu0 0.0
      %761 = vmatpush.msra.mxu0 0.0
      %762 = vmatpush.msra.mxu0 0.0
      %763 = vmatpush.msra.mxu0 0.0
      %764 = vmatpush.msra.mxu0 0.0
      %765 = vmatpush.msra.mxu0 0.0
      %766 = vmatpush.msra.mxu0 0.0
      %767 = vmatpush.msra.mxu0 0.0
      %768 = vmatpush.msra.mxu0 0.0
      %769 = vmatpush.msra.mxu0 0.0
      %770 = vmatpush.msra.mxu0 0.0
      %771 = vmatpush.msra.mxu0 0.0
      %772 = vmatpush.msra.mxu0 0.0
      %773 = vmatpush.msra.mxu0 %v756
      %774 = vmatmul.f32.gmra.mxu0 %v722
      %v775 = vpop.f32.mrf.mxu0
      %v776 = vadd.f32 0.0, %v775
      %777 = vmatmul.f32.gmra.mxu0 %v724
      %v778 = vpop.f32.mrf.mxu0
      %v779 = vadd.f32 0.0, %v778
      %780 = vmatmul.f32.gmra.mxu0 %v726
      %v781 = vpop.f32.mrf.mxu0
      %v782 = vadd.f32 0.0, %v781
      %783 = vmatmul.f32.gmra.mxu0 %v728
      %v784 = vpop.f32.mrf.mxu0
      %v785 = vadd.f32 0.0, %v784
      %786 = vmatmul.f32.gmra.mxu0 %v730
      %v787 = vpop.f32.mrf.mxu0
      %v788 = vadd.f32 0.0, %v787
      %789 = vmatmul.f32.gmra.mxu0 %v732
      %v790 = vpop.f32.mrf.mxu0
      %v791 = vadd.f32 0.0, %v790
      %792 = vmatmul.f32.gmra.mxu0 %v734
      %v793 = vpop.f32.mrf.mxu0
      %v794 = vadd.f32 0.0, %v793
      %795 = vmatmul.f32.gmra.mxu0 %v736
      %v796 = vpop.f32.mrf.mxu0
      %v797 = vadd.f32 0.0, %v796
      %798 = vmatmul.f32.gmra.mxu0 %v738
      %v799 = vpop.f32.mrf.mxu0
      %v800 = vadd.f32 0.0, %v799
      %801 = vmatmul.f32.gmra.mxu0 %v740
      %v802 = vpop.f32.mrf.mxu0
      %v803 = vadd.f32 0.0, %v802
      %804 = vmatmul.f32.gmra.mxu0 %v742
      %v805 = vpop.f32.mrf.mxu0
      %v806 = vadd.f32 0.0, %v805
      %807 = vmatmul.f32.gmra.mxu0 %v744
      %v808 = vpop.f32.mrf.mxu0
      %v809 = vadd.f32 0.0, %v808
      %810 = vmatmul.f32.gmra.mxu0 %v746
      %v811 = vpop.f32.mrf.mxu0
      %v812 = vadd.f32 0.0, %v811
      %813 = vmatmul.f32.gmra.mxu0 %v748
      %v814 = vpop.f32.mrf.mxu0
      %v815 = vadd.f32 0.0, %v814
      %816 = vmatmul.f32.gmra.mxu0 %v750
      %v817 = vpop.f32.mrf.mxu0
      %v818 = vadd.f32 0.0, %v817
      %819 = vmatmul.f32.gmra.mxu0 %v752
      %v820 = vpop.f32.mrf.mxu0
      %v821 = vadd.f32 0.0, %v820
      %822 = vdwg.mxu0
      %v823 = vsel %vm721, %v641, 0
      %v825 = vsel %vm721, %v593, 0
      %v827 = vsel %vm721, %v642, 0
      %v829 = vsel %vm721, %v596, 0
      %v831 = vsel %vm721, %v643, 0
      %v833 = vsel %vm721, %v599, 0
      %v835 = vsel %vm721, %v644, 0
      %v837 = vsel %vm721, %v602, 0
      %v839 = vsel %vm721, %v645, 0
      %v841 = vsel %vm721, %v605, 0
      %v843 = vsel %vm721, %v646, 0
      %v845 = vsel %vm721, %v608, 0
      %v847 = vsel %vm721, %v647, 0
      %v849 = vsel %vm721, %v611, 0
      %v851 = vsel %vm721, %v648, 0
      %v853 = vsel %vm721, %v614, 0
      %v856 = vsel %vm754, %v661, 0
      %858 = vmatpush.msra.mxu0 0.0
      %859 = vmatpush.msra.mxu0 0.0
      %860 = vmatpush.msra.mxu0 0.0
      %861 = vmatpush.msra.mxu0 0.0
      %862 = vmatpush.msra.mxu0 0.0
      %863 = vmatpush.msra.mxu0 0.0
      %864 = vmatpush.msra.mxu0 0.0
      %865 = vmatpush.msra.mxu0 0.0
      %866 = vmatpush.msra.mxu0 0.0
      %867 = vmatpush.msra.mxu0 0.0
      %868 = vmatpush.msra.mxu0 0.0
      %869 = vmatpush.msra.mxu0 0.0
      %870 = vmatpush.msra.mxu0 0.0
      %871 = vmatpush.msra.mxu0 0.0
      %872 = vmatpush.msra.mxu0 0.0
      %873 = vmatpush.msra.mxu0 %v856
      %874 = vmatmul.f32.gmra.mxu0 %v823
      %v875 = vpop.f32.mrf.mxu0
      %v876 = vadd.f32 %v776, %v875
      %877 = vmatmul.f32.gmra.mxu0 %v825
      %v878 = vpop.f32.mrf.mxu0
      %v879 = vadd.f32 %v779, %v878
      %880 = vmatmul.f32.gmra.mxu0 %v827
      %v881 = vpop.f32.mrf.mxu0
      %v882 = vadd.f32 %v782, %v881
      %883 = vmatmul.f32.gmra.mxu0 %v829
      %v884 = vpop.f32.mrf.mxu0
      %v885 = vadd.f32 %v785, %v884
      %886 = vmatmul.f32.gmra.mxu0 %v831
      %v887 = vpop.f32.mrf.mxu0
      %v888 = vadd.f32 %v788, %v887
      %889 = vmatmul.f32.gmra.mxu0 %v833
      %v890 = vpop.f32.mrf.mxu0
      %v891 = vadd.f32 %v791, %v890
      %892 = vmatmul.f32.gmra.mxu0 %v835
      %v893 = vpop.f32.mrf.mxu0
      %v894 = vadd.f32 %v794, %v893
      %895 = vmatmul.f32.gmra.mxu0 %v837
      %v896 = vpop.f32.mrf.mxu0
      %v897 = vadd.f32 %v797, %v896
      %898 = vmatmul.f32.gmra.mxu0 %v839
      %v899 = vpop.f32.mrf.mxu0
      %v900 = vadd.f32 %v800, %v899
      %901 = vmatmul.f32.gmra.mxu0 %v841
      %v902 = vpop.f32.mrf.mxu0
      %v903 = vadd.f32 %v803, %v902
      %904 = vmatmul.f32.gmra.mxu0 %v843
      %v905 = vpop.f32.mrf.mxu0
      %v906 = vadd.f32 %v806, %v905
      %907 = vmatmul.f32.gmra.mxu0 %v845
      %v908 = vpop.f32.mrf.mxu0
      %v909 = vadd.f32 %v809, %v908
      %910 = vmatmul.f32.gmra.mxu0 %v847
      %v911 = vpop.f32.mrf.mxu0
      %v912 = vadd.f32 %v812, %v911
      %913 = vmatmul.f32.gmra.mxu0 %v849
      %v914 = vpop.f32.mrf.mxu0
      %v915 = vadd.f32 %v815, %v914
      %916 = vmatmul.f32.gmra.mxu0 %v851
      %v917 = vpop.f32.mrf.mxu0
      %v918 = vadd.f32 %v818, %v917
      %919 = vmatmul.f32.gmra.mxu0 %v853
      %v920 = vpop.f32.mrf.mxu0
      %v921 = vadd.f32 %v821, %v920
      %922 = vdwg.mxu0
      %vm923 = vcmask 1045504
      %v924 = vrot.slane %v641, 2
      %v925 = vrot.slane %v593, 2
      %v926 = vsel %vm923, %v924, %v925
      %v927 = vrot.slane %v651, 2
      %v928 = vsel %vm923, %v925, %v927
      %v929 = vrot.slane %v642, 2
      %v930 = vrot.slane %v596, 2
      %v931 = vsel %vm923, %v929, %v930
      %v932 = vrot.slane %v652, 2
      %v933 = vsel %vm923, %v930, %v932
      %v934 = vrot.slane %v643, 2
      %v935 = vrot.slane %v599, 2
      %v936 = vsel %vm923, %v934, %v935
      %v937 = vrot.slane %v653, 2
      %v938 = vsel %vm923, %v935, %v937
      %v939 = vrot.slane %v644, 2
      %v940 = vrot.slane %v602, 2
      %v941 = vsel %vm923, %v939, %v940
      %v942 = vrot.slane %v654, 2
      %v943 = vsel %vm923, %v940, %v942
      %v944 = vrot.slane %v645, 2
      %v945 = vrot.slane %v605, 2
      %v946 = vsel %vm923, %v944, %v945
      %v947 = vrot.slane %v655, 2
      %v948 = vsel %vm923, %v945, %v947
      %v949 = vrot.slane %v646, 2
      %v950 = vrot.slane %v608, 2
      %v951 = vsel %vm923, %v949, %v950
      %v952 = vrot.slane %v656, 2
      %v953 = vsel %vm923, %v950, %v952
      %v954 = vrot.slane %v647, 2
      %v955 = vrot.slane %v611, 2
      %v956 = vsel %vm923, %v954, %v955
      %v957 = vrot.slane %v657, 2
      %v958 = vsel %vm923, %v955, %v957
      %v959 = vrot.slane %v648, 2
      %v960 = vrot.slane %v614, 2
      %v961 = vsel %vm923, %v959, %v960
      %v962 = vrot.slane %v658, 2
      %v963 = vsel %vm923, %v960, %v962
      %s964 = scalar_lea.vmem %s3, 8
      %v965 = vld [vmem:[%s964] sm:$0xf]
      %v966 = vsel %vm721, %v926, 0
      %v968 = vsel %vm721, %v928, 0
      %v970 = vsel %vm721, %v931, 0
      %v972 = vsel %vm721, %v933, 0
      %v974 = vsel %vm721, %v936, 0
      %v976 = vsel %vm721, %v938, 0
      %v978 = vsel %vm721, %v941, 0
      %v980 = vsel %vm721, %v943, 0
      %v982 = vsel %vm721, %v946, 0
      %v984 = vsel %vm721, %v948, 0
      %v986 = vsel %vm721, %v951, 0
      %v988 = vsel %vm721, %v953, 0
      %v990 = vsel %vm721, %v956, 0
      %v992 = vsel %vm721, %v958, 0
      %v994 = vsel %vm721, %v961, 0
      %v996 = vsel %vm721, %v963, 0
      %v999 = vsel %vm754, %v965, 0
      %1001 = vmatpush.msra.mxu0 0.0
      %1002 = vmatpush.msra.mxu0 0.0
      %1003 = vmatpush.msra.mxu0 0.0
      %1004 = vmatpush.msra.mxu0 0.0
      %1005 = vmatpush.msra.mxu0 0.0
      %1006 = vmatpush.msra.mxu0 0.0
      %1007 = vmatpush.msra.mxu0 0.0
      %1008 = vmatpush.msra.mxu0 0.0
      %1009 = vmatpush.msra.mxu0 0.0
      %1010 = vmatpush.msra.mxu0 0.0
      %1011 = vmatpush.msra.mxu0 0.0
      %1012 = vmatpush.msra.mxu0 0.0
      %1013 = vmatpush.msra.mxu0 0.0
      %1014 = vmatpush.msra.mxu0 0.0
      %1015 = vmatpush.msra.mxu0 0.0
      %1016 = vmatpush.msra.mxu0 %v999
      %1017 = vmatmul.f32.gmra.mxu0 %v966
      %v1018 = vpop.f32.mrf.mxu0
      %v1019 = vadd.f32 0.0, %v1018
      %1020 = vmatmul.f32.gmra.mxu0 %v968
      %v1021 = vpop.f32.mrf.mxu0
      %v1022 = vadd.f32 0.0, %v1021
      %1023 = vmatmul.f32.gmra.mxu0 %v970
      %v1024 = vpop.f32.mrf.mxu0
      %v1025 = vadd.f32 0.0, %v1024
      %1026 = vmatmul.f32.gmra.mxu0 %v972
      %v1027 = vpop.f32.mrf.mxu0
      %v1028 = vadd.f32 0.0, %v1027
      %1029 = vmatmul.f32.gmra.mxu0 %v974
      %v1030 = vpop.f32.mrf.mxu0
      %v1031 = vadd.f32 0.0, %v1030
      %1032 = vmatmul.f32.gmra.mxu0 %v976
      %v1033 = vpop.f32.mrf.mxu0
      %v1034 = vadd.f32 0.0, %v1033
      %1035 = vmatmul.f32.gmra.mxu0 %v978
      %v1036 = vpop.f32.mrf.mxu0
      %v1037 = vadd.f32 0.0, %v1036
      %1038 = vmatmul.f32.gmra.mxu0 %v980
      %v1039 = vpop.f32.mrf.mxu0
      %v1040 = vadd.f32 0.0, %v1039
      %1041 = vmatmul.f32.gmra.mxu0 %v982
      %v1042 = vpop.f32.mrf.mxu0
      %v1043 = vadd.f32 0.0, %v1042
      %1044 = vmatmul.f32.gmra.mxu0 %v984
      %v1045 = vpop.f32.mrf.mxu0
      %v1046 = vadd.f32 0.0, %v1045
      %1047 = vmatmul.f32.gmra.mxu0 %v986
      %v1048 = vpop.f32.mrf.mxu0
      %v1049 = vadd.f32 0.0, %v1048
      %1050 = vmatmul.f32.gmra.mxu0 %v988
      %v1051 = vpop.f32.mrf.mxu0
      %v1052 = vadd.f32 0.0, %v1051
      %1053 = vmatmul.f32.gmra.mxu0 %v990
      %v1054 = vpop.f32.mrf.mxu0
      %v1055 = vadd.f32 0.0, %v1054
      %1056 = vmatmul.f32.gmra.mxu0 %v992
      %v1057 = vpop.f32.mrf.mxu0
      %v1058 = vadd.f32 0.0, %v1057
      %1059 = vmatmul.f32.gmra.mxu0 %v994
      %v1060 = vpop.f32.mrf.mxu0
      %v1061 = vadd.f32 0.0, %v1060
      %1062 = vmatmul.f32.gmra.mxu0 %v996
      %v1063 = vpop.f32.mrf.mxu0
      %v1064 = vadd.f32 0.0, %v1063
      %1065 = vdwg.mxu0
      %v1066 = vadd.f32 %v876, %v1019
      %v1067 = vadd.f32 %v879, %v1022
      %v1068 = vadd.f32 %v882, %v1025
      %v1069 = vadd.f32 %v885, %v1028
      %v1070 = vadd.f32 %v888, %v1031
      %v1071 = vadd.f32 %v891, %v1034
      %v1072 = vadd.f32 %v894, %v1037
      %v1073 = vadd.f32 %v897, %v1040
      %v1074 = vadd.f32 %v900, %v1043
      %v1075 = vadd.f32 %v903, %v1046
      %v1076 = vadd.f32 %v906, %v1049
      %v1077 = vadd.f32 %v909, %v1052
      %v1078 = vadd.f32 %v912, %v1055
      %v1079 = vadd.f32 %v915, %v1058
      %v1080 = vadd.f32 %v918, %v1061
      %v1081 = vadd.f32 %v921, %v1064
      %s1082 = scalar_lea.vmem %s3, 12
      %v1083 = vld [vmem:[%s1082] sm:$0xf]
      %v1085 = vsel %vm721, %v649, 0
      %v1087 = vsel %vm721, %v617, 0
      %v1090 = vsel %vm754, %v1083, 0
      %1092 = vmatpush.msra.mxu0 0.0
      %1093 = vmatpush.msra.mxu0 0.0
      %1094 = vmatpush.msra.mxu0 0.0
      %1095 = vmatpush.msra.mxu0 0.0
      %1096 = vmatpush.msra.mxu0 0.0
      %1097 = vmatpush.msra.mxu0 0.0
      %1098 = vmatpush.msra.mxu0 0.0
      %1099 = vmatpush.msra.mxu0 0.0
      %1100 = vmatpush.msra.mxu0 0.0
      %1101 = vmatpush.msra.mxu0 0.0
      %1102 = vmatpush.msra.mxu0 0.0
      %1103 = vmatpush.msra.mxu0 0.0
      %1104 = vmatpush.msra.mxu0 0.0
      %1105 = vmatpush.msra.mxu0 0.0
      %1106 = vmatpush.msra.mxu0 0.0
      %1107 = vmatpush.msra.mxu0 %v1090
      %1108 = vmatmul.f32.gmra.mxu0 %v827
      %v1109 = vpop.f32.mrf.mxu0
      %v1110 = vadd.f32 0.0, %v1109
      %1111 = vmatmul.f32.gmra.mxu0 %v829
      %v1112 = vpop.f32.mrf.mxu0
      %v1113 = vadd.f32 0.0, %v1112
      %1114 = vmatmul.f32.gmra.mxu0 %v831
      %v1115 = vpop.f32.mrf.mxu0
      %v1116 = vadd.f32 0.0, %v1115
      %1117 = vmatmul.f32.gmra.mxu0 %v833
      %v1118 = vpop.f32.mrf.mxu0
      %v1119 = vadd.f32 0.0, %v1118
      %1120 = vmatmul.f32.gmra.mxu0 %v835
      %v1121 = vpop.f32.mrf.mxu0
      %v1122 = vadd.f32 0.0, %v1121
      %1123 = vmatmul.f32.gmra.mxu0 %v837
      %v1124 = vpop.f32.mrf.mxu0
      %v1125 = vadd.f32 0.0, %v1124
      %1126 = vmatmul.f32.gmra.mxu0 %v839
      %v1127 = vpop.f32.mrf.mxu0
      %v1128 = vadd.f32 0.0, %v1127
      %1129 = vmatmul.f32.gmra.mxu0 %v841
      %v1130 = vpop.f32.mrf.mxu0
      %v1131 = vadd.f32 0.0, %v1130
      %1132 = vmatmul.f32.gmra.mxu0 %v843
      %v1133 = vpop.f32.mrf.mxu0
      %v1134 = vadd.f32 0.0, %v1133
      %1135 = vmatmul.f32.gmra.mxu0 %v845
      %v1136 = vpop.f32.mrf.mxu0
      %v1137 = vadd.f32 0.0, %v1136
      %1138 = vmatmul.f32.gmra.mxu0 %v847
      %v1139 = vpop.f32.mrf.mxu0
      %v1140 = vadd.f32 0.0, %v1139
      %1141 = vmatmul.f32.gmra.mxu0 %v849
      %v1142 = vpop.f32.mrf.mxu0
      %v1143 = vadd.f32 0.0, %v1142
      %1144 = vmatmul.f32.gmra.mxu0 %v851
      %v1145 = vpop.f32.mrf.mxu0
      %v1146 = vadd.f32 0.0, %v1145
      %1147 = vmatmul.f32.gmra.mxu0 %v853
      %v1148 = vpop.f32.mrf.mxu0
      %v1149 = vadd.f32 0.0, %v1148
      %1150 = vmatmul.f32.gmra.mxu0 %v1085
      %v1151 = vpop.f32.mrf.mxu0
      %v1152 = vadd.f32 0.0, %v1151
      %1153 = vmatmul.f32.gmra.mxu0 %v1087
      %v1154 = vpop.f32.mrf.mxu0
      %v1155 = vadd.f32 0.0, %v1154
      %1156 = vdwg.mxu0
      %v1157 = vadd.f32 %v1066, %v1110
      %v1158 = vadd.f32 %v1067, %v1113
      %v1159 = vadd.f32 %v1068, %v1116
      %v1160 = vadd.f32 %v1069, %v1119
      %v1161 = vadd.f32 %v1070, %v1122
      %v1162 = vadd.f32 %v1071, %v1125
      %v1163 = vadd.f32 %v1072, %v1128
      %v1164 = vadd.f32 %v1073, %v1131
      %v1165 = vadd.f32 %v1074, %v1134
      %v1166 = vadd.f32 %v1075, %v1137
      %v1167 = vadd.f32 %v1076, %v1140
      %v1168 = vadd.f32 %v1077, %v1143
      %v1169 = vadd.f32 %v1078, %v1146
      %v1170 = vadd.f32 %v1079, %v1149
      %v1171 = vadd.f32 %v1080, %v1152
      %v1172 = vadd.f32 %v1081, %v1155
      %v1174 = vrot.slane %v649, 1
      %v1175 = vrot.slane %v617, 1
      %v1176 = vsel %vm678, %v1174, %v1175
      %v1177 = vrot.slane %v659, 1
      %v1178 = vsel %vm678, %v1175, %v1177
      %s1179 = scalar_lea.vmem %s3, 16
      %v1180 = vld [vmem:[%s1179] sm:$0xf]
      %v1181 = vsel %vm721, %v1176, 0
      %v1183 = vsel %vm721, %v1178, 0
      %v1186 = vsel %vm754, %v1180, 0
      %1188 = vmatpush.msra.mxu0 0.0
      %1189 = vmatpush.msra.mxu0 0.0
      %1190 = vmatpush.msra.mxu0 0.0
      %1191 = vmatpush.msra.mxu0 0.0
      %1192 = vmatpush.msra.mxu0 0.0
      %1193 = vmatpush.msra.mxu0 0.0
      %1194 = vmatpush.msra.mxu0 0.0
      %1195 = vmatpush.msra.mxu0 0.0
      %1196 = vmatpush.msra.mxu0 0.0
      %1197 = vmatpush.msra.mxu0 0.0
      %1198 = vmatpush.msra.mxu0 0.0
      %1199 = vmatpush.msra.mxu0 0.0
      %1200 = vmatpush.msra.mxu0 0.0
      %1201 = vmatpush.msra.mxu0 0.0
      %1202 = vmatpush.msra.mxu0 0.0
      %1203 = vmatpush.msra.mxu0 %v1186
      %1204 = vmatmul.f32.gmra.mxu0 %v726
      %v1205 = vpop.f32.mrf.mxu0
      %v1206 = vadd.f32 0.0, %v1205
      %1207 = vmatmul.f32.gmra.mxu0 %v728
      %v1208 = vpop.f32.mrf.mxu0
      %v1209 = vadd.f32 0.0, %v1208
      %1210 = vmatmul.f32.gmra.mxu0 %v730
      %v1211 = vpop.f32.mrf.mxu0
      %v1212 = vadd.f32 0.0, %v1211
      %1213 = vmatmul.f32.gmra.mxu0 %v732
      %v1214 = vpop.f32.mrf.mxu0
      %v1215 = vadd.f32 0.0, %v1214
      %1216 = vmatmul.f32.gmra.mxu0 %v734
      %v1217 = vpop.f32.mrf.mxu0
      %v1218 = vadd.f32 0.0, %v1217
      %1219 = vmatmul.f32.gmra.mxu0 %v736
      %v1220 = vpop.f32.mrf.mxu0
      %v1221 = vadd.f32 0.0, %v1220
      %1222 = vmatmul.f32.gmra.mxu0 %v738
      %v1223 = vpop.f32.mrf.mxu0
      %v1224 = vadd.f32 0.0, %v1223
      %1225 = vmatmul.f32.gmra.mxu0 %v740
      %v1226 = vpop.f32.mrf.mxu0
      %v1227 = vadd.f32 0.0, %v1226
      %1228 = vmatmul.f32.gmra.mxu0 %v742
      %v1229 = vpop.f32.mrf.mxu0
      %v1230 = vadd.f32 0.0, %v1229
      %1231 = vmatmul.f32.gmra.mxu0 %v744
      %v1232 = vpop.f32.mrf.mxu0
      %v1233 = vadd.f32 0.0, %v1232
      %1234 = vmatmul.f32.gmra.mxu0 %v746
      %v1235 = vpop.f32.mrf.mxu0
      %v1236 = vadd.f32 0.0, %v1235
      %1237 = vmatmul.f32.gmra.mxu0 %v748
      %v1238 = vpop.f32.mrf.mxu0
      %v1239 = vadd.f32 0.0, %v1238
      %1240 = vmatmul.f32.gmra.mxu0 %v750
      %v1241 = vpop.f32.mrf.mxu0
      %v1242 = vadd.f32 0.0, %v1241
      %1243 = vmatmul.f32.gmra.mxu0 %v752
      %v1244 = vpop.f32.mrf.mxu0
      %v1245 = vadd.f32 0.0, %v1244
      %1246 = vmatmul.f32.gmra.mxu0 %v1181
      %v1247 = vpop.f32.mrf.mxu0
      %v1248 = vadd.f32 0.0, %v1247
      %1249 = vmatmul.f32.gmra.mxu0 %v1183
      %v1250 = vpop.f32.mrf.mxu0
      %v1251 = vadd.f32 0.0, %v1250
      %1252 = vdwg.mxu0
      %v1253 = vadd.f32 %v1157, %v1206
      %v1254 = vadd.f32 %v1158, %v1209
      %v1255 = vadd.f32 %v1159, %v1212
      %v1256 = vadd.f32 %v1160, %v1215
      %v1257 = vadd.f32 %v1161, %v1218
      %v1258 = vadd.f32 %v1162, %v1221
      %v1259 = vadd.f32 %v1163, %v1224
      %v1260 = vadd.f32 %v1164, %v1227
      %v1261 = vadd.f32 %v1165, %v1230
      %v1262 = vadd.f32 %v1166, %v1233
      %v1263 = vadd.f32 %v1167, %v1236
      %v1264 = vadd.f32 %v1168, %v1239
      %v1265 = vadd.f32 %v1169, %v1242
      %v1266 = vadd.f32 %v1170, %v1245
      %v1267 = vadd.f32 %v1171, %v1248
      %v1268 = vadd.f32 %v1172, %v1251
      %v1269 = vrot.slane %v649, 2
      %v1270 = vrot.slane %v617, 2
      %v1271 = vsel %vm923, %v1269, %v1270
      %v1272 = vrot.slane %v659, 2
      %v1273 = vsel %vm923, %v1270, %v1272
      %s1274 = scalar_lea.vmem %s3, 20
      %v1275 = vld [vmem:[%s1274] sm:$0xf]
      %v1276 = vsel %vm721, %v1271, 0
      %v1278 = vsel %vm721, %v1273, 0
      %v1281 = vsel %vm754, %v1275, 0
      %1283 = vmatpush.msra.mxu0 0.0
      %1284 = vmatpush.msra.mxu0 0.0
      %1285 = vmatpush.msra.mxu0 0.0
      %1286 = vmatpush.msra.mxu0 0.0
      %1287 = vmatpush.msra.mxu0 0.0
      %1288 = vmatpush.msra.mxu0 0.0
      %1289 = vmatpush.msra.mxu0 0.0
      %1290 = vmatpush.msra.mxu0 0.0
      %1291 = vmatpush.msra.mxu0 0.0
      %1292 = vmatpush.msra.mxu0 0.0
      %1293 = vmatpush.msra.mxu0 0.0
      %1294 = vmatpush.msra.mxu0 0.0
      %1295 = vmatpush.msra.mxu0 0.0
      %1296 = vmatpush.msra.mxu0 0.0
      %1297 = vmatpush.msra.mxu0 0.0
      %1298 = vmatpush.msra.mxu0 %v1281
      %1299 = vmatmul.f32.gmra.mxu0 %v970
      %v1300 = vpop.f32.mrf.mxu0
      %v1301 = vadd.f32 0.0, %v1300
      %1302 = vmatmul.f32.gmra.mxu0 %v972
      %v1303 = vpop.f32.mrf.mxu0
      %v1304 = vadd.f32 0.0, %v1303
      %1305 = vmatmul.f32.gmra.mxu0 %v974
      %v1306 = vpop.f32.mrf.mxu0
      %v1307 = vadd.f32 0.0, %v1306
      %1308 = vmatmul.f32.gmra.mxu0 %v976
      %v1309 = vpop.f32.mrf.mxu0
      %v1310 = vadd.f32 0.0, %v1309
      %1311 = vmatmul.f32.gmra.mxu0 %v978
      %v1312 = vpop.f32.mrf.mxu0
      %v1313 = vadd.f32 0.0, %v1312
      %1314 = vmatmul.f32.gmra.mxu0 %v980
      %v1315 = vpop.f32.mrf.mxu0
      %v1316 = vadd.f32 0.0, %v1315
      %1317 = vmatmul.f32.gmra.mxu0 %v982
      %v1318 = vpop.f32.mrf.mxu0
      %v1319 = vadd.f32 0.0, %v1318
      %1320 = vmatmul.f32.gmra.mxu0 %v984
      %v1321 = vpop.f32.mrf.mxu0
      %v1322 = vadd.f32 0.0, %v1321
      %1323 = vmatmul.f32.gmra.mxu0 %v986
      %v1324 = vpop.f32.mrf.mxu0
      %v1325 = vadd.f32 0.0, %v1324
      %1326 = vmatmul.f32.gmra.mxu0 %v988
      %v1327 = vpop.f32.mrf.mxu0
      %v1328 = vadd.f32 0.0, %v1327
      %1329 = vmatmul.f32.gmra.mxu0 %v990
      %v1330 = vpop.f32.mrf.mxu0
      %v1331 = vadd.f32 0.0, %v1330
      %1332 = vmatmul.f32.gmra.mxu0 %v992
      %v1333 = vpop.f32.mrf.mxu0
      %v1334 = vadd.f32 0.0, %v1333
      %1335 = vmatmul.f32.gmra.mxu0 %v994
      %v1336 = vpop.f32.mrf.mxu0
      %v1337 = vadd.f32 0.0, %v1336
      %1338 = vmatmul.f32.gmra.mxu0 %v996
      %v1339 = vpop.f32.mrf.mxu0
      %v1340 = vadd.f32 0.0, %v1339
      %1341 = vmatmul.f32.gmra.mxu0 %v1276
      %v1342 = vpop.f32.mrf.mxu0
      %v1343 = vadd.f32 0.0, %v1342
      %1344 = vmatmul.f32.gmra.mxu0 %v1278
      %v1345 = vpop.f32.mrf.mxu0
      %v1346 = vadd.f32 0.0, %v1345
      %1347 = vdwg.mxu0
      %v1348 = vadd.f32 %v1253, %v1301
      %v1349 = vadd.f32 %v1254, %v1304
      %v1350 = vadd.f32 %v1255, %v1307
      %v1351 = vadd.f32 %v1256, %v1310
      %v1352 = vadd.f32 %v1257, %v1313
      %v1353 = vadd.f32 %v1258, %v1316
      %v1354 = vadd.f32 %v1259, %v1319
      %v1355 = vadd.f32 %v1260, %v1322
      %v1356 = vadd.f32 %v1261, %v1325
      %v1357 = vadd.f32 %v1262, %v1328
      %v1358 = vadd.f32 %v1263, %v1331
      %v1359 = vadd.f32 %v1264, %v1334
      %v1360 = vadd.f32 %v1265, %v1337
      %v1361 = vadd.f32 %v1266, %v1340
      %v1362 = vadd.f32 %v1267, %v1343
      %v1363 = vadd.f32 %v1268, %v1346
      %s1364 = scalar_lea.vmem %s3, 24
      %v1365 = vld [vmem:[%s1364] sm:$0xf]
      %v1367 = vsel %vm721, %v650, 0
      %v1369 = vsel %vm721, %v620, 0
      %v1372 = vsel %vm754, %v1365, 0
      %1374 = vmatpush.msra.mxu0 0.0
      %1375 = vmatpush.msra.mxu0 0.0
      %1376 = vmatpush.msra.mxu0 0.0
      %1377 = vmatpush.msra.mxu0 0.0
      %1378 = vmatpush.msra.mxu0 0.0
      %1379 = vmatpush.msra.mxu0 0.0
      %1380 = vmatpush.msra.mxu0 0.0
      %1381 = vmatpush.msra.mxu0 0.0
      %1382 = vmatpush.msra.mxu0 0.0
      %1383 = vmatpush.msra.mxu0 0.0
      %1384 = vmatpush.msra.mxu0 0.0
      %1385 = vmatpush.msra.mxu0 0.0
      %1386 = vmatpush.msra.mxu0 0.0
      %1387 = vmatpush.msra.mxu0 0.0
      %1388 = vmatpush.msra.mxu0 0.0
      %1389 = vmatpush.msra.mxu0 %v1372
      %1390 = vmatmul.f32.gmra.mxu0 %v831
      %v1391 = vpop.f32.mrf.mxu0
      %v1392 = vadd.f32 0.0, %v1391
      %1393 = vmatmul.f32.gmra.mxu0 %v833
      %v1394 = vpop.f32.mrf.mxu0
      %v1395 = vadd.f32 0.0, %v1394
      %1396 = vmatmul.f32.gmra.mxu0 %v835
      %v1397 = vpop.f32.mrf.mxu0
      %v1398 = vadd.f32 0.0, %v1397
      %1399 = vmatmul.f32.gmra.mxu0 %v837
      %v1400 = vpop.f32.mrf.mxu0
      %v1401 = vadd.f32 0.0, %v1400
      %1402 = vmatmul.f32.gmra.mxu0 %v839
      %v1403 = vpop.f32.mrf.mxu0
      %v1404 = vadd.f32 0.0, %v1403
      %1405 = vmatmul.f32.gmra.mxu0 %v841
      %v1406 = vpop.f32.mrf.mxu0
      %v1407 = vadd.f32 0.0, %v1406
      %1408 = vmatmul.f32.gmra.mxu0 %v843
      %v1409 = vpop.f32.mrf.mxu0
      %v1410 = vadd.f32 0.0, %v1409
      %1411 = vmatmul.f32.gmra.mxu0 %v845
      %v1412 = vpop.f32.mrf.mxu0
      %v1413 = vadd.f32 0.0, %v1412
      %1414 = vmatmul.f32.gmra.mxu0 %v847
      %v1415 = vpop.f32.mrf.mxu0
      %v1416 = vadd.f32 0.0, %v1415
      %1417 = vmatmul.f32.gmra.mxu0 %v849
      %v1418 = vpop.f32.mrf.mxu0
      %v1419 = vadd.f32 0.0, %v1418
      %1420 = vmatmul.f32.gmra.mxu0 %v851
      %v1421 = vpop.f32.mrf.mxu0
      %v1422 = vadd.f32 0.0, %v1421
      %1423 = vmatmul.f32.gmra.mxu0 %v853
      %v1424 = vpop.f32.mrf.mxu0
      %v1425 = vadd.f32 0.0, %v1424
      %1426 = vmatmul.f32.gmra.mxu0 %v1085
      %v1427 = vpop.f32.mrf.mxu0
      %v1428 = vadd.f32 0.0, %v1427
      %1429 = vmatmul.f32.gmra.mxu0 %v1087
      %v1430 = vpop.f32.mrf.mxu0
      %v1431 = vadd.f32 0.0, %v1430
      %1432 = vmatmul.f32.gmra.mxu0 %v1367
      %v1433 = vpop.f32.mrf.mxu0
      %v1434 = vadd.f32 0.0, %v1433
      %1435 = vmatmul.f32.gmra.mxu0 %v1369
      %v1436 = vpop.f32.mrf.mxu0
      %v1437 = vadd.f32 0.0, %v1436
      %1438 = vdwg.mxu0
      %v1439 = vadd.f32 %v1348, %v1392
      %v1440 = vadd.f32 %v1349, %v1395
      %v1441 = vadd.f32 %v1350, %v1398
      %v1442 = vadd.f32 %v1351, %v1401
      %v1443 = vadd.f32 %v1352, %v1404
      %v1444 = vadd.f32 %v1353, %v1407
      %v1445 = vadd.f32 %v1354, %v1410
      %v1446 = vadd.f32 %v1355, %v1413
      %v1447 = vadd.f32 %v1356, %v1416
      %v1448 = vadd.f32 %v1357, %v1419
      %v1449 = vadd.f32 %v1358, %v1422
      %v1450 = vadd.f32 %v1359, %v1425
      %v1451 = vadd.f32 %v1360, %v1428
      %v1452 = vadd.f32 %v1361, %v1431
      %v1453 = vadd.f32 %v1362, %v1434
      %v1454 = vadd.f32 %v1363, %v1437
      %v1456 = vrot.slane %v650, 1
      %v1457 = vrot.slane %v620, 1
      %v1458 = vsel %vm678, %v1456, %v1457
      %v1459 = vrot.slane %v660, 1
      %v1460 = vsel %vm678, %v1457, %v1459
      %s1461 = scalar_lea.vmem %s3, 28
      %v1462 = vld [vmem:[%s1461] sm:$0xf]
      %v1463 = vsel %vm721, %v1458, 0
      %v1465 = vsel %vm721, %v1460, 0
      %v1468 = vsel %vm754, %v1462, 0
      %1470 = vmatpush.msra.mxu0 0.0
      %1471 = vmatpush.msra.mxu0 0.0
      %1472 = vmatpush.msra.mxu0 0.0
      %1473 = vmatpush.msra.mxu0 0.0
      %1474 = vmatpush.msra.mxu0 0.0
      %1475 = vmatpush.msra.mxu0 0.0
      %1476 = vmatpush.msra.mxu0 0.0
      %1477 = vmatpush.msra.mxu0 0.0
      %1478 = vmatpush.msra.mxu0 0.0
      %1479 = vmatpush.msra.mxu0 0.0
      %1480 = vmatpush.msra.mxu0 0.0
      %1481 = vmatpush.msra.mxu0 0.0
      %1482 = vmatpush.msra.mxu0 0.0
      %1483 = vmatpush.msra.mxu0 0.0
      %1484 = vmatpush.msra.mxu0 0.0
      %1485 = vmatpush.msra.mxu0 %v1468
      %1486 = vmatmul.f32.gmra.mxu0 %v730
      %v1487 = vpop.f32.mrf.mxu0
      %v1488 = vadd.f32 0.0, %v1487
      %1489 = vmatmul.f32.gmra.mxu0 %v732
      %v1490 = vpop.f32.mrf.mxu0
      %v1491 = vadd.f32 0.0, %v1490
      %1492 = vmatmul.f32.gmra.mxu0 %v734
      %v1493 = vpop.f32.mrf.mxu0
      %v1494 = vadd.f32 0.0, %v1493
      %1495 = vmatmul.f32.gmra.mxu0 %v736
      %v1496 = vpop.f32.mrf.mxu0
      %v1497 = vadd.f32 0.0, %v1496
      %1498 = vmatmul.f32.gmra.mxu0 %v738
      %v1499 = vpop.f32.mrf.mxu0
      %v1500 = vadd.f32 0.0, %v1499
      %1501 = vmatmul.f32.gmra.mxu0 %v740
      %v1502 = vpop.f32.mrf.mxu0
      %v1503 = vadd.f32 0.0, %v1502
      %1504 = vmatmul.f32.gmra.mxu0 %v742
      %v1505 = vpop.f32.mrf.mxu0
      %v1506 = vadd.f32 0.0, %v1505
      %1507 = vmatmul.f32.gmra.mxu0 %v744
      %v1508 = vpop.f32.mrf.mxu0
      %v1509 = vadd.f32 0.0, %v1508
      %1510 = vmatmul.f32.gmra.mxu0 %v746
      %v1511 = vpop.f32.mrf.mxu0
      %v1512 = vadd.f32 0.0, %v1511
      %1513 = vmatmul.f32.gmra.mxu0 %v748
      %v1514 = vpop.f32.mrf.mxu0
      %v1515 = vadd.f32 0.0, %v1514
      %1516 = vmatmul.f32.gmra.mxu0 %v750
      %v1517 = vpop.f32.mrf.mxu0
      %v1518 = vadd.f32 0.0, %v1517
      %1519 = vmatmul.f32.gmra.mxu0 %v752
      %v1520 = vpop.f32.mrf.mxu0
      %v1521 = vadd.f32 0.0, %v1520
      %1522 = vmatmul.f32.gmra.mxu0 %v1181
      %v1523 = vpop.f32.mrf.mxu0
      %v1524 = vadd.f32 0.0, %v1523
      %1525 = vmatmul.f32.gmra.mxu0 %v1183
      %v1526 = vpop.f32.mrf.mxu0
      %v1527 = vadd.f32 0.0, %v1526
      %1528 = vmatmul.f32.gmra.mxu0 %v1463
      %v1529 = vpop.f32.mrf.mxu0
      %v1530 = vadd.f32 0.0, %v1529
      %1531 = vmatmul.f32.gmra.mxu0 %v1465
      %v1532 = vpop.f32.mrf.mxu0
      %v1533 = vadd.f32 0.0, %v1532
      %1534 = vdwg.mxu0
      %v1535 = vadd.f32 %v1439, %v1488
      %v1536 = vadd.f32 %v1440, %v1491
      %v1537 = vadd.f32 %v1441, %v1494
      %v1538 = vadd.f32 %v1442, %v1497
      %v1539 = vadd.f32 %v1443, %v1500
      %v1540 = vadd.f32 %v1444, %v1503
      %v1541 = vadd.f32 %v1445, %v1506
      %v1542 = vadd.f32 %v1446, %v1509
      %v1543 = vadd.f32 %v1447, %v1512
      %v1544 = vadd.f32 %v1448, %v1515
      %v1545 = vadd.f32 %v1449, %v1518
      %v1546 = vadd.f32 %v1450, %v1521
      %v1547 = vadd.f32 %v1451, %v1524
      %v1548 = vadd.f32 %v1452, %v1527
      %v1549 = vadd.f32 %v1453, %v1530
      %v1550 = vadd.f32 %v1454, %v1533
      %v1551 = vrot.slane %v650, 2
      %v1552 = vrot.slane %v620, 2
      %v1553 = vsel %vm923, %v1551, %v1552
      %v1554 = vrot.slane %v660, 2
      %v1555 = vsel %vm923, %v1552, %v1554
      %s1556 = scalar_lea.vmem %s3, 32
      %v1557 = vld [vmem:[%s1556] sm:$0xf]
      %v1558 = vsel %vm721, %v1553, 0
      %v1560 = vsel %vm721, %v1555, 0
      %v1563 = vsel %vm754, %v1557, 0
      %1565 = vmatpush.msra.mxu0 0.0
      %1566 = vmatpush.msra.mxu0 0.0
      %1567 = vmatpush.msra.mxu0 0.0
      %1568 = vmatpush.msra.mxu0 0.0
      %1569 = vmatpush.msra.mxu0 0.0
      %1570 = vmatpush.msra.mxu0 0.0
      %1571 = vmatpush.msra.mxu0 0.0
      %1572 = vmatpush.msra.mxu0 0.0
      %1573 = vmatpush.msra.mxu0 0.0
      %1574 = vmatpush.msra.mxu0 0.0
      %1575 = vmatpush.msra.mxu0 0.0
      %1576 = vmatpush.msra.mxu0 0.0
      %1577 = vmatpush.msra.mxu0 0.0
      %1578 = vmatpush.msra.mxu0 0.0
      %1579 = vmatpush.msra.mxu0 0.0
      %1580 = vmatpush.msra.mxu0 %v1563
      %1581 = vmatmul.f32.gmra.mxu0 %v974
      %v1582 = vpop.f32.mrf.mxu0
      %v1583 = vadd.f32 0.0, %v1582
      %1584 = vmatmul.f32.gmra.mxu0 %v976
      %v1585 = vpop.f32.mrf.mxu0
      %v1586 = vadd.f32 0.0, %v1585
      %1587 = vmatmul.f32.gmra.mxu0 %v978
      %v1588 = vpop.f32.mrf.mxu0
      %v1589 = vadd.f32 0.0, %v1588
      %1590 = vmatmul.f32.gmra.mxu0 %v980
      %v1591 = vpop.f32.mrf.mxu0
      %v1592 = vadd.f32 0.0, %v1591
      %1593 = vmatmul.f32.gmra.mxu0 %v982
      %v1594 = vpop.f32.mrf.mxu0
      %v1595 = vadd.f32 0.0, %v1594
      %1596 = vmatmul.f32.gmra.mxu0 %v984
      %v1597 = vpop.f32.mrf.mxu0
      %v1598 = vadd.f32 0.0, %v1597
      %1599 = vmatmul.f32.gmra.mxu0 %v986
      %v1600 = vpop.f32.mrf.mxu0
      %v1601 = vadd.f32 0.0, %v1600
      %1602 = vmatmul.f32.gmra.mxu0 %v988
      %v1603 = vpop.f32.mrf.mxu0
      %v1604 = vadd.f32 0.0, %v1603
      %1605 = vmatmul.f32.gmra.mxu0 %v990
      %v1606 = vpop.f32.mrf.mxu0
      %v1607 = vadd.f32 0.0, %v1606
      %1608 = vmatmul.f32.gmra.mxu0 %v992
      %v1609 = vpop.f32.mrf.mxu0
      %v1610 = vadd.f32 0.0, %v1609
      %1611 = vmatmul.f32.gmra.mxu0 %v994
      %v1612 = vpop.f32.mrf.mxu0
      %v1613 = vadd.f32 0.0, %v1612
      %1614 = vmatmul.f32.gmra.mxu0 %v996
      %v1615 = vpop.f32.mrf.mxu0
      %v1616 = vadd.f32 0.0, %v1615
      %1617 = vmatmul.f32.gmra.mxu0 %v1276
      %v1618 = vpop.f32.mrf.mxu0
      %v1619 = vadd.f32 0.0, %v1618
      %1620 = vmatmul.f32.gmra.mxu0 %v1278
      %v1621 = vpop.f32.mrf.mxu0
      %v1622 = vadd.f32 0.0, %v1621
      %1623 = vmatmul.f32.gmra.mxu0 %v1558
      %v1624 = vpop.f32.mrf.mxu0
      %v1625 = vadd.f32 0.0, %v1624
      %1626 = vmatmul.f32.gmra.mxu0 %v1560
      %v1627 = vpop.f32.mrf.mxu0
      %v1628 = vadd.f32 0.0, %v1627
      %1629 = vdwg.mxu0
      %v1630 = vadd.f32 %v1535, %v1583
      %v1631 = vadd.f32 %v1536, %v1586
      %v1632 = vadd.f32 %v1537, %v1589
      %v1633 = vadd.f32 %v1538, %v1592
      %v1634 = vadd.f32 %v1539, %v1595
      %v1635 = vadd.f32 %v1540, %v1598
      %v1636 = vadd.f32 %v1541, %v1601
      %v1637 = vadd.f32 %v1542, %v1604
      %v1638 = vadd.f32 %v1543, %v1607
      %v1639 = vadd.f32 %v1544, %v1610
      %v1640 = vadd.f32 %v1545, %v1613
      %v1641 = vadd.f32 %v1546, %v1616
      %v1642 = vadd.f32 %v1547, %v1619
      %v1643 = vadd.f32 %v1548, %v1622
      %v1644 = vadd.f32 %v1549, %v1625
      %v1645 = vadd.f32 %v1550, %v1628
      %v1646 = vld [vmem:[%s4] sm:$0x1]
      %v1648 = vperm.slane %v1646, 0
      %v1650 = vadd.f32 %v1630, %v1648
      %v1651 = vadd.f32 %v1631, %v1648
      %v1652 = vadd.f32 %v1632, %v1648
      %v1653 = vadd.f32 %v1633, %v1648
      %v1654 = vadd.f32 %v1634, %v1648
      %v1655 = vadd.f32 %v1635, %v1648
      %v1656 = vadd.f32 %v1636, %v1648
      %v1657 = vadd.f32 %v1637, %v1648
      %v1658 = vadd.f32 %v1638, %v1648
      %v1659 = vadd.f32 %v1639, %v1648
      %v1660 = vadd.f32 %v1640, %v1648
      %v1661 = vadd.f32 %v1641, %v1648
      %v1662 = vadd.f32 %v1642, %v1648
      %v1663 = vadd.f32 %v1643, %v1648
      %v1664 = vadd.f32 %v1644, %v1648
      %v1665 = vadd.f32 %v1645, %v1648
      %vm1666 = vcmask 64512
      %1667 = vst.msk [vmem:[%s522] sm:$0xff] %vm1666, %v1650
      %1668 = vst.msk [vmem:[%s522 + $0x8] sm:$0xff] %vm1666, %v1651
      %1669 = vst.msk [vmem:[%s522 + $0x10] sm:$0xff] %vm1666, %v1652
      %1670 = vst.msk [vmem:[%s522 + $0x18] sm:$0xff] %vm1666, %v1653
      %1671 = vst.msk [vmem:[%s522 + $0x20] sm:$0xff] %vm1666, %v1654
      %1672 = vst.msk [vmem:[%s522 + $0x28] sm:$0xff] %vm1666, %v1655
      %1673 = vst.msk [vmem:[%s522 + $0x30] sm:$0xff] %vm1666, %v1656
      %1674 = vst.msk [vmem:[%s522 + $0x38] sm:$0xff] %vm1666, %v1657
      %1675 = vst.msk [vmem:[%s522 + $0x40] sm:$0xff] %vm1666, %v1658
      %1676 = vst.msk [vmem:[%s522 + $0x48] sm:$0xff] %vm1666, %v1659
      %1677 = vst.msk [vmem:[%s522 + $0x50] sm:$0xff] %vm1666, %v1660
      %1678 = vst.msk [vmem:[%s522 + $0x58] sm:$0xff] %vm1666, %v1661
      %1679 = vst.msk [vmem:[%s522 + $0x60] sm:$0xff] %vm1666, %v1662
      %1680 = vst.msk [vmem:[%s522 + $0x68] sm:$0xff] %vm1666, %v1663
      %1681 = vst.msk [vmem:[%s522 + $0x70] sm:$0xff] %vm1666, %v1664
      %1682 = vst.msk [vmem:[%s522 + $0x78] sm:$0xff] %vm1666, %v1665
      %v1683 = vsel %vm1666, %v1650, 0.0
      %v1684 = vsel %vm1666, %v1651, 0.0
      %v1685 = vadd.f32 %v1683, %v1684
      %v1686 = vsel %vm1666, %v1652, 0.0
      %v1687 = vadd.f32 %v1685, %v1686
      %v1688 = vsel %vm1666, %v1653, 0.0
      %v1689 = vadd.f32 %v1687, %v1688
      %v1690 = vsel %vm1666, %v1654, 0.0
      %v1691 = vadd.f32 %v1689, %v1690
      %v1692 = vsel %vm1666, %v1655, 0.0
      %v1693 = vadd.f32 %v1691, %v1692
      %v1694 = vsel %vm1666, %v1656, 0.0
      %v1695 = vadd.f32 %v1693, %v1694
      %v1696 = vsel %vm1666, %v1657, 0.0
      %v1697 = vadd.f32 %v1695, %v1696
      %v1698 = vsel %vm1666, %v1658, 0.0
      %v1699 = vadd.f32 %v1697, %v1698
      %v1700 = vsel %vm1666, %v1659, 0.0
      %v1701 = vadd.f32 %v1699, %v1700
      %v1702 = vsel %vm1666, %v1660, 0.0
      %v1703 = vadd.f32 %v1701, %v1702
      %v1704 = vsel %vm1666, %v1661, 0.0
      %v1705 = vadd.f32 %v1703, %v1704
      %v1706 = vsel %vm1666, %v1662, 0.0
      %v1707 = vadd.f32 %v1705, %v1706
      %v1708 = vsel %vm1666, %v1663, 0.0
      %v1709 = vadd.f32 %v1707, %v1708
      %v1710 = vsel %vm1666, %v1664, 0.0
      %v1711 = vadd.f32 %v1709, %v1710
      %v1712 = vsel %vm1666, %v1665, 0.0
      %v1713 = vadd.f32 %v1711, %v1712
      %v1714 = vrot.slane %v1713, 4
      %v1715 = vadd.f32 %v1713, %v1714
      %v1716 = vrot.slane %v1715, 2
      %v1717 = vadd.f32 %v1715, %v1716
      %v1718 = vrot.slane %v1717, 1
      %v1719 = vadd.f32 %v1717, %v1718
      %v1720 = vmul.f32 %v1719, 0.0078125
      %v1721 = vsub.f32 %v1650, %v1720
      %v1722 = vsub.f32 %v1651, %v1720
      %v1723 = vsub.f32 %v1652, %v1720
      %v1724 = vsub.f32 %v1653, %v1720
      %v1725 = vsub.f32 %v1654, %v1720
      %v1726 = vsub.f32 %v1655, %v1720
      %v1727 = vsub.f32 %v1656, %v1720
      %v1728 = vsub.f32 %v1657, %v1720
      %v1729 = vsub.f32 %v1658, %v1720
      %v1730 = vsub.f32 %v1659, %v1720
      %v1731 = vsub.f32 %v1660, %v1720
      %v1732 = vsub.f32 %v1661, %v1720
      %v1733 = vsub.f32 %v1662, %v1720
      %v1734 = vsub.f32 %v1663, %v1720
      %v1735 = vsub.f32 %v1664, %v1720
      %v1736 = vsub.f32 %v1665, %v1720
      %v1737 = vmul.f32 %v1721, %v1721
      %v1738 = vmul.f32 %v1722, %v1722
      %v1739 = vmul.f32 %v1723, %v1723
      %v1740 = vmul.f32 %v1724, %v1724
      %v1741 = vmul.f32 %v1725, %v1725
      %v1742 = vmul.f32 %v1726, %v1726
      %v1743 = vmul.f32 %v1727, %v1727
      %v1744 = vmul.f32 %v1728, %v1728
      %v1745 = vmul.f32 %v1729, %v1729
      %v1746 = vmul.f32 %v1730, %v1730
      %v1747 = vmul.f32 %v1731, %v1731
      %v1748 = vmul.f32 %v1732, %v1732
      %v1749 = vmul.f32 %v1733, %v1733
      %v1750 = vmul.f32 %v1734, %v1734
      %v1751 = vmul.f32 %v1735, %v1735
      %v1752 = vmul.f32 %v1736, %v1736
      %v1753 = vsel %vm1666, %v1737, 0.0
      %v1754 = vsel %vm1666, %v1738, 0.0
      %v1755 = vadd.f32 %v1753, %v1754
      %v1756 = vsel %vm1666, %v1739, 0.0
      %v1757 = vadd.f32 %v1755, %v1756
      %v1758 = vsel %vm1666, %v1740, 0.0
      %v1759 = vadd.f32 %v1757, %v1758
      %v1760 = vsel %vm1666, %v1741, 0.0
      %v1761 = vadd.f32 %v1759, %v1760
      %v1762 = vsel %vm1666, %v1742, 0.0
      %v1763 = vadd.f32 %v1761, %v1762
      %v1764 = vsel %vm1666, %v1743, 0.0
      %v1765 = vadd.f32 %v1763, %v1764
      %v1766 = vsel %vm1666, %v1744, 0.0
      %v1767 = vadd.f32 %v1765, %v1766
      %v1768 = vsel %vm1666, %v1745, 0.0
      %v1769 = vadd.f32 %v1767, %v1768
      %v1770 = vsel %vm1666, %v1746, 0.0
      %v1771 = vadd.f32 %v1769, %v1770
      %v1772 = vsel %vm1666, %v1747, 0.0
      %v1773 = vadd.f32 %v1771, %v1772
      %v1774 = vsel %vm1666, %v1748, 0.0
      %v1775 = vadd.f32 %v1773, %v1774
      %v1776 = vsel %vm1666, %v1749, 0.0
      %v1777 = vadd.f32 %v1775, %v1776
      %v1778 = vsel %vm1666, %v1750, 0.0
      %v1779 = vadd.f32 %v1777, %v1778
      %v1780 = vsel %vm1666, %v1751, 0.0
      %v1781 = vadd.f32 %v1779, %v1780
      %v1782 = vsel %vm1666, %v1752, 0.0
      %v1783 = vadd.f32 %v1781, %v1782
      %v1784 = vrot.slane %v1783, 4
      %v1785 = vadd.f32 %v1783, %v1784
      %v1786 = vrot.slane %v1785, 2
      %v1787 = vadd.f32 %v1785, %v1786
      %v1788 = vrot.slane %v1787, 1
      %v1789 = vadd.f32 %v1787, %v1788
      %vm1790 = vcmask 57344
      %1791 = vst.msk [vmem:[%s530] sm:$0x1] %vm1790, %v1719
      %1792 = vst.msk [vmem:[%s537] sm:$0x1] %vm1790, %v1789
      %s1793 = smul.u32 8, %s26
      %p1794 = scmp.lt.s32.totalorder %s25, 1
      %s1795 = scalar_select %p1794, %s25, 1
      %p1796 = scmp.lt.s32.totalorder %s1793, 15
      %s1797 = scalar_select %p1796, %s1793, 15
      %s1798 = smul.addr %s1797, 2
      %s1799 = smul.addr %s1795, 32
      %s1800 = sadd.s32 %s1798, %s1799
      %s1801 = smul.addr %s1800, 8
      %s1802 = scalar_lea.vmem %s7, %s1801
      %p1803 = scmp.lt.s32.totalorder %s25, 1
      %s1804 = scalar_select %p1803, %s25, 1
      %p1805 = scmp.lt.s32.totalorder %s26, 1
      %s1806 = scalar_select %p1805, %s26, 1
      %s1807 = smul.addr %s1804, 2
      %s1808 = sadd.s32 %s1806, %s1807
      %s1809 = scalar_lea.vmem %s8, %s1808
      %p1810 = scmp.lt.s32.totalorder %s25, 1
      %s1811 = scalar_select %p1810, %s25, 1
      %p1812 = scmp.lt.s32.totalorder %s26, 1
      %s1813 = scalar_select %p1812, %s26, 1
      %s1814 = smul.addr %s1811, 2
      %s1815 = sadd.s32 %s1813, %s1814
      %s1816 = scalar_lea.vmem %s9, %s1815
      // Predicated region
      $region49: #{upsample_block.3} parent=47 // pred_check
        %p1817 = pneg %p237
      $region50: #{upsample_block.3} parent=47 // pred_check_branch
        %1819 = sbr.rel (%p1817) target = $region52
      $region51: #{upsample_block.3} parent=47 // pred_region
        %s1820 = smul.u32 8, %s26
      $region52: #{upsample_block.3} parent=47 // pred_fallthru
        _
      // Predicated region
      $region53: #{upsample_block.3} parent=47 // pred_check
        %p1821 = pneg %p265
      $region54: #{upsample_block.3} parent=47 // pred_check_branch
        %1823 = sbr.rel (%p1821) target = $region56
      $region55: #{upsample_block.3} parent=47 // pred_region
        _
      $region56: #{upsample_block.3} parent=47 // pred_fallthru
        _
      // Predicated region
      $region57: #{upsample_block.3} parent=47 // pred_check
        %p1824 = pneg %p293
      $region58: #{upsample_block.3} parent=47 // pred_check_branch
        %1826 = sbr.rel (%p1824) target = $region60
      $region59: #{upsample_block.3} parent=47 // pred_region
        _
      $region60: #{upsample_block.3} parent=47 // pred_fallthru
        _
    $region48: #{upsample_block.3} parent=5 // pred_fallthru
      _
    %p1827 = scmp.le.s32.totalorder 2, %s16
    // Predicated region
    $region61: #{upsample_block.3} parent=5 // pred_check
      %p1828 = pneg %p1827
    $region62: #{upsample_block.3} parent=5 // pred_check_branch
      %1830 = sbr.rel (%p1828) target = $region64
    $region63: #{upsample_block.3} parent=5 // pred_region
      %s1831 = ssub.s32 %s16, 2
      // Predicated region
      $region65: #{upsample_block.3} parent=63 // pred_check
        %p1832 = pneg %p243
      $region66: #{upsample_block.3} parent=63 // pred_check_branch
        %1834 = sbr.rel (%p1832) target = $region68
      $region67: #{upsample_block.3} parent=63 // pred_region
        %s1835 = smul.u32 8, %s28
        %p1836 = scmp.lt.s32.totalorder %s27, 1
        %s1837 = scalar_select %p1836, %s27, 1
        %p1838 = scmp.lt.s32.totalorder %s1835, 15
        %s1839 = scalar_select %p1838, %s1835, 15
        %s1840 = smul.addr %s1839, 2
        %s1841 = smul.addr %s1837, 32
        %s1842 = sadd.s32 %s1840, %s1841
        %s1843 = smul.addr %s1842, 8
        %s1844 = scalar_lea.vmem %s7, %s1843
      $region68: #{upsample_block.3} parent=63 // pred_fallthru
        _
      // Predicated region
      $region69: #{upsample_block.3} parent=63 // pred_check
        %p1845 = pneg %p271
      $region70: #{upsample_block.3} parent=63 // pred_check_branch
        %1847 = sbr.rel (%p1845) target = $region72
      $region71: #{upsample_block.3} parent=63 // pred_region
        %p1848 = scmp.lt.s32.totalorder %s27, 1
        %s1849 = scalar_select %p1848, %s27, 1
        %p1850 = scmp.lt.s32.totalorder %s28, 1
        %s1851 = scalar_select %p1850, %s28, 1
        %s1852 = smul.addr %s1849, 2
        %s1853 = sadd.s32 %s1851, %s1852
        %s1854 = scalar_lea.vmem %s8, %s1853
      $region72: #{upsample_block.3} parent=63 // pred_fallthru
        _
      // Predicated region
      $region73: #{upsample_block.3} parent=63 // pred_check
        %p1855 = pneg %p299
      $region74: #{upsample_block.3} parent=63 // pred_check_branch
        %1857 = sbr.rel (%p1855) target = $region76
      $region75: #{upsample_block.3} parent=63 // pred_region
        %p1858 = scmp.lt.s32.totalorder %s27, 1
        %s1859 = scalar_select %p1858, %s27, 1
        %p1860 = scmp.lt.s32.totalorder %s28, 1
        %s1861 = scalar_select %p1860, %s28, 1
        %s1862 = smul.addr %s1859, 2
        %s1863 = sadd.s32 %s1861, %s1862
        %s1864 = scalar_lea.vmem %s9, %s1863
      $region76: #{upsample_block.3} parent=63 // pred_fallthru
        _
    $region64: #{upsample_block.3} parent=5 // pred_fallthru
      _
  $region6: #{upsample_block.3} parent=0 // loop_footer
    %s20 = sadd.s32 1, %s16
  $region7: #{upsample_block.3} parent=0 // loop_footer_branch
    %15 = sbr.rel target = $region3
  $region8: #{upsample_block.3} parent=0 // loop_exit
    _

</llo_original>
